<compile_context>
chip_gen: v7x
topology: tpu7x:2x2x1
jax: 0.10.0
libtpu: 0.0.40
codegen_flags: <defaults>
</compile_context>

<pallas_src>
import functools

import jax
import jax.numpy as jnp
from jax.experimental import pallas as pl
from jax.experimental.pallas import tpu as pltpu


def _sigmoid(x):
    # tanh lowers to the EUP (its bundle slot is otherwise idle here), unlike
    # the f32 divide in 1/(1+exp(-x)) which expands to VALU Newton-Raphson.
    return 0.5 * jnp.tanh(0.5 * x) + 0.5


def discriminator_kernel(x_ref, w1_ref, b1_ref, w2_ref, b2_ref, w3_ref, b3_ref,
                         o_ref):
    # Matmul operands in bf16 (MXU-native), accumulate + elementwise in f32.
    x = x_ref[...].astype(jnp.bfloat16)
    # Layer 1: (TB, in) @ (in, H) + (1, H)
    h1 = _sigmoid(
        jnp.dot(x, w1_ref[...], preferred_element_type=jnp.float32)
        + b1_ref[...])
    # Layer 2: (TB, H) @ (H, H) + (1, H)
    h2 = _sigmoid(
        jnp.dot(h1.astype(jnp.bfloat16), w2_ref[...],
                preferred_element_type=jnp.float32)
        + b2_ref[...])
    # Layer 3: (TB, H) @ (H, out) + (1, out)
    o_ref[...] = _sigmoid(
        jnp.dot(h2.astype(jnp.bfloat16), w3_ref[...],
                preferred_element_type=jnp.float32)
        + b3_ref[...]).astype(o_ref.dtype)


@functools.partial(jax.jit, static_argnames=("block_b",))
def discriminator_forward(x, params, *, block_b=256):
    """x: (B, input_size) float32. params: prepared dict of w1,b1,w2,b2,w3,b3.

    Weights (w1,w2,w3) are expected pre-cast to bf16 (see prepare_params);
    biases stay f32.
    """
    w1, b1 = params["w1"], params["b1"]
    w2, b2 = params["w2"], params["b2"]
    w3, b3 = params["w3"], params["b3"]

    B, in_size = x.shape
    out_size = w3.shape[1]

    # Batch tile: multiple of 8 sublanes, capped by block_b.  With the default
    # block_b=256 and the demo batch this collapses to a single tile
    # (grid=(1,)), avoiding per-step overhead on single-TC v5e/v6e.
    tb = min(block_b, ((B + 7) // 8) * 8)
    tb = max(8, (tb // 8) * 8)
    pad_b = (-B) % tb
    x_p = jnp.pad(x, ((0, pad_b), (0, 0))) if pad_b else x
    b_padded = B + pad_b
    grid = (b_padded // tb,)

    def resident(arr):
        # Full-array block with a constant index_map: fetched once, stays
        # resident in VMEM across all batch tiles (never re-DMA'd).
        shape = arr.shape
        return pl.BlockSpec(shape, lambda i: (0,) * len(shape))

    out = pl.pallas_call(
        discriminator_kernel,
        out_shape=jax.ShapeDtypeStruct((b_padded, out_size), jnp.float32),
        grid=grid,
        in_specs=[
            # x tile: last dim equals the full array dim (100), so no padding
            # is needed; the slightly masked K-dim load is cheaper than a
            # wrapper-side pad op.
            pl.BlockSpec((tb, in_size), lambda i: (i, 0)),
            resident(w1), resident(b1),
            resident(w2), resident(b2),
            resident(w3), resident(b3),
        ],
        # Output last dim equals the full array dim (784): the masked tail
        # store on the final vreg column is far cheaper than a post-kernel
        # slice copy of the whole output.
        out_specs=pl.BlockSpec((tb, out_size), lambda i: (i, 0)),
        compiler_params=pltpu.CompilerParams(
            dimension_semantics=("parallel",)),
    )(x_p, w1, b1, w2, b2, w3, b3)

    return out if pad_b == 0 else out[:B]


def init_params(key, input_size, hidden_size, output_size):
    ks = jax.random.split(key, 6)
    scale = 0.05
    return {
        "w1": scale * jax.random.normal(ks[0], (input_size, hidden_size), jnp.float32),
        "b1": scale * jax.random.normal(ks[1], (1, hidden_size), jnp.float32),
        "w2": scale * jax.random.normal(ks[2], (hidden_size, hidden_size), jnp.float32),
        "b2": scale * jax.random.normal(ks[3], (1, hidden_size), jnp.float32),
        "w3": scale * jax.random.normal(ks[4], (hidden_size, output_size), jnp.float32),
        "b3": scale * jax.random.normal(ks[5], (1, output_size), jnp.float32),
    }


def prepare_params(params):
    """Hoisted, one-time prep: cast matmul weights to bf16; biases stay f32."""
    return {
        "w1": params["w1"].astype(jnp.bfloat16),
        "b1": params["b1"],
        "w2": params["w2"].astype(jnp.bfloat16),
        "b2": params["b2"],
        "w3": params["w3"].astype(jnp.bfloat16),
        "b3": params["b3"],
    }


def reference_forward_f32(x, p):
    h1 = jax.nn.sigmoid(x @ p["w1"] + p["b1"])
    h2 = jax.nn.sigmoid(h1 @ p["w2"] + p["b2"])
    return jax.nn.sigmoid(h2 @ p["w3"] + p["b3"])


def reference_forward_bf16(x, p):
    # Same arithmetic as the kernel: bf16 matmul operands, f32 accumulation
    # and f32 bias/sigmoid.
    def dot(a, w):
        return jnp.dot(a.astype(jnp.bfloat16), w.astype(jnp.bfloat16),
                       preferred_element_type=jnp.float32)
    h1 = jax.nn.sigmoid(dot(x, p["w1"]) + p["b1"])
    h2 = jax.nn.sigmoid(dot(h1, p["w2"]) + p["b2"])
    return jax.nn.sigmoid(dot(h2, p["w3"]) + p["b3"])


if __name__ == "__main__":
    # Module-level constants from the PyTorch script.
    input_size, hidden_size, output_size = 100, 256, 784
    batch = 256  # -> single 256-row tile, grid=(1,)

    key = jax.random.PRNGKey(0)
    kx, kp = jax.random.split(key)
    x = jax.random.normal(kx, (batch, input_size), jnp.float32)
    params_f32 = init_params(kp, input_size, hidden_size, output_size)
    params = prepare_params(params_f32)  # one-time bf16 cast, outside the forward

    out = discriminator_forward(x, params)
    out = jax.block_until_ready(out)
    assert out.shape == (batch, output_size), out.shape

    # Tight check against a reference using the same bf16-matmul arithmetic.
    ref_bf16 = reference_forward_bf16(x, params_f32)
    assert jnp.allclose(out, ref_bf16, atol=5e-4, rtol=5e-4), \
        "mismatch vs bf16-matmul reference"

    # Loose check against the pure-f32 PyTorch-equivalent math (bf16 matmul
    # introduces ~1e-3 level differences; outputs are sigmoids in [0,1]).
    ref_f32 = reference_forward_f32(x, params_f32)
    assert jnp.allclose(out, ref_f32, atol=3e-2), "mismatch vs f32 reference"

    print("KERNEL_OK")
</pallas_src>

<mosaic_0001>
module attributes {stable_mosaic.version = 11 : i64} {
  func.func @discriminator_kernel(%arg0: i32, %arg1: memref<256x100xf32, #tpu.memory_space<vmem>>, %arg2: memref<100x256xbf16, #tpu.memory_space<vmem>>, %arg3: memref<1x256xf32, #tpu.memory_space<vmem>>, %arg4: memref<256x256xbf16, #tpu.memory_space<vmem>>, %arg5: memref<1x256xf32, #tpu.memory_space<vmem>>, %arg6: memref<256x784xbf16, #tpu.memory_space<vmem>>, %arg7: memref<1x784xf32, #tpu.memory_space<vmem>>, %arg8: memref<256x784xf32, #tpu.memory_space<vmem>>) attributes {dimension_semantics = [#tpu.dimension_semantics<parallel>], iteration_bounds = array<i64: 1>, scalar_prefetch = 0 : i64, scratch_operands = 0 : i64, tpu.core_type = #tpu.core_type<tc>, window_params = [{transform_indices = @transform_0, window_bounds = array<i64: 256, 100>}, {pipeline_mode = #tpu.pipeline_mode<synchronous>, transform_indices = @transform_1, window_bounds = array<i64: 100, 256>}, {pipeline_mode = #tpu.pipeline_mode<synchronous>, transform_indices = @transform_2, window_bounds = array<i64: 1, 256>}, {pipeline_mode = #tpu.pipeline_mode<synchronous>, transform_indices = @transform_3, window_bounds = array<i64: 256, 256>}, {pipeline_mode = #tpu.pipeline_mode<synchronous>, transform_indices = @transform_4, window_bounds = array<i64: 1, 256>}, {pipeline_mode = #tpu.pipeline_mode<synchronous>, transform_indices = @transform_5, window_bounds = array<i64: 256, 784>}, {pipeline_mode = #tpu.pipeline_mode<synchronous>, transform_indices = @transform_6, window_bounds = array<i64: 1, 784>}, {transform_indices = @transform_7, window_bounds = array<i64: 256, 784>}]} {
    %c0 = arith.constant 0 : index
    %c0_0 = arith.constant 0 : index
    %0 = vector.load %arg1[%c0, %c0_0] : memref<256x100xf32, #tpu.memory_space<vmem>>, vector<256x100xf32>
    %1 = arith.truncf %0 : vector<256x100xf32> to vector<256x100xbf16>
    %c0_1 = arith.constant 0 : index
    %c0_2 = arith.constant 0 : index
    %2 = vector.load %arg2[%c0_1, %c0_2] : memref<100x256xbf16, #tpu.memory_space<vmem>>, vector<100x256xbf16>
    %cst = arith.constant dense<0.000000e+00> : vector<256x256xf32>
    %3 = tpu.matmul %1, %2, %cst {dimension_numbers = #tpu.dot_dimension_numbers<[1], [0], [0], [1], [0, 0, 1, 1], [], []>} : vector<256x100xbf16>, vector<100x256xbf16>, vector<256x256xf32> -> vector<256x256xf32>
    %c0_3 = arith.constant 0 : index
    %c0_4 = arith.constant 0 : index
    %4 = vector.load %arg3[%c0_3, %c0_4] : memref<1x256xf32, #tpu.memory_space<vmem>>, vector<1x256xf32>
    %5 = vector.broadcast %4 : vector<1x256xf32> to vector<256x256xf32>
    %6 = arith.addf %3, %5 : vector<256x256xf32>
    %cst_5 = arith.constant 5.000000e-01 : f32
    %7 = vector.broadcast %cst_5 : f32 to vector<256x256xf32>
    %8 = arith.mulf %7, %6 : vector<256x256xf32>
    %9 = math.tanh %8 : vector<256x256xf32>
    %cst_6 = arith.constant 5.000000e-01 : f32
    %10 = vector.broadcast %cst_6 : f32 to vector<256x256xf32>
    %11 = arith.mulf %10, %9 : vector<256x256xf32>
    %cst_7 = arith.constant 5.000000e-01 : f32
    %12 = vector.broadcast %cst_7 : f32 to vector<256x256xf32>
    %13 = arith.addf %11, %12 : vector<256x256xf32>
    %14 = arith.truncf %13 : vector<256x256xf32> to vector<256x256xbf16>
    %c0_8 = arith.constant 0 : index
    %c0_9 = arith.constant 0 : index
    %15 = vector.load %arg4[%c0_8, %c0_9] : memref<256x256xbf16, #tpu.memory_space<vmem>>, vector<256x256xbf16>
    %cst_10 = arith.constant dense<0.000000e+00> : vector<256x256xf32>
    %16 = tpu.matmul %14, %15, %cst_10 {dimension_numbers = #tpu.dot_dimension_numbers<[1], [0], [0], [1], [0, 0, 1, 1], [], []>} : vector<256x256xbf16>, vector<256x256xbf16>, vector<256x256xf32> -> vector<256x256xf32>
    %c0_11 = arith.constant 0 : index
    %c0_12 = arith.constant 0 : index
    %17 = vector.load %arg5[%c0_11, %c0_12] : memref<1x256xf32, #tpu.memory_space<vmem>>, vector<1x256xf32>
    %18 = vector.broadcast %17 : vector<1x256xf32> to vector<256x256xf32>
    %19 = arith.addf %16, %18 : vector<256x256xf32>
    %cst_13 = arith.constant 5.000000e-01 : f32
    %20 = vector.broadcast %cst_13 : f32 to vector<256x256xf32>
    %21 = arith.mulf %20, %19 : vector<256x256xf32>
    %22 = math.tanh %21 : vector<256x256xf32>
    %cst_14 = arith.constant 5.000000e-01 : f32
    %23 = vector.broadcast %cst_14 : f32 to vector<256x256xf32>
    %24 = arith.mulf %23, %22 : vector<256x256xf32>
    %cst_15 = arith.constant 5.000000e-01 : f32
    %25 = vector.broadcast %cst_15 : f32 to vector<256x256xf32>
    %26 = arith.addf %24, %25 : vector<256x256xf32>
    %27 = arith.truncf %26 : vector<256x256xf32> to vector<256x256xbf16>
    %c0_16 = arith.constant 0 : index
    %c0_17 = arith.constant 0 : index
    %28 = vector.load %arg6[%c0_16, %c0_17] : memref<256x784xbf16, #tpu.memory_space<vmem>>, vector<256x784xbf16>
    %cst_18 = arith.constant dense<0.000000e+00> : vector<256x784xf32>
    %29 = tpu.matmul %27, %28, %cst_18 {dimension_numbers = #tpu.dot_dimension_numbers<[1], [0], [0], [1], [0, 0, 1, 1], [], []>} : vector<256x256xbf16>, vector<256x784xbf16>, vector<256x784xf32> -> vector<256x784xf32>
    %c0_19 = arith.constant 0 : index
    %c0_20 = arith.constant 0 : index
    %30 = vector.load %arg7[%c0_19, %c0_20] : memref<1x784xf32, #tpu.memory_space<vmem>>, vector<1x784xf32>
    %31 = vector.broadcast %30 : vector<1x784xf32> to vector<256x784xf32>
    %32 = arith.addf %29, %31 : vector<256x784xf32>
    %cst_21 = arith.constant 5.000000e-01 : f32
    %33 = vector.broadcast %cst_21 : f32 to vector<256x784xf32>
    %34 = arith.mulf %33, %32 : vector<256x784xf32>
    %35 = math.tanh %34 : vector<256x784xf32>
    %cst_22 = arith.constant 5.000000e-01 : f32
    %36 = vector.broadcast %cst_22 : f32 to vector<256x784xf32>
    %37 = arith.mulf %36, %35 : vector<256x784xf32>
    %cst_23 = arith.constant 5.000000e-01 : f32
    %38 = vector.broadcast %cst_23 : f32 to vector<256x784xf32>
    %39 = arith.addf %37, %38 : vector<256x784xf32>
    %c0_24 = arith.constant 0 : index
    %c0_25 = arith.constant 0 : index
    %40 = vector.load %arg8[%c0_24, %c0_25] : memref<256x784xf32, #tpu.memory_space<vmem>>, vector<256x784xf32>
    tpu.vector_store %arg8[%c0_24, %c0_25], %39 {strides = array<i32>} : memref<256x784xf32, #tpu.memory_space<vmem>>, vector<256x784xf32>,
    return
  }
  func.func @transform_0(%arg0: i32) -> (i32, i32) {
    %c0_i32 = arith.constant 0 : i32
    %c0_i32_0 = arith.constant 0 : i32
    return %arg0, %c0_i32 : i32, i32
  }
  func.func @transform_1(%arg0: i32) -> (i32, i32) {
    %c0_i32 = arith.constant 0 : i32
    %c0_i32_0 = arith.constant 0 : i32
    %c0_i32_1 = arith.constant 0 : i32
    return %c0_i32, %c0_i32_0 : i32, i32
  }
  func.func @transform_2(%arg0: i32) -> (i32, i32) {
    %c0_i32 = arith.constant 0 : i32
    %c0_i32_0 = arith.constant 0 : i32
    %c0_i32_1 = arith.constant 0 : i32
    return %c0_i32, %c0_i32_0 : i32, i32
  }
  func.func @transform_3(%arg0: i32) -> (i32, i32) {
    %c0_i32 = arith.constant 0 : i32
    %c0_i32_0 = arith.constant 0 : i32
    %c0_i32_1 = arith.constant 0 : i32
    return %c0_i32, %c0_i32_0 : i32, i32
  }
  func.func @transform_4(%arg0: i32) -> (i32, i32) {
    %c0_i32 = arith.constant 0 : i32
    %c0_i32_0 = arith.constant 0 : i32
    %c0_i32_1 = arith.constant 0 : i32
    return %c0_i32, %c0_i32_0 : i32, i32
  }
  func.func @transform_5(%arg0: i32) -> (i32, i32) {
    %c0_i32 = arith.constant 0 : i32
    %c0_i32_0 = arith.constant 0 : i32
    %c0_i32_1 = arith.constant 0 : i32
    return %c0_i32, %c0_i32_0 : i32, i32
  }
  func.func @transform_6(%arg0: i32) -> (i32, i32) {
    %c0_i32 = arith.constant 0 : i32
    %c0_i32_0 = arith.constant 0 : i32
    %c0_i32_1 = arith.constant 0 : i32
    return %c0_i32, %c0_i32_0 : i32, i32
  }
  func.func @transform_7(%arg0: i32) -> (i32, i32) {
    %c0_i32 = arith.constant 0 : i32
    %c0_i32_0 = arith.constant 0 : i32
    return %arg0, %c0_i32 : i32, i32
  }
}

</mosaic_0001>

<llo_original>
// kernel: discriminator_forward.1
$region0: #{discriminator_forward.1}
  #allocation0 [shape = 'u32[]', space=smem, size = 0x4, offset = 0x4, fixed_abs, tag = 'smem constant byte address 0x4 - core index']
  #allocation1 [shape = 'u32[144,128]{1,0:T(1,128)}', space=vmem, size = 0x12000, scoped, tag = 'internal scratch']
  %s0 = inlined_call_operand.vmem [shape: f32[256,100], index: 0, kind: input, shape index: {}]
  %s1 = inlined_call_operand.vmem [shape: bf16[100,256], index: 1, kind: input, shape index: {}]
  %s2 = inlined_call_operand.vmem [shape: f32[1,256], index: 2, kind: input, shape index: {}]
  %s3 = inlined_call_operand.vmem [shape: bf16[256,256], index: 3, kind: input, shape index: {}]
  %s4 = inlined_call_operand.vmem [shape: f32[1,256], index: 4, kind: input, shape index: {}]
  %s5 = inlined_call_operand.vmem [shape: bf16[256,784], index: 5, kind: input, shape index: {}]
  %s6 = inlined_call_operand.vmem [shape: f32[1,784], index: 6, kind: input, shape index: {}]
  %s7 = inlined_call_operand.vmem [shape: f32[256,784], index: 7, kind: output, shape index: {}]
  %s8 = sld [smem:[#allocation0]]
  $region38: #{discriminator_forward.1} parent=0
    _
  %s10 = ssub.s32 1, %s8
  %s11 = scalar_select 0, %s10, %s8
  // Predicated region
  $region2: #{discriminator_forward.1} parent=0 // pred_check
    _
  $region3: #{discriminator_forward.1} parent=0 // pred_check_branch
    %13 = sbr.rel (0) target = $region5
  $region4: #{discriminator_forward.1} parent=0 // pred_region
    _
  $region5: #{discriminator_forward.1} parent=0 // pred_fallthru
    _
  // Predicated region
  $region6: #{discriminator_forward.1} parent=0 // pred_check
    _
  $region7: #{discriminator_forward.1} parent=0 // pred_check_branch
    %15 = sbr.rel (0) target = $region9
  $region8: #{discriminator_forward.1} parent=0 // pred_region
    _
  $region9: #{discriminator_forward.1} parent=0 // pred_fallthru
    _
  // Predicated region
  $region10: #{discriminator_forward.1} parent=0 // pred_check
    _
  $region11: #{discriminator_forward.1} parent=0 // pred_check_branch
    %17 = sbr.rel (0) target = $region13
  $region12: #{discriminator_forward.1} parent=0 // pred_region
    _
  $region13: #{discriminator_forward.1} parent=0 // pred_fallthru
    _
  // Predicated region
  $region14: #{discriminator_forward.1} parent=0 // pred_check
    _
  $region15: #{discriminator_forward.1} parent=0 // pred_check_branch
    %19 = sbr.rel (0) target = $region17
  $region16: #{discriminator_forward.1} parent=0 // pred_region
    _
  $region17: #{discriminator_forward.1} parent=0 // pred_fallthru
    _
  // Predicated region
  $region18: #{discriminator_forward.1} parent=0 // pred_check
    _
  $region19: #{discriminator_forward.1} parent=0 // pred_check_branch
    %21 = sbr.rel (0) target = $region21
  $region20: #{discriminator_forward.1} parent=0 // pred_region
    _
  $region21: #{discriminator_forward.1} parent=0 // pred_fallthru
    _
  // Predicated region
  $region22: #{discriminator_forward.1} parent=0 // pred_check
    _
  $region23: #{discriminator_forward.1} parent=0 // pred_check_branch
    %23 = sbr.rel (0) target = $region25
  $region24: #{discriminator_forward.1} parent=0 // pred_region
    _
  $region25: #{discriminator_forward.1} parent=0 // pred_fallthru
    _
  // Predicated region
  $region26: #{discriminator_forward.1} parent=0 // pred_check
    _
  $region27: #{discriminator_forward.1} parent=0 // pred_check_branch
    %25 = sbr.rel (0) target = $region29
  $region28: #{discriminator_forward.1} parent=0 // pred_region
    _
  $region29: #{discriminator_forward.1} parent=0 // pred_fallthru
    _
  %v27 = vld [vmem:[%s0] sm:$0xff]
  %v28 = vld [vmem:[%s0 + $0x8] sm:$0xff]
  %v29 = vld [vmem:[%s0 + $0x10] sm:$0xff]
  %v30 = vld [vmem:[%s0 + $0x18] sm:$0xff]
  %v31 = vld [vmem:[%s0 + $0x20] sm:$0xff]
  %v32 = vld [vmem:[%s0 + $0x28] sm:$0xff]
  %v33 = vld [vmem:[%s0 + $0x30] sm:$0xff]
  %v34 = vld [vmem:[%s0 + $0x38] sm:$0xff]
  %v35 = vld [vmem:[%s0 + $0x40] sm:$0xff]
  %v36 = vld [vmem:[%s0 + $0x48] sm:$0xff]
  %v37 = vld [vmem:[%s0 + $0x50] sm:$0xff]
  %v38 = vld [vmem:[%s0 + $0x58] sm:$0xff]
  %v39 = vld [vmem:[%s0 + $0x60] sm:$0xff]
  %v40 = vld [vmem:[%s0 + $0x68] sm:$0xff]
  %v41 = vld [vmem:[%s0 + $0x70] sm:$0xff]
  %v42 = vld [vmem:[%s0 + $0x78] sm:$0xff]
  %v43 = vld [vmem:[%s0 + $0x80] sm:$0xff]
  %v44 = vld [vmem:[%s0 + $0x88] sm:$0xff]
  %v45 = vld [vmem:[%s0 + $0x90] sm:$0xff]
  %v46 = vld [vmem:[%s0 + $0x98] sm:$0xff]
  %v47 = vld [vmem:[%s0 + $0xa0] sm:$0xff]
  %v48 = vld [vmem:[%s0 + $0xa8] sm:$0xff]
  %v49 = vld [vmem:[%s0 + $0xb0] sm:$0xff]
  %v50 = vld [vmem:[%s0 + $0xb8] sm:$0xff]
  %v51 = vld [vmem:[%s0 + $0xc0] sm:$0xff]
  %v52 = vld [vmem:[%s0 + $0xc8] sm:$0xff]
  %v53 = vld [vmem:[%s0 + $0xd0] sm:$0xff]
  %v54 = vld [vmem:[%s0 + $0xd8] sm:$0xff]
  %v55 = vld [vmem:[%s0 + $0xe0] sm:$0xff]
  %v56 = vld [vmem:[%s0 + $0xe8] sm:$0xff]
  %v57 = vld [vmem:[%s0 + $0xf0] sm:$0xff]
  %v58 = vld [vmem:[%s0 + $0xf8] sm:$0xff]
  %v59 = vpack.c.bf16 %v28, %v27
  %v60 = vpack.c.bf16 %v30, %v29
  %v61 = vpack.c.bf16 %v32, %v31
  %v62 = vpack.c.bf16 %v34, %v33
  %v63 = vpack.c.bf16 %v36, %v35
  %v64 = vpack.c.bf16 %v38, %v37
  %v65 = vpack.c.bf16 %v40, %v39
  %v66 = vpack.c.bf16 %v42, %v41
  %v67 = vpack.c.bf16 %v44, %v43
  %v68 = vpack.c.bf16 %v46, %v45
  %v69 = vpack.c.bf16 %v48, %v47
  %v70 = vpack.c.bf16 %v50, %v49
  %v71 = vpack.c.bf16 %v52, %v51
  %v72 = vpack.c.bf16 %v54, %v53
  %v73 = vpack.c.bf16 %v56, %v55
  %v74 = vpack.c.bf16 %v58, %v57
  %v75 = vld [vmem:[%s1] sm:$0xff]
  %v76 = vld [vmem:[%s1 + $0x8] sm:$0xff]
  %v77 = vld [vmem:[%s1 + $0x10] sm:$0xff]
  %v78 = vld [vmem:[%s1 + $0x18] sm:$0xff]
  %v79 = vld [vmem:[%s1 + $0x20] sm:$0xff]
  %v80 = vld [vmem:[%s1 + $0x28] sm:$0xff]
  %v81 = vld [vmem:[%s1 + $0x30] sm:$0xff]
  %v82 = vld [vmem:[%s1 + $0x38] sm:$0xff]
  %v83 = vld [vmem:[%s1 + $0x40] sm:$0xff]
  %v84 = vld [vmem:[%s1 + $0x48] sm:$0xff]
  %v85 = vld [vmem:[%s1 + $0x50] sm:$0xff]
  %v86 = vld [vmem:[%s1 + $0x58] sm:$0xff]
  %v87 = vld [vmem:[%s1 + $0x60] sm:$0x33]
  %v88 = vld [vmem:[%s2] sm:$0x3]
  %v90 = vlaneseq
  %v91 = vshrl.u32 %v90, 7
  %v92 = vsub.s32 0, %v91
  %v93 = vrot.slane %v88, %v92
  %v94 = vlaneseq
  %v95 = vshrl.u32 %v94, 7
  %v96 = vsub.s32 1, %v95
  %v97 = vrot.slane %v88, %v96
  %v113 = vunpack.c.l.b16 %v75
  %v114 = vunpack.c.h.b16 %v75
  %v115 = vunpack.c.l.b16 %v76
  %v116 = vunpack.c.h.b16 %v76
  %v117 = vunpack.c.l.b16 %v77
  %v118 = vunpack.c.h.b16 %v77
  %v119 = vunpack.c.l.b16 %v78
  %v120 = vunpack.c.h.b16 %v78
  %v121 = vunpack.c.l.b16 %v79
  %v122 = vunpack.c.h.b16 %v79
  %v123 = vunpack.c.l.b16 %v80
  %v124 = vunpack.c.h.b16 %v80
  %v125 = vunpack.c.l.b16 %v81
  %v126 = vunpack.c.h.b16 %v81
  %v127 = vunpack.c.l.b16 %v82
  %v128 = vunpack.c.h.b16 %v82
  %v129 = vunpack.c.l.b16 %v83
  %v130 = vunpack.c.h.b16 %v83
  %v131 = vunpack.c.l.b16 %v84
  %v132 = vunpack.c.h.b16 %v84
  %v133 = vunpack.c.l.b16 %v85
  %v134 = vunpack.c.h.b16 %v85
  %v135 = vunpack.c.l.b16 %v86
  %v136 = vunpack.c.h.b16 %v86
  %v137 = vunpack.c.l.b16 %v87
  %v138 = vunpack.c.h.b16 %v87
  %v139 = vpack.c.b16 %v115, %v113
  %v140 = vpack.c.b16 %v116, %v114
  %v141 = vpack.c.b16 %v119, %v117
  %v142 = vpack.c.b16 %v120, %v118
  %v143 = vpack.c.b16 %v123, %v121
  %v144 = vpack.c.b16 %v124, %v122
  %v145 = vpack.c.b16 %v127, %v125
  %v146 = vpack.c.b16 %v128, %v126
  %v147 = vpack.c.b16 %v131, %v129
  %v148 = vpack.c.b16 %v132, %v130
  %v149 = vpack.c.b16 %v135, %v133
  %v150 = vpack.c.b16 %v136, %v134
  %v151 = vpack.c.b16 %v137, %v137
  %v152 = vpack.c.b16 %v138, %v138
  %vm165 = vcmask 818176
  %v167 = vsel %vm165, %v59, 0
  %v170 = vsel %vm165, %v60, 0
  %v173 = vsel %vm165, %v61, 0
  %v176 = vsel %vm165, %v62, 0
  %v179 = vsel %vm165, %v63, 0
  %v182 = vsel %vm165, %v64, 0
  %v185 = vsel %vm165, %v65, 0
  %v188 = vsel %vm165, %v66, 0
  %v191 = vsel %vm165, %v67, 0
  %v194 = vsel %vm165, %v68, 0
  %v197 = vsel %vm165, %v69, 0
  %v200 = vsel %vm165, %v70, 0
  %v203 = vsel %vm165, %v71, 0
  %v206 = vsel %vm165, %v72, 0
  %v209 = vsel %vm165, %v73, 0
  %v212 = vsel %vm165, %v74, 0
  %vm214 = vcmask 1041408
  %v216 = vsel %vm214, %v151, 0
  %v219 = vsel %vm214, %v152, 0
  %221 = vmatprep.subr.bf16.mxu0 %v140
  %222 = vmatpush1.bf16.msra.mxu0 %v139
  %223 = vmatprep.subr.bf16.mxu0 %v142
  %224 = vmatpush1.bf16.msra.mxu0 %v141
  %225 = vmatprep.subr.bf16.mxu0 %v144
  %226 = vmatpush1.bf16.msra.mxu0 %v143
  %227 = vmatprep.subr.bf16.mxu0 %v146
  %228 = vmatpush1.bf16.msra.mxu0 %v145
  %229 = vmatprep.subr.bf16.mxu0 %v148
  %230 = vmatpush1.bf16.msra.mxu0 %v147
  %231 = vmatprep.subr.bf16.mxu0 %v150
  %232 = vmatpush1.bf16.msra.mxu0 %v149
  %233 = vmatprep.subr.bf16.mxu0 %v219
  %234 = vmatpush1.bf16.msra.mxu0 %v216
  %235 = vmatprep.subr.bf16.mxu0 0
  %236 = vmatpush1.bf16.msra.mxu0 0
  %237 = vmatprep.subr.bf16.mxu0 0
  %238 = vmatpush1.bf16.msra.mxu0 0
  %239 = vmatprep.subr.bf16.mxu0 0
  %240 = vmatpush1.bf16.msra.mxu0 0
  %241 = vmatprep.subr.bf16.mxu0 0
  %242 = vmatpush1.bf16.msra.mxu0 0
  %243 = vmatprep.subr.bf16.mxu0 0
  %244 = vmatpush1.bf16.msra.mxu0 0
  %245 = vmatprep.subr.bf16.mxu0 0
  %246 = vmatpush1.bf16.msra.mxu0 0
  %247 = vmatprep.subr.bf16.mxu0 0
  %248 = vmatpush1.bf16.msra.mxu0 0
  %249 = vmatprep.subr.bf16.mxu0 0
  %250 = vmatpush1.bf16.msra.mxu0 0
  %251 = vmatprep.subr.bf16.mxu0 0
  %252 = vmatpush1.bf16.msra.mxu0 0
  %253 = vmatprep.mubr.bf16.mxu0 0
  %254 = vmatmul.mubr.bf16.gmra.mrb[0].mxu0 %v167
  %v255 = vpop.f32.mrb[0].mxu0
  %v256 = vadd.f32 %v93, %v255
  %v257 = vpop.f32.mrb[0].mxu0
  %v258 = vadd.f32 %v97, %v257
  %v259 = vpop.f32.mrb[0].mxu0
  %v260 = vadd.f32 %v93, %v259
  %v261 = vpop.f32.mrb[0].mxu0
  %v262 = vadd.f32 %v97, %v261
  %263 = vmatprep.mubr.bf16.mxu0 0
  %264 = vmatmul.mubr.bf16.gmra.mrb[0].mxu0 %v170
  %v265 = vpop.f32.mrb[0].mxu0
  %v266 = vadd.f32 %v93, %v265
  %v267 = vpop.f32.mrb[0].mxu0
  %v268 = vadd.f32 %v97, %v267
  %v269 = vpop.f32.mrb[0].mxu0
  %v270 = vadd.f32 %v93, %v269
  %v271 = vpop.f32.mrb[0].mxu0
  %v272 = vadd.f32 %v97, %v271
  %273 = vmatprep.mubr.bf16.mxu0 0
  %274 = vmatmul.mubr.bf16.gmra.mrb[0].mxu0 %v173
  %v275 = vpop.f32.mrb[0].mxu0
  %v276 = vadd.f32 %v93, %v275
  %v277 = vpop.f32.mrb[0].mxu0
  %v278 = vadd.f32 %v97, %v277
  %v279 = vpop.f32.mrb[0].mxu0
  %v280 = vadd.f32 %v93, %v279
  %v281 = vpop.f32.mrb[0].mxu0
  %v282 = vadd.f32 %v97, %v281
  %283 = vmatprep.mubr.bf16.mxu0 0
  %284 = vmatmul.mubr.bf16.gmra.mrb[0].mxu0 %v176
  %v285 = vpop.f32.mrb[0].mxu0
  %v286 = vadd.f32 %v93, %v285
  %v287 = vpop.f32.mrb[0].mxu0
  %v288 = vadd.f32 %v97, %v287
  %v289 = vpop.f32.mrb[0].mxu0
  %v290 = vadd.f32 %v93, %v289
  %v291 = vpop.f32.mrb[0].mxu0
  %v292 = vadd.f32 %v97, %v291
  %293 = vmatprep.mubr.bf16.mxu0 0
  %294 = vmatmul.mubr.bf16.gmra.mrb[0].mxu0 %v179
  %v295 = vpop.f32.mrb[0].mxu0
  %v296 = vadd.f32 %v93, %v295
  %v297 = vpop.f32.mrb[0].mxu0
  %v298 = vadd.f32 %v97, %v297
  %v299 = vpop.f32.mrb[0].mxu0
  %v300 = vadd.f32 %v93, %v299
  %v301 = vpop.f32.mrb[0].mxu0
  %v302 = vadd.f32 %v97, %v301
  %303 = vmatprep.mubr.bf16.mxu0 0
  %304 = vmatmul.mubr.bf16.gmra.mrb[0].mxu0 %v182
  %v305 = vpop.f32.mrb[0].mxu0
  %v306 = vadd.f32 %v93, %v305
  %v307 = vpop.f32.mrb[0].mxu0
  %v308 = vadd.f32 %v97, %v307
  %v309 = vpop.f32.mrb[0].mxu0
  %v310 = vadd.f32 %v93, %v309
  %v311 = vpop.f32.mrb[0].mxu0
  %v312 = vadd.f32 %v97, %v311
  %313 = vmatprep.mubr.bf16.mxu0 0
  %314 = vmatmul.mubr.bf16.gmra.mrb[0].mxu0 %v185
  %v315 = vpop.f32.mrb[0].mxu0
  %v316 = vadd.f32 %v93, %v315
  %v317 = vpop.f32.mrb[0].mxu0
  %v318 = vadd.f32 %v97, %v317
  %v319 = vpop.f32.mrb[0].mxu0
  %v320 = vadd.f32 %v93, %v319
  %v321 = vpop.f32.mrb[0].mxu0
  %v322 = vadd.f32 %v97, %v321
  %323 = vmatprep.mubr.bf16.mxu0 0
  %324 = vmatmul.mubr.bf16.gmra.mrb[0].mxu0 %v188
  %v325 = vpop.f32.mrb[0].mxu0
  %v326 = vadd.f32 %v93, %v325
  %v327 = vpop.f32.mrb[0].mxu0
  %v328 = vadd.f32 %v97, %v327
  %v329 = vpop.f32.mrb[0].mxu0
  %v330 = vadd.f32 %v93, %v329
  %v331 = vpop.f32.mrb[0].mxu0
  %v332 = vadd.f32 %v97, %v331
  %333 = vmatprep.mubr.bf16.mxu0 0
  %334 = vmatmul.mubr.bf16.gmra.mrb[0].mxu0 %v191
  %v335 = vpop.f32.mrb[0].mxu0
  %v336 = vadd.f32 %v93, %v335
  %v337 = vpop.f32.mrb[0].mxu0
  %v338 = vadd.f32 %v97, %v337
  %v339 = vpop.f32.mrb[0].mxu0
  %v340 = vadd.f32 %v93, %v339
  %v341 = vpop.f32.mrb[0].mxu0
  %v342 = vadd.f32 %v97, %v341
  %343 = vmatprep.mubr.bf16.mxu0 0
  %344 = vmatmul.mubr.bf16.gmra.mrb[0].mxu0 %v194
  %v345 = vpop.f32.mrb[0].mxu0
  %v346 = vadd.f32 %v93, %v345
  %v347 = vpop.f32.mrb[0].mxu0
  %v348 = vadd.f32 %v97, %v347
  %v349 = vpop.f32.mrb[0].mxu0
  %v350 = vadd.f32 %v93, %v349
  %v351 = vpop.f32.mrb[0].mxu0
  %v352 = vadd.f32 %v97, %v351
  %353 = vmatprep.mubr.bf16.mxu0 0
  %354 = vmatmul.mubr.bf16.gmra.mrb[0].mxu0 %v197
  %v355 = vpop.f32.mrb[0].mxu0
  %v356 = vadd.f32 %v93, %v355
  %v357 = vpop.f32.mrb[0].mxu0
  %v358 = vadd.f32 %v97, %v357
  %v359 = vpop.f32.mrb[0].mxu0
  %v360 = vadd.f32 %v93, %v359
  %v361 = vpop.f32.mrb[0].mxu0
  %v362 = vadd.f32 %v97, %v361
  %363 = vmatprep.mubr.bf16.mxu0 0
  %364 = vmatmul.mubr.bf16.gmra.mrb[0].mxu0 %v200
  %v365 = vpop.f32.mrb[0].mxu0
  %v366 = vadd.f32 %v93, %v365
  %v367 = vpop.f32.mrb[0].mxu0
  %v368 = vadd.f32 %v97, %v367
  %v369 = vpop.f32.mrb[0].mxu0
  %v370 = vadd.f32 %v93, %v369
  %v371 = vpop.f32.mrb[0].mxu0
  %v372 = vadd.f32 %v97, %v371
  %373 = vmatprep.mubr.bf16.mxu0 0
  %374 = vmatmul.mubr.bf16.gmra.mrb[0].mxu0 %v203
  %v375 = vpop.f32.mrb[0].mxu0
  %v376 = vadd.f32 %v93, %v375
  %v377 = vpop.f32.mrb[0].mxu0
  %v378 = vadd.f32 %v97, %v377
  %v379 = vpop.f32.mrb[0].mxu0
  %v380 = vadd.f32 %v93, %v379
  %v381 = vpop.f32.mrb[0].mxu0
  %v382 = vadd.f32 %v97, %v381
  %383 = vmatprep.mubr.bf16.mxu0 0
  %384 = vmatmul.mubr.bf16.gmra.mrb[0].mxu0 %v206
  %v385 = vpop.f32.mrb[0].mxu0
  %v386 = vadd.f32 %v93, %v385
  %v387 = vpop.f32.mrb[0].mxu0
  %v388 = vadd.f32 %v97, %v387
  %v389 = vpop.f32.mrb[0].mxu0
  %v390 = vadd.f32 %v93, %v389
  %v391 = vpop.f32.mrb[0].mxu0
  %v392 = vadd.f32 %v97, %v391
  %393 = vmatprep.mubr.bf16.mxu0 0
  %394 = vmatmul.mubr.bf16.gmra.mrb[0].mxu0 %v209
  %v395 = vpop.f32.mrb[0].mxu0
  %v396 = vadd.f32 %v93, %v395
  %v397 = vpop.f32.mrb[0].mxu0
  %v398 = vadd.f32 %v97, %v397
  %v399 = vpop.f32.mrb[0].mxu0
  %v400 = vadd.f32 %v93, %v399
  %v401 = vpop.f32.mrb[0].mxu0
  %v402 = vadd.f32 %v97, %v401
  %403 = vmatprep.mubr.bf16.mxu0 0
  %404 = vmatmul.mubr.bf16.gmra.mrb[0].mxu0 %v212
  %v405 = vpop.f32.mrb[0].mxu0
  %v406 = vadd.f32 %v93, %v405
  %v407 = vpop.f32.mrb[0].mxu0
  %v408 = vadd.f32 %v97, %v407
  %v409 = vpop.f32.mrb[0].mxu0
  %v410 = vadd.f32 %v93, %v409
  %v411 = vpop.f32.mrb[0].mxu0
  %v412 = vadd.f32 %v97, %v411
  %413 = vdwg.mxu0
  %v414 = vmul.f32 %v256, 0.5
  %v415 = vmul.f32 %v258, 0.5
  %v416 = vmul.f32 %v260, 0.5
  %v417 = vmul.f32 %v262, 0.5
  %v418 = vmul.f32 %v266, 0.5
  %v419 = vmul.f32 %v268, 0.5
  %v420 = vmul.f32 %v270, 0.5
  %v421 = vmul.f32 %v272, 0.5
  %v422 = vmul.f32 %v276, 0.5
  %v423 = vmul.f32 %v278, 0.5
  %v424 = vmul.f32 %v280, 0.5
  %v425 = vmul.f32 %v282, 0.5
  %v426 = vmul.f32 %v286, 0.5
  %v427 = vmul.f32 %v288, 0.5
  %v428 = vmul.f32 %v290, 0.5
  %v429 = vmul.f32 %v292, 0.5
  %v430 = vmul.f32 %v296, 0.5
  %v431 = vmul.f32 %v298, 0.5
  %v432 = vmul.f32 %v300, 0.5
  %v433 = vmul.f32 %v302, 0.5
  %v434 = vmul.f32 %v306, 0.5
  %v435 = vmul.f32 %v308, 0.5
  %v436 = vmul.f32 %v310, 0.5
  %v437 = vmul.f32 %v312, 0.5
  %v438 = vmul.f32 %v316, 0.5
  %v439 = vmul.f32 %v318, 0.5
  %v440 = vmul.f32 %v320, 0.5
  %v441 = vmul.f32 %v322, 0.5
  %v442 = vmul.f32 %v326, 0.5
  %v443 = vmul.f32 %v328, 0.5
  %v444 = vmul.f32 %v330, 0.5
  %v445 = vmul.f32 %v332, 0.5
  %v446 = vmul.f32 %v336, 0.5
  %v447 = vmul.f32 %v338, 0.5
  %v448 = vmul.f32 %v340, 0.5
  %v449 = vmul.f32 %v342, 0.5
  %v450 = vmul.f32 %v346, 0.5
  %v451 = vmul.f32 %v348, 0.5
  %v452 = vmul.f32 %v350, 0.5
  %v453 = vmul.f32 %v352, 0.5
  %v454 = vmul.f32 %v356, 0.5
  %v455 = vmul.f32 %v358, 0.5
  %v456 = vmul.f32 %v360, 0.5
  %v457 = vmul.f32 %v362, 0.5
  %v458 = vmul.f32 %v366, 0.5
  %v459 = vmul.f32 %v368, 0.5
  %v460 = vmul.f32 %v370, 0.5
  %v461 = vmul.f32 %v372, 0.5
  %v462 = vmul.f32 %v376, 0.5
  %v463 = vmul.f32 %v378, 0.5
  %v464 = vmul.f32 %v380, 0.5
  %v465 = vmul.f32 %v382, 0.5
  %v466 = vmul.f32 %v386, 0.5
  %v467 = vmul.f32 %v388, 0.5
  %v468 = vmul.f32 %v390, 0.5
  %v469 = vmul.f32 %v392, 0.5
  %v470 = vmul.f32 %v396, 0.5
  %v471 = vmul.f32 %v398, 0.5
  %v472 = vmul.f32 %v400, 0.5
  %v473 = vmul.f32 %v402, 0.5
  %v474 = vmul.f32 %v406, 0.5
  %v475 = vmul.f32 %v408, 0.5
  %v476 = vmul.f32 %v410, 0.5
  %v477 = vmul.f32 %v412, 0.5
  %v478 = vtanh.pop %v414
  %v479 = vtanh.pop %v415
  %v480 = vtanh.pop %v416
  %v481 = vtanh.pop %v417
  %v482 = vtanh.pop %v418
  %v483 = vtanh.pop %v419
  %v484 = vtanh.pop %v420
  %v485 = vtanh.pop %v421
  %v486 = vtanh.pop %v422
  %v487 = vtanh.pop %v423
  %v488 = vtanh.pop %v424
  %v489 = vtanh.pop %v425
  %v490 = vtanh.pop %v426
  %v491 = vtanh.pop %v427
  %v492 = vtanh.pop %v428
  %v493 = vtanh.pop %v429
  %v494 = vtanh.pop %v430
  %v495 = vtanh.pop %v431
  %v496 = vtanh.pop %v432
  %v497 = vtanh.pop %v433
  %v498 = vtanh.pop %v434
  %v499 = vtanh.pop %v435
  %v500 = vtanh.pop %v436
  %v501 = vtanh.pop %v437
  %v502 = vtanh.pop %v438
  %v503 = vtanh.pop %v439
  %v504 = vtanh.pop %v440
  %v505 = vtanh.pop %v441
  %v506 = vtanh.pop %v442
  %v507 = vtanh.pop %v443
  %v508 = vtanh.pop %v444
  %v509 = vtanh.pop %v445
  %v510 = vtanh.pop %v446
  %v511 = vtanh.pop %v447
  %v512 = vtanh.pop %v448
  %v513 = vtanh.pop %v449
  %v514 = vtanh.pop %v450
  %v515 = vtanh.pop %v451
  %v516 = vtanh.pop %v452
  %v517 = vtanh.pop %v453
  %v518 = vtanh.pop %v454
  %v519 = vtanh.pop %v455
  %v520 = vtanh.pop %v456
  %v521 = vtanh.pop %v457
  %v522 = vtanh.pop %v458
  %v523 = vtanh.pop %v459
  %v524 = vtanh.pop %v460
  %v525 = vtanh.pop %v461
  %v526 = vtanh.pop %v462
  %v527 = vtanh.pop %v463
  %v528 = vtanh.pop %v464
  %v529 = vtanh.pop %v465
  %v530 = vtanh.pop %v466
  %v531 = vtanh.pop %v467
  %v532 = vtanh.pop %v468
  %v533 = vtanh.pop %v469
  %v534 = vtanh.pop %v470
  %v535 = vtanh.pop %v471
  %v536 = vtanh.pop %v472
  %v537 = vtanh.pop %v473
  %v538 = vtanh.pop %v474
  %v539 = vtanh.pop %v475
  %v540 = vtanh.pop %v476
  %v541 = vtanh.pop %v477
  %v542 = vmul.f32 %v478, 0.5
  %v543 = vmul.f32 %v479, 0.5
  %v544 = vmul.f32 %v480, 0.5
  %v545 = vmul.f32 %v481, 0.5
  %v546 = vmul.f32 %v482, 0.5
  %v547 = vmul.f32 %v483, 0.5
  %v548 = vmul.f32 %v484, 0.5
  %v549 = vmul.f32 %v485, 0.5
  %v550 = vmul.f32 %v486, 0.5
  %v551 = vmul.f32 %v487, 0.5
  %v552 = vmul.f32 %v488, 0.5
  %v553 = vmul.f32 %v489, 0.5
  %v554 = vmul.f32 %v490, 0.5
  %v555 = vmul.f32 %v491, 0.5
  %v556 = vmul.f32 %v492, 0.5
  %v557 = vmul.f32 %v493, 0.5
  %v558 = vmul.f32 %v494, 0.5
  %v559 = vmul.f32 %v495, 0.5
  %v560 = vmul.f32 %v496, 0.5
  %v561 = vmul.f32 %v497, 0.5
  %v562 = vmul.f32 %v498, 0.5
  %v563 = vmul.f32 %v499, 0.5
  %v564 = vmul.f32 %v500, 0.5
  %v565 = vmul.f32 %v501, 0.5
  %v566 = vmul.f32 %v502, 0.5
  %v567 = vmul.f32 %v503, 0.5
  %v568 = vmul.f32 %v504, 0.5
  %v569 = vmul.f32 %v505, 0.5
  %v570 = vmul.f32 %v506, 0.5
  %v571 = vmul.f32 %v507, 0.5
  %v572 = vmul.f32 %v508, 0.5
  %v573 = vmul.f32 %v509, 0.5
  %v574 = vmul.f32 %v510, 0.5
  %v575 = vmul.f32 %v511, 0.5
  %v576 = vmul.f32 %v512, 0.5
  %v577 = vmul.f32 %v513, 0.5
  %v578 = vmul.f32 %v514, 0.5
  %v579 = vmul.f32 %v515, 0.5
  %v580 = vmul.f32 %v516, 0.5
  %v581 = vmul.f32 %v517, 0.5
  %v582 = vmul.f32 %v518, 0.5
  %v583 = vmul.f32 %v519, 0.5
  %v584 = vmul.f32 %v520, 0.5
  %v585 = vmul.f32 %v521, 0.5
  %v586 = vmul.f32 %v522, 0.5
  %v587 = vmul.f32 %v523, 0.5
  %v588 = vmul.f32 %v524, 0.5
  %v589 = vmul.f32 %v525, 0.5
  %v590 = vmul.f32 %v526, 0.5
  %v591 = vmul.f32 %v527, 0.5
  %v592 = vmul.f32 %v528, 0.5
  %v593 = vmul.f32 %v529, 0.5
  %v594 = vmul.f32 %v530, 0.5
  %v595 = vmul.f32 %v531, 0.5
  %v596 = vmul.f32 %v532, 0.5
  %v597 = vmul.f32 %v533, 0.5
  %v598 = vmul.f32 %v534, 0.5
  %v599 = vmul.f32 %v535, 0.5
  %v600 = vmul.f32 %v536, 0.5
  %v601 = vmul.f32 %v537, 0.5
  %v602 = vmul.f32 %v538, 0.5
  %v603 = vmul.f32 %v539, 0.5
  %v604 = vmul.f32 %v540, 0.5
  %v605 = vmul.f32 %v541, 0.5
  %v606 = vadd.f32 %v542, 0.5
  %v607 = vadd.f32 %v543, 0.5
  %v608 = vadd.f32 %v544, 0.5
  %v609 = vadd.f32 %v545, 0.5
  %v610 = vadd.f32 %v546, 0.5
  %v611 = vadd.f32 %v547, 0.5
  %v612 = vadd.f32 %v548, 0.5
  %v613 = vadd.f32 %v549, 0.5
  %v614 = vadd.f32 %v550, 0.5
  %v615 = vadd.f32 %v551, 0.5
  %v616 = vadd.f32 %v552, 0.5
  %v617 = vadd.f32 %v553, 0.5
  %v618 = vadd.f32 %v554, 0.5
  %v619 = vadd.f32 %v555, 0.5
  %v620 = vadd.f32 %v556, 0.5
  %v621 = vadd.f32 %v557, 0.5
  %v622 = vadd.f32 %v558, 0.5
  %v623 = vadd.f32 %v559, 0.5
  %v624 = vadd.f32 %v560, 0.5
  %v625 = vadd.f32 %v561, 0.5
  %v626 = vadd.f32 %v562, 0.5
  %v627 = vadd.f32 %v563, 0.5
  %v628 = vadd.f32 %v564, 0.5
  %v629 = vadd.f32 %v565, 0.5
  %v630 = vadd.f32 %v566, 0.5
  %v631 = vadd.f32 %v567, 0.5
  %v632 = vadd.f32 %v568, 0.5
  %v633 = vadd.f32 %v569, 0.5
  %v634 = vadd.f32 %v570, 0.5
  %v635 = vadd.f32 %v571, 0.5
  %v636 = vadd.f32 %v572, 0.5
  %v637 = vadd.f32 %v573, 0.5
  %v638 = vadd.f32 %v574, 0.5
  %v639 = vadd.f32 %v575, 0.5
  %v640 = vadd.f32 %v576, 0.5
  %v641 = vadd.f32 %v577, 0.5
  %v642 = vadd.f32 %v578, 0.5
  %v643 = vadd.f32 %v579, 0.5
  %v644 = vadd.f32 %v580, 0.5
  %v645 = vadd.f32 %v581, 0.5
  %v646 = vadd.f32 %v582, 0.5
  %v647 = vadd.f32 %v583, 0.5
  %v648 = vadd.f32 %v584, 0.5
  %v649 = vadd.f32 %v585, 0.5
  %v650 = vadd.f32 %v586, 0.5
  %v651 = vadd.f32 %v587, 0.5
  %v652 = vadd.f32 %v588, 0.5
  %v653 = vadd.f32 %v589, 0.5
  %v654 = vadd.f32 %v590, 0.5
  %v655 = vadd.f32 %v591, 0.5
  %v656 = vadd.f32 %v592, 0.5
  %v657 = vadd.f32 %v593, 0.5
  %v658 = vadd.f32 %v594, 0.5
  %v659 = vadd.f32 %v595, 0.5
  %v660 = vadd.f32 %v596, 0.5
  %v661 = vadd.f32 %v597, 0.5
  %v662 = vadd.f32 %v598, 0.5
  %v663 = vadd.f32 %v599, 0.5
  %v664 = vadd.f32 %v600, 0.5
  %v665 = vadd.f32 %v601, 0.5
  %v666 = vadd.f32 %v602, 0.5
  %v667 = vadd.f32 %v603, 0.5
  %v668 = vadd.f32 %v604, 0.5
  %v669 = vadd.f32 %v605, 0.5
  %v670 = vpack.c.bf16 %v608, %v606
  %v671 = vpack.c.bf16 %v609, %v607
  %v672 = vpack.c.bf16 %v612, %v610
  %v673 = vpack.c.bf16 %v613, %v611
  %v674 = vpack.c.bf16 %v616, %v614
  %v675 = vpack.c.bf16 %v617, %v615
  %v676 = vpack.c.bf16 %v620, %v618
  %v677 = vpack.c.bf16 %v621, %v619
  %v678 = vpack.c.bf16 %v624, %v622
  %v679 = vpack.c.bf16 %v625, %v623
  %v680 = vpack.c.bf16 %v628, %v626
  %v681 = vpack.c.bf16 %v629, %v627
  %v682 = vpack.c.bf16 %v632, %v630
  %v683 = vpack.c.bf16 %v633, %v631
  %v684 = vpack.c.bf16 %v636, %v634
  %v685 = vpack.c.bf16 %v637, %v635
  %v686 = vpack.c.bf16 %v640, %v638
  %v687 = vpack.c.bf16 %v641, %v639
  %v688 = vpack.c.bf16 %v644, %v642
  %v689 = vpack.c.bf16 %v645, %v643
  %v690 = vpack.c.bf16 %v648, %v646
  %v691 = vpack.c.bf16 %v649, %v647
  %v692 = vpack.c.bf16 %v652, %v650
  %v693 = vpack.c.bf16 %v653, %v651
  %v694 = vpack.c.bf16 %v656, %v654
  %v695 = vpack.c.bf16 %v657, %v655
  %v696 = vpack.c.bf16 %v660, %v658
  %v697 = vpack.c.bf16 %v661, %v659
  %v698 = vpack.c.bf16 %v664, %v662
  %v699 = vpack.c.bf16 %v665, %v663
  %v700 = vpack.c.bf16 %v668, %v666
  %v701 = vpack.c.bf16 %v669, %v667
  %v702 = vld [vmem:[%s3] sm:$0xff]
  %v703 = vld [vmem:[%s3 + $0x8] sm:$0xff]
  %v704 = vld [vmem:[%s3 + $0x10] sm:$0xff]
  %v705 = vld [vmem:[%s3 + $0x18] sm:$0xff]
  %v706 = vld [vmem:[%s3 + $0x20] sm:$0xff]
  %v707 = vld [vmem:[%s3 + $0x28] sm:$0xff]
  %v708 = vld [vmem:[%s3 + $0x30] sm:$0xff]
  %v709 = vld [vmem:[%s3 + $0x38] sm:$0xff]
  %v710 = vld [vmem:[%s3 + $0x40] sm:$0xff]
  %v711 = vld [vmem:[%s3 + $0x48] sm:$0xff]
  %v712 = vld [vmem:[%s3 + $0x50] sm:$0xff]
  %v713 = vld [vmem:[%s3 + $0x58] sm:$0xff]
  %v714 = vld [vmem:[%s3 + $0x60] sm:$0xff]
  %v715 = vld [vmem:[%s3 + $0x68] sm:$0xff]
  %v716 = vld [vmem:[%s3 + $0x70] sm:$0xff]
  %v717 = vld [vmem:[%s3 + $0x78] sm:$0xff]
  %v718 = vld [vmem:[%s3 + $0x80] sm:$0xff]
  %v719 = vld [vmem:[%s3 + $0x88] sm:$0xff]
  %v720 = vld [vmem:[%s3 + $0x90] sm:$0xff]
  %v721 = vld [vmem:[%s3 + $0x98] sm:$0xff]
  %v722 = vld [vmem:[%s3 + $0xa0] sm:$0xff]
  %v723 = vld [vmem:[%s3 + $0xa8] sm:$0xff]
  %v724 = vld [vmem:[%s3 + $0xb0] sm:$0xff]
  %v725 = vld [vmem:[%s3 + $0xb8] sm:$0xff]
  %v726 = vld [vmem:[%s3 + $0xc0] sm:$0xff]
  %v727 = vld [vmem:[%s3 + $0xc8] sm:$0xff]
  %v728 = vld [vmem:[%s3 + $0xd0] sm:$0xff]
  %v729 = vld [vmem:[%s3 + $0xd8] sm:$0xff]
  %v730 = vld [vmem:[%s3 + $0xe0] sm:$0xff]
  %v731 = vld [vmem:[%s3 + $0xe8] sm:$0xff]
  %v732 = vld [vmem:[%s3 + $0xf0] sm:$0xff]
  %v733 = vld [vmem:[%s3 + $0xf8] sm:$0xff]
  %v734 = vld [vmem:[%s4] sm:$0x3]
  %v736 = vlaneseq
  %v737 = vshrl.u32 %v736, 7
  %v738 = vsub.s32 0, %v737
  %v739 = vrot.slane %v734, %v738
  %v740 = vlaneseq
  %v741 = vshrl.u32 %v740, 7
  %v742 = vsub.s32 1, %v741
  %v743 = vrot.slane %v734, %v742
  %v778 = vunpack.c.l.b16 %v702
  %v779 = vunpack.c.h.b16 %v702
  %v780 = vunpack.c.l.b16 %v703
  %v781 = vunpack.c.h.b16 %v703
  %v782 = vunpack.c.l.b16 %v704
  %v783 = vunpack.c.h.b16 %v704
  %v784 = vunpack.c.l.b16 %v705
  %v785 = vunpack.c.h.b16 %v705
  %v786 = vunpack.c.l.b16 %v706
  %v787 = vunpack.c.h.b16 %v706
  %v788 = vunpack.c.l.b16 %v707
  %v789 = vunpack.c.h.b16 %v707
  %v790 = vunpack.c.l.b16 %v708
  %v791 = vunpack.c.h.b16 %v708
  %v792 = vunpack.c.l.b16 %v709
  %v793 = vunpack.c.h.b16 %v709
  %v794 = vunpack.c.l.b16 %v710
  %v795 = vunpack.c.h.b16 %v710
  %v796 = vunpack.c.l.b16 %v711
  %v797 = vunpack.c.h.b16 %v711
  %v798 = vunpack.c.l.b16 %v712
  %v799 = vunpack.c.h.b16 %v712
  %v800 = vunpack.c.l.b16 %v713
  %v801 = vunpack.c.h.b16 %v713
  %v802 = vunpack.c.l.b16 %v714
  %v803 = vunpack.c.h.b16 %v714
  %v804 = vunpack.c.l.b16 %v715
  %v805 = vunpack.c.h.b16 %v715
  %v806 = vunpack.c.l.b16 %v716
  %v807 = vunpack.c.h.b16 %v716
  %v808 = vunpack.c.l.b16 %v717
  %v809 = vunpack.c.h.b16 %v717
  %v810 = vunpack.c.l.b16 %v718
  %v811 = vunpack.c.h.b16 %v718
  %v812 = vunpack.c.l.b16 %v719
  %v813 = vunpack.c.h.b16 %v719
  %v814 = vunpack.c.l.b16 %v720
  %v815 = vunpack.c.h.b16 %v720
  %v816 = vunpack.c.l.b16 %v721
  %v817 = vunpack.c.h.b16 %v721
  %v818 = vunpack.c.l.b16 %v722
  %v819 = vunpack.c.h.b16 %v722
  %v820 = vunpack.c.l.b16 %v723
  %v821 = vunpack.c.h.b16 %v723
  %v822 = vunpack.c.l.b16 %v724
  %v823 = vunpack.c.h.b16 %v724
  %v824 = vunpack.c.l.b16 %v725
  %v825 = vunpack.c.h.b16 %v725
  %v826 = vunpack.c.l.b16 %v726
  %v827 = vunpack.c.h.b16 %v726
  %v828 = vunpack.c.l.b16 %v727
  %v829 = vunpack.c.h.b16 %v727
  %v830 = vunpack.c.l.b16 %v728
  %v831 = vunpack.c.h.b16 %v728
  %v832 = vunpack.c.l.b16 %v729
  %v833 = vunpack.c.h.b16 %v729
  %v834 = vunpack.c.l.b16 %v730
  %v835 = vunpack.c.h.b16 %v730
  %v836 = vunpack.c.l.b16 %v731
  %v837 = vunpack.c.h.b16 %v731
  %v838 = vunpack.c.l.b16 %v732
  %v839 = vunpack.c.h.b16 %v732
  %v840 = vunpack.c.l.b16 %v733
  %v841 = vunpack.c.h.b16 %v733
  %v842 = vpack.c.b16 %v780, %v778
  %v843 = vpack.c.b16 %v781, %v779
  %v844 = vpack.c.b16 %v784, %v782
  %v845 = vpack.c.b16 %v785, %v783
  %v846 = vpack.c.b16 %v788, %v786
  %v847 = vpack.c.b16 %v789, %v787
  %v848 = vpack.c.b16 %v792, %v790
  %v849 = vpack.c.b16 %v793, %v791
  %v850 = vpack.c.b16 %v796, %v794
  %v851 = vpack.c.b16 %v797, %v795
  %v852 = vpack.c.b16 %v800, %v798
  %v853 = vpack.c.b16 %v801, %v799
  %v854 = vpack.c.b16 %v804, %v802
  %v855 = vpack.c.b16 %v805, %v803
  %v856 = vpack.c.b16 %v808, %v806
  %v857 = vpack.c.b16 %v809, %v807
  %v858 = vpack.c.b16 %v812, %v810
  %v859 = vpack.c.b16 %v813, %v811
  %v860 = vpack.c.b16 %v816, %v814
  %v861 = vpack.c.b16 %v817, %v815
  %v862 = vpack.c.b16 %v820, %v818
  %v863 = vpack.c.b16 %v821, %v819
  %v864 = vpack.c.b16 %v824, %v822
  %v865 = vpack.c.b16 %v825, %v823
  %v866 = vpack.c.b16 %v828, %v826
  %v867 = vpack.c.b16 %v829, %v827
  %v868 = vpack.c.b16 %v832, %v830
  %v869 = vpack.c.b16 %v833, %v831
  %v870 = vpack.c.b16 %v836, %v834
  %v871 = vpack.c.b16 %v837, %v835
  %v872 = vpack.c.b16 %v840, %v838
  %v873 = vpack.c.b16 %v841, %v839
  %906 = vmatprep.subr.bf16.mxu0 %v843
  %907 = vmatpush1.bf16.msra.mxu0 %v842
  %908 = vmatprep.subr.bf16.mxu0 %v845
  %909 = vmatpush1.bf16.msra.mxu0 %v844
  %910 = vmatprep.subr.bf16.mxu0 %v847
  %911 = vmatpush1.bf16.msra.mxu0 %v846
  %912 = vmatprep.subr.bf16.mxu0 %v849
  %913 = vmatpush1.bf16.msra.mxu0 %v848
  %914 = vmatprep.subr.bf16.mxu0 %v851
  %915 = vmatpush1.bf16.msra.mxu0 %v850
  %916 = vmatprep.subr.bf16.mxu0 %v853
  %917 = vmatpush1.bf16.msra.mxu0 %v852
  %918 = vmatprep.subr.bf16.mxu0 %v855
  %919 = vmatpush1.bf16.msra.mxu0 %v854
  %920 = vmatprep.subr.bf16.mxu0 %v857
  %921 = vmatpush1.bf16.msra.mxu0 %v856
  %922 = vmatprep.subr.bf16.mxu0 %v859
  %923 = vmatpush1.bf16.msra.mxu0 %v858
  %924 = vmatprep.subr.bf16.mxu0 %v861
  %925 = vmatpush1.bf16.msra.mxu0 %v860
  %926 = vmatprep.subr.bf16.mxu0 %v863
  %927 = vmatpush1.bf16.msra.mxu0 %v862
  %928 = vmatprep.subr.bf16.mxu0 %v865
  %929 = vmatpush1.bf16.msra.mxu0 %v864
  %930 = vmatprep.subr.bf16.mxu0 %v867
  %931 = vmatpush1.bf16.msra.mxu0 %v866
  %932 = vmatprep.subr.bf16.mxu0 %v869
  %933 = vmatpush1.bf16.msra.mxu0 %v868
  %934 = vmatprep.subr.bf16.mxu0 %v871
  %935 = vmatpush1.bf16.msra.mxu0 %v870
  %936 = vmatprep.subr.bf16.mxu0 %v873
  %937 = vmatpush1.bf16.msra.mxu0 %v872
  %938 = vmatprep.mubr.bf16.mxu0 %v671
  %939 = vmatmul.mubr.bf16.gmra.mrb[0].mxu0 %v670
  %v940 = vpop.f32.mrb[0].mxu0
  %v941 = vadd.f32 %v739, %v940
  %v942 = vpop.f32.mrb[0].mxu0
  %v943 = vadd.f32 %v743, %v942
  %v944 = vpop.f32.mrb[0].mxu0
  %v945 = vadd.f32 %v739, %v944
  %v946 = vpop.f32.mrb[0].mxu0
  %v947 = vadd.f32 %v743, %v946
  %948 = vmatprep.mubr.bf16.mxu0 %v673
  %949 = vmatmul.mubr.bf16.gmra.mrb[0].mxu0 %v672
  %v950 = vpop.f32.mrb[0].mxu0
  %v951 = vadd.f32 %v739, %v950
  %v952 = vpop.f32.mrb[0].mxu0
  %v953 = vadd.f32 %v743, %v952
  %v954 = vpop.f32.mrb[0].mxu0
  %v955 = vadd.f32 %v739, %v954
  %v956 = vpop.f32.mrb[0].mxu0
  %v957 = vadd.f32 %v743, %v956
  %958 = vmatprep.mubr.bf16.mxu0 %v675
  %959 = vmatmul.mubr.bf16.gmra.mrb[0].mxu0 %v674
  %v960 = vpop.f32.mrb[0].mxu0
  %v961 = vadd.f32 %v739, %v960
  %v962 = vpop.f32.mrb[0].mxu0
  %v963 = vadd.f32 %v743, %v962
  %v964 = vpop.f32.mrb[0].mxu0
  %v965 = vadd.f32 %v739, %v964
  %v966 = vpop.f32.mrb[0].mxu0
  %v967 = vadd.f32 %v743, %v966
  %968 = vmatprep.mubr.bf16.mxu0 %v677
  %969 = vmatmul.mubr.bf16.gmra.mrb[0].mxu0 %v676
  %v970 = vpop.f32.mrb[0].mxu0
  %v971 = vadd.f32 %v739, %v970
  %v972 = vpop.f32.mrb[0].mxu0
  %v973 = vadd.f32 %v743, %v972
  %v974 = vpop.f32.mrb[0].mxu0
  %v975 = vadd.f32 %v739, %v974
  %v976 = vpop.f32.mrb[0].mxu0
  %v977 = vadd.f32 %v743, %v976
  %978 = vmatprep.mubr.bf16.mxu0 %v679
  %979 = vmatmul.mubr.bf16.gmra.mrb[0].mxu0 %v678
  %v980 = vpop.f32.mrb[0].mxu0
  %v981 = vadd.f32 %v739, %v980
  %v982 = vpop.f32.mrb[0].mxu0
  %v983 = vadd.f32 %v743, %v982
  %v984 = vpop.f32.mrb[0].mxu0
  %v985 = vadd.f32 %v739, %v984
  %v986 = vpop.f32.mrb[0].mxu0
  %v987 = vadd.f32 %v743, %v986
  %988 = vmatprep.mubr.bf16.mxu0 %v681
  %989 = vmatmul.mubr.bf16.gmra.mrb[0].mxu0 %v680
  %v990 = vpop.f32.mrb[0].mxu0
  %v991 = vadd.f32 %v739, %v990
  %v992 = vpop.f32.mrb[0].mxu0
  %v993 = vadd.f32 %v743, %v992
  %v994 = vpop.f32.mrb[0].mxu0
  %v995 = vadd.f32 %v739, %v994
  %v996 = vpop.f32.mrb[0].mxu0
  %v997 = vadd.f32 %v743, %v996
  %998 = vmatprep.mubr.bf16.mxu0 %v683
  %999 = vmatmul.mubr.bf16.gmra.mrb[0].mxu0 %v682
  %v1000 = vpop.f32.mrb[0].mxu0
  %v1001 = vadd.f32 %v739, %v1000
  %v1002 = vpop.f32.mrb[0].mxu0
  %v1003 = vadd.f32 %v743, %v1002
  %v1004 = vpop.f32.mrb[0].mxu0
  %v1005 = vadd.f32 %v739, %v1004
  %v1006 = vpop.f32.mrb[0].mxu0
  %v1007 = vadd.f32 %v743, %v1006
  %1008 = vmatprep.mubr.bf16.mxu0 %v685
  %1009 = vmatmul.mubr.bf16.gmra.mrb[0].mxu0 %v684
  %v1010 = vpop.f32.mrb[0].mxu0
  %v1011 = vadd.f32 %v739, %v1010
  %v1012 = vpop.f32.mrb[0].mxu0
  %v1013 = vadd.f32 %v743, %v1012
  %v1014 = vpop.f32.mrb[0].mxu0
  %v1015 = vadd.f32 %v739, %v1014
  %v1016 = vpop.f32.mrb[0].mxu0
  %v1017 = vadd.f32 %v743, %v1016
  %1018 = vmatprep.mubr.bf16.mxu0 %v687
  %1019 = vmatmul.mubr.bf16.gmra.mrb[0].mxu0 %v686
  %v1020 = vpop.f32.mrb[0].mxu0
  %v1021 = vadd.f32 %v739, %v1020
  %v1022 = vpop.f32.mrb[0].mxu0
  %v1023 = vadd.f32 %v743, %v1022
  %v1024 = vpop.f32.mrb[0].mxu0
  %v1025 = vadd.f32 %v739, %v1024
  %v1026 = vpop.f32.mrb[0].mxu0
  %v1027 = vadd.f32 %v743, %v1026
  %1028 = vmatprep.mubr.bf16.mxu0 %v689
  %1029 = vmatmul.mubr.bf16.gmra.mrb[0].mxu0 %v688
  %v1030 = vpop.f32.mrb[0].mxu0
  %v1031 = vadd.f32 %v739, %v1030
  %v1032 = vpop.f32.mrb[0].mxu0
  %v1033 = vadd.f32 %v743, %v1032
  %v1034 = vpop.f32.mrb[0].mxu0
  %v1035 = vadd.f32 %v739, %v1034
  %v1036 = vpop.f32.mrb[0].mxu0
  %v1037 = vadd.f32 %v743, %v1036
  %1038 = vmatprep.mubr.bf16.mxu0 %v691
  %1039 = vmatmul.mubr.bf16.gmra.mrb[0].mxu0 %v690
  %v1040 = vpop.f32.mrb[0].mxu0
  %v1041 = vadd.f32 %v739, %v1040
  %v1042 = vpop.f32.mrb[0].mxu0
  %v1043 = vadd.f32 %v743, %v1042
  %v1044 = vpop.f32.mrb[0].mxu0
  %v1045 = vadd.f32 %v739, %v1044
  %v1046 = vpop.f32.mrb[0].mxu0
  %v1047 = vadd.f32 %v743, %v1046
  %1048 = vmatprep.mubr.bf16.mxu0 %v693
  %1049 = vmatmul.mubr.bf16.gmra.mrb[0].mxu0 %v692
  %v1050 = vpop.f32.mrb[0].mxu0
  %v1051 = vadd.f32 %v739, %v1050
  %v1052 = vpop.f32.mrb[0].mxu0
  %v1053 = vadd.f32 %v743, %v1052
  %v1054 = vpop.f32.mrb[0].mxu0
  %v1055 = vadd.f32 %v739, %v1054
  %v1056 = vpop.f32.mrb[0].mxu0
  %v1057 = vadd.f32 %v743, %v1056
  %1058 = vmatprep.mubr.bf16.mxu0 %v695
  %1059 = vmatmul.mubr.bf16.gmra.mrb[0].mxu0 %v694
  %v1060 = vpop.f32.mrb[0].mxu0
  %v1061 = vadd.f32 %v739, %v1060
  %v1062 = vpop.f32.mrb[0].mxu0
  %v1063 = vadd.f32 %v743, %v1062
  %v1064 = vpop.f32.mrb[0].mxu0
  %v1065 = vadd.f32 %v739, %v1064
  %v1066 = vpop.f32.mrb[0].mxu0
  %v1067 = vadd.f32 %v743, %v1066
  %1068 = vmatprep.mubr.bf16.mxu0 %v697
  %1069 = vmatmul.mubr.bf16.gmra.mrb[0].mxu0 %v696
  %v1070 = vpop.f32.mrb[0].mxu0
  %v1071 = vadd.f32 %v739, %v1070
  %v1072 = vpop.f32.mrb[0].mxu0
  %v1073 = vadd.f32 %v743, %v1072
  %v1074 = vpop.f32.mrb[0].mxu0
  %v1075 = vadd.f32 %v739, %v1074
  %v1076 = vpop.f32.mrb[0].mxu0
  %v1077 = vadd.f32 %v743, %v1076
  %1078 = vmatprep.mubr.bf16.mxu0 %v699
  %1079 = vmatmul.mubr.bf16.gmra.mrb[0].mxu0 %v698
  %v1080 = vpop.f32.mrb[0].mxu0
  %v1081 = vadd.f32 %v739, %v1080
  %v1082 = vpop.f32.mrb[0].mxu0
  %v1083 = vadd.f32 %v743, %v1082
  %v1084 = vpop.f32.mrb[0].mxu0
  %v1085 = vadd.f32 %v739, %v1084
  %v1086 = vpop.f32.mrb[0].mxu0
  %v1087 = vadd.f32 %v743, %v1086
  %1088 = vmatprep.mubr.bf16.mxu0 %v701
  %1089 = vmatmul.mubr.bf16.gmra.mrb[0].mxu0 %v700
  %v1090 = vpop.f32.mrb[0].mxu0
  %v1091 = vadd.f32 %v739, %v1090
  %v1092 = vpop.f32.mrb[0].mxu0
  %v1093 = vadd.f32 %v743, %v1092
  %v1094 = vpop.f32.mrb[0].mxu0
  %v1095 = vadd.f32 %v739, %v1094
  %v1096 = vpop.f32.mrb[0].mxu0
  %v1097 = vadd.f32 %v743, %v1096
  %1098 = vdwg.mxu0
  %v1099 = vmul.f32 %v941, 0.5
  %v1100 = vmul.f32 %v943, 0.5
  %v1101 = vmul.f32 %v945, 0.5
  %v1102 = vmul.f32 %v947, 0.5
  %v1103 = vmul.f32 %v951, 0.5
  %v1104 = vmul.f32 %v953, 0.5
  %v1105 = vmul.f32 %v955, 0.5
  %v1106 = vmul.f32 %v957, 0.5
  %v1107 = vmul.f32 %v961, 0.5
  %v1108 = vmul.f32 %v963, 0.5
  %v1109 = vmul.f32 %v965, 0.5
  %v1110 = vmul.f32 %v967, 0.5
  %v1111 = vmul.f32 %v971, 0.5
  %v1112 = vmul.f32 %v973, 0.5
  %v1113 = vmul.f32 %v975, 0.5
  %v1114 = vmul.f32 %v977, 0.5
  %v1115 = vmul.f32 %v981, 0.5
  %v1116 = vmul.f32 %v983, 0.5
  %v1117 = vmul.f32 %v985, 0.5
  %v1118 = vmul.f32 %v987, 0.5
  %v1119 = vmul.f32 %v991, 0.5
  %v1120 = vmul.f32 %v993, 0.5
  %v1121 = vmul.f32 %v995, 0.5
  %v1122 = vmul.f32 %v997, 0.5
  %v1123 = vmul.f32 %v1001, 0.5
  %v1124 = vmul.f32 %v1003, 0.5
  %v1125 = vmul.f32 %v1005, 0.5
  %v1126 = vmul.f32 %v1007, 0.5
  %v1127 = vmul.f32 %v1011, 0.5
  %v1128 = vmul.f32 %v1013, 0.5
  %v1129 = vmul.f32 %v1015, 0.5
  %v1130 = vmul.f32 %v1017, 0.5
  %v1131 = vmul.f32 %v1021, 0.5
  %v1132 = vmul.f32 %v1023, 0.5
  %v1133 = vmul.f32 %v1025, 0.5
  %v1134 = vmul.f32 %v1027, 0.5
  %v1135 = vmul.f32 %v1031, 0.5
  %v1136 = vmul.f32 %v1033, 0.5
  %v1137 = vmul.f32 %v1035, 0.5
  %v1138 = vmul.f32 %v1037, 0.5
  %v1139 = vmul.f32 %v1041, 0.5
  %v1140 = vmul.f32 %v1043, 0.5
  %v1141 = vmul.f32 %v1045, 0.5
  %v1142 = vmul.f32 %v1047, 0.5
  %v1143 = vmul.f32 %v1051, 0.5
  %v1144 = vmul.f32 %v1053, 0.5
  %v1145 = vmul.f32 %v1055, 0.5
  %v1146 = vmul.f32 %v1057, 0.5
  %v1147 = vmul.f32 %v1061, 0.5
  %v1148 = vmul.f32 %v1063, 0.5
  %v1149 = vmul.f32 %v1065, 0.5
  %v1150 = vmul.f32 %v1067, 0.5
  %v1151 = vmul.f32 %v1071, 0.5
  %v1152 = vmul.f32 %v1073, 0.5
  %v1153 = vmul.f32 %v1075, 0.5
  %v1154 = vmul.f32 %v1077, 0.5
  %v1155 = vmul.f32 %v1081, 0.5
  %v1156 = vmul.f32 %v1083, 0.5
  %v1157 = vmul.f32 %v1085, 0.5
  %v1158 = vmul.f32 %v1087, 0.5
  %v1159 = vmul.f32 %v1091, 0.5
  %v1160 = vmul.f32 %v1093, 0.5
  %v1161 = vmul.f32 %v1095, 0.5
  %v1162 = vmul.f32 %v1097, 0.5
  %v1163 = vtanh.pop %v1099
  %v1164 = vtanh.pop %v1100
  %v1165 = vtanh.pop %v1101
  %v1166 = vtanh.pop %v1102
  %v1167 = vtanh.pop %v1103
  %v1168 = vtanh.pop %v1104
  %v1169 = vtanh.pop %v1105
  %v1170 = vtanh.pop %v1106
  %v1171 = vtanh.pop %v1107
  %v1172 = vtanh.pop %v1108
  %v1173 = vtanh.pop %v1109
  %v1174 = vtanh.pop %v1110
  %v1175 = vtanh.pop %v1111
  %v1176 = vtanh.pop %v1112
  %v1177 = vtanh.pop %v1113
  %v1178 = vtanh.pop %v1114
  %v1179 = vtanh.pop %v1115
  %v1180 = vtanh.pop %v1116
  %v1181 = vtanh.pop %v1117
  %v1182 = vtanh.pop %v1118
  %v1183 = vtanh.pop %v1119
  %v1184 = vtanh.pop %v1120
  %v1185 = vtanh.pop %v1121
  %v1186 = vtanh.pop %v1122
  %v1187 = vtanh.pop %v1123
  %v1188 = vtanh.pop %v1124
  %v1189 = vtanh.pop %v1125
  %v1190 = vtanh.pop %v1126
  %v1191 = vtanh.pop %v1127
  %v1192 = vtanh.pop %v1128
  %v1193 = vtanh.pop %v1129
  %v1194 = vtanh.pop %v1130
  %v1195 = vtanh.pop %v1131
  %v1196 = vtanh.pop %v1132
  %v1197 = vtanh.pop %v1133
  %v1198 = vtanh.pop %v1134
  %v1199 = vtanh.pop %v1135
  %v1200 = vtanh.pop %v1136
  %v1201 = vtanh.pop %v1137
  %v1202 = vtanh.pop %v1138
  %v1203 = vtanh.pop %v1139
  %v1204 = vtanh.pop %v1140
  %v1205 = vtanh.pop %v1141
  %v1206 = vtanh.pop %v1142
  %v1207 = vtanh.pop %v1143
  %v1208 = vtanh.pop %v1144
  %v1209 = vtanh.pop %v1145
  %v1210 = vtanh.pop %v1146
  %v1211 = vtanh.pop %v1147
  %v1212 = vtanh.pop %v1148
  %v1213 = vtanh.pop %v1149
  %v1214 = vtanh.pop %v1150
  %v1215 = vtanh.pop %v1151
  %v1216 = vtanh.pop %v1152
  %v1217 = vtanh.pop %v1153
  %v1218 = vtanh.pop %v1154
  %v1219 = vtanh.pop %v1155
  %v1220 = vtanh.pop %v1156
  %v1221 = vtanh.pop %v1157
  %v1222 = vtanh.pop %v1158
  %v1223 = vtanh.pop %v1159
  %v1224 = vtanh.pop %v1160
  %v1225 = vtanh.pop %v1161
  %v1226 = vtanh.pop %v1162
  %v1227 = vmul.f32 %v1163, 0.5
  %v1228 = vmul.f32 %v1164, 0.5
  %v1229 = vmul.f32 %v1165, 0.5
  %v1230 = vmul.f32 %v1166, 0.5
  %v1231 = vmul.f32 %v1167, 0.5
  %v1232 = vmul.f32 %v1168, 0.5
  %v1233 = vmul.f32 %v1169, 0.5
  %v1234 = vmul.f32 %v1170, 0.5
  %v1235 = vmul.f32 %v1171, 0.5
  %v1236 = vmul.f32 %v1172, 0.5
  %v1237 = vmul.f32 %v1173, 0.5
  %v1238 = vmul.f32 %v1174, 0.5
  %v1239 = vmul.f32 %v1175, 0.5
  %v1240 = vmul.f32 %v1176, 0.5
  %v1241 = vmul.f32 %v1177, 0.5
  %v1242 = vmul.f32 %v1178, 0.5
  %v1243 = vmul.f32 %v1179, 0.5
  %v1244 = vmul.f32 %v1180, 0.5
  %v1245 = vmul.f32 %v1181, 0.5
  %v1246 = vmul.f32 %v1182, 0.5
  %v1247 = vmul.f32 %v1183, 0.5
  %v1248 = vmul.f32 %v1184, 0.5
  %v1249 = vmul.f32 %v1185, 0.5
  %v1250 = vmul.f32 %v1186, 0.5
  %v1251 = vmul.f32 %v1187, 0.5
  %v1252 = vmul.f32 %v1188, 0.5
  %v1253 = vmul.f32 %v1189, 0.5
  %v1254 = vmul.f32 %v1190, 0.5
  %v1255 = vmul.f32 %v1191, 0.5
  %v1256 = vmul.f32 %v1192, 0.5
  %v1257 = vmul.f32 %v1193, 0.5
  %v1258 = vmul.f32 %v1194, 0.5
  %v1259 = vmul.f32 %v1195, 0.5
  %v1260 = vmul.f32 %v1196, 0.5
  %v1261 = vmul.f32 %v1197, 0.5
  %v1262 = vmul.f32 %v1198, 0.5
  %v1263 = vmul.f32 %v1199, 0.5
  %v1264 = vmul.f32 %v1200, 0.5
  %v1265 = vmul.f32 %v1201, 0.5
  %v1266 = vmul.f32 %v1202, 0.5
  %v1267 = vmul.f32 %v1203, 0.5
  %v1268 = vmul.f32 %v1204, 0.5
  %v1269 = vmul.f32 %v1205, 0.5
  %v1270 = vmul.f32 %v1206, 0.5
  %v1271 = vmul.f32 %v1207, 0.5
  %v1272 = vmul.f32 %v1208, 0.5
  %v1273 = vmul.f32 %v1209, 0.5
  %v1274 = vmul.f32 %v1210, 0.5
  %v1275 = vmul.f32 %v1211, 0.5
  %v1276 = vmul.f32 %v1212, 0.5
  %v1277 = vmul.f32 %v1213, 0.5
  %v1278 = vmul.f32 %v1214, 0.5
  %v1279 = vmul.f32 %v1215, 0.5
  %v1280 = vmul.f32 %v1216, 0.5
  %v1281 = vmul.f32 %v1217, 0.5
  %v1282 = vmul.f32 %v1218, 0.5
  %v1283 = vmul.f32 %v1219, 0.5
  %v1284 = vmul.f32 %v1220, 0.5
  %v1285 = vmul.f32 %v1221, 0.5
  %v1286 = vmul.f32 %v1222, 0.5
  %v1287 = vmul.f32 %v1223, 0.5
  %v1288 = vmul.f32 %v1224, 0.5
  %v1289 = vmul.f32 %v1225, 0.5
  %v1290 = vmul.f32 %v1226, 0.5
  %v1291 = vadd.f32 %v1227, 0.5
  %v1292 = vadd.f32 %v1228, 0.5
  %v1293 = vadd.f32 %v1229, 0.5
  %v1294 = vadd.f32 %v1230, 0.5
  %v1295 = vadd.f32 %v1231, 0.5
  %v1296 = vadd.f32 %v1232, 0.5
  %v1297 = vadd.f32 %v1233, 0.5
  %v1298 = vadd.f32 %v1234, 0.5
  %v1299 = vadd.f32 %v1235, 0.5
  %v1300 = vadd.f32 %v1236, 0.5
  %v1301 = vadd.f32 %v1237, 0.5
  %v1302 = vadd.f32 %v1238, 0.5
  %v1303 = vadd.f32 %v1239, 0.5
  %v1304 = vadd.f32 %v1240, 0.5
  %v1305 = vadd.f32 %v1241, 0.5
  %v1306 = vadd.f32 %v1242, 0.5
  %v1307 = vadd.f32 %v1243, 0.5
  %v1308 = vadd.f32 %v1244, 0.5
  %v1309 = vadd.f32 %v1245, 0.5
  %v1310 = vadd.f32 %v1246, 0.5
  %v1311 = vadd.f32 %v1247, 0.5
  %v1312 = vadd.f32 %v1248, 0.5
  %v1313 = vadd.f32 %v1249, 0.5
  %v1314 = vadd.f32 %v1250, 0.5
  %v1315 = vadd.f32 %v1251, 0.5
  %v1316 = vadd.f32 %v1252, 0.5
  %v1317 = vadd.f32 %v1253, 0.5
  %v1318 = vadd.f32 %v1254, 0.5
  %v1319 = vadd.f32 %v1255, 0.5
  %v1320 = vadd.f32 %v1256, 0.5
  %v1321 = vadd.f32 %v1257, 0.5
  %v1322 = vadd.f32 %v1258, 0.5
  %v1323 = vadd.f32 %v1259, 0.5
  %v1324 = vadd.f32 %v1260, 0.5
  %v1325 = vadd.f32 %v1261, 0.5
  %v1326 = vadd.f32 %v1262, 0.5
  %v1327 = vadd.f32 %v1263, 0.5
  %v1328 = vadd.f32 %v1264, 0.5
  %v1329 = vadd.f32 %v1265, 0.5
  %v1330 = vadd.f32 %v1266, 0.5
  %v1331 = vadd.f32 %v1267, 0.5
  %v1332 = vadd.f32 %v1268, 0.5
  %v1333 = vadd.f32 %v1269, 0.5
  %v1334 = vadd.f32 %v1270, 0.5
  %v1335 = vadd.f32 %v1271, 0.5
  %v1336 = vadd.f32 %v1272, 0.5
  %v1337 = vadd.f32 %v1273, 0.5
  %v1338 = vadd.f32 %v1274, 0.5
  %v1339 = vadd.f32 %v1275, 0.5
  %v1340 = vadd.f32 %v1276, 0.5
  %v1341 = vadd.f32 %v1277, 0.5
  %v1342 = vadd.f32 %v1278, 0.5
  %v1343 = vadd.f32 %v1279, 0.5
  %v1344 = vadd.f32 %v1280, 0.5
  %v1345 = vadd.f32 %v1281, 0.5
  %v1346 = vadd.f32 %v1282, 0.5
  %v1347 = vadd.f32 %v1283, 0.5
  %v1348 = vadd.f32 %v1284, 0.5
  %v1349 = vadd.f32 %v1285, 0.5
  %v1350 = vadd.f32 %v1286, 0.5
  %v1351 = vadd.f32 %v1287, 0.5
  %v1352 = vadd.f32 %v1288, 0.5
  %v1353 = vadd.f32 %v1289, 0.5
  %v1354 = vadd.f32 %v1290, 0.5
  %v1355 = vpack.c.bf16 %v1293, %v1291
  %v1356 = vpack.c.bf16 %v1294, %v1292
  %v1357 = vpack.c.bf16 %v1297, %v1295
  %v1358 = vpack.c.bf16 %v1298, %v1296
  %v1359 = vpack.c.bf16 %v1301, %v1299
  %v1360 = vpack.c.bf16 %v1302, %v1300
  %v1361 = vpack.c.bf16 %v1305, %v1303
  %v1362 = vpack.c.bf16 %v1306, %v1304
  %v1363 = vpack.c.bf16 %v1309, %v1307
  %v1364 = vpack.c.bf16 %v1310, %v1308
  %v1365 = vpack.c.bf16 %v1313, %v1311
  %v1366 = vpack.c.bf16 %v1314, %v1312
  %v1367 = vpack.c.bf16 %v1317, %v1315
  %v1368 = vpack.c.bf16 %v1318, %v1316
  %v1369 = vpack.c.bf16 %v1321, %v1319
  %v1370 = vpack.c.bf16 %v1322, %v1320
  %v1371 = vpack.c.bf16 %v1325, %v1323
  %v1372 = vpack.c.bf16 %v1326, %v1324
  %v1373 = vpack.c.bf16 %v1329, %v1327
  %v1374 = vpack.c.bf16 %v1330, %v1328
  %v1375 = vpack.c.bf16 %v1333, %v1331
  %v1376 = vpack.c.bf16 %v1334, %v1332
  %v1377 = vpack.c.bf16 %v1337, %v1335
  %v1378 = vpack.c.bf16 %v1338, %v1336
  %v1379 = vpack.c.bf16 %v1341, %v1339
  %v1380 = vpack.c.bf16 %v1342, %v1340
  %v1381 = vpack.c.bf16 %v1345, %v1343
  %v1382 = vpack.c.bf16 %v1346, %v1344
  %v1383 = vpack.c.bf16 %v1349, %v1347
  %v1384 = vpack.c.bf16 %v1350, %v1348
  %v1385 = vpack.c.bf16 %v1353, %v1351
  %v1386 = vpack.c.bf16 %v1354, %v1352
  %v1387 = vld [vmem:[%s5] sm:$0xff]
  %v1388 = vld [vmem:[%s5 + $0x8] sm:$0xff]
  %v1389 = vld [vmem:[%s5 + $0x10] sm:$0xff]
  %v1390 = vld [vmem:[%s5 + $0x18] sm:$0xf]
  %v1391 = vld [vmem:[%s5 + $0x1c] sm:$0xff]
  %v1392 = vld [vmem:[%s5 + $0x24] sm:$0xff]
  %v1393 = vld [vmem:[%s5 + $0x2c] sm:$0xff]
  %v1394 = vld [vmem:[%s5 + $0x34] sm:$0xf]
  %v1395 = vld [vmem:[%s5 + $0x38] sm:$0xff]
  %v1396 = vld [vmem:[%s5 + $0x40] sm:$0xff]
  %v1397 = vld [vmem:[%s5 + $0x48] sm:$0xff]
  %v1398 = vld [vmem:[%s5 + $0x50] sm:$0xf]
  %v1399 = vld [vmem:[%s5 + $0x54] sm:$0xff]
  %v1400 = vld [vmem:[%s5 + $0x5c] sm:$0xff]
  %v1401 = vld [vmem:[%s5 + $0x64] sm:$0xff]
  %v1402 = vld [vmem:[%s5 + $0x6c] sm:$0xf]
  %v1403 = vld [vmem:[%s5 + $0x70] sm:$0xff]
  %v1404 = vld [vmem:[%s5 + $0x78] sm:$0xff]
  %v1405 = vld [vmem:[%s5 + $0x80] sm:$0xff]
  %v1406 = vld [vmem:[%s5 + $0x88] sm:$0xf]
  %v1407 = vld [vmem:[%s5 + $0x8c] sm:$0xff]
  %v1408 = vld [vmem:[%s5 + $0x94] sm:$0xff]
  %v1409 = vld [vmem:[%s5 + $0x9c] sm:$0xff]
  %v1410 = vld [vmem:[%s5 + $0xa4] sm:$0xf]
  %v1411 = vld [vmem:[%s5 + $0xa8] sm:$0xff]
  %v1412 = vld [vmem:[%s5 + $0xb0] sm:$0xff]
  %v1413 = vld [vmem:[%s5 + $0xb8] sm:$0xff]
  %v1414 = vld [vmem:[%s5 + $0xc0] sm:$0xf]
  %v1415 = vld [vmem:[%s5 + $0xc4] sm:$0xff]
  %v1416 = vld [vmem:[%s5 + $0xcc] sm:$0xff]
  %v1417 = vld [vmem:[%s5 + $0xd4] sm:$0xff]
  %v1418 = vld [vmem:[%s5 + $0xdc] sm:$0xf]
  %v1419 = vld [vmem:[%s5 + $0xe0] sm:$0xff]
  %v1420 = vld [vmem:[%s5 + $0xe8] sm:$0xff]
  %v1421 = vld [vmem:[%s5 + $0xf0] sm:$0xff]
  %v1422 = vld [vmem:[%s5 + $0xf8] sm:$0xf]
  %v1423 = vld [vmem:[%s5 + $0xfc] sm:$0xff]
  %v1424 = vld [vmem:[%s5 + $0x104] sm:$0xff]
  %v1425 = vld [vmem:[%s5 + $0x10c] sm:$0xff]
  %v1426 = vld [vmem:[%s5 + $0x114] sm:$0xf]
  %v1427 = vld [vmem:[%s5 + $0x118] sm:$0xff]
  %v1428 = vld [vmem:[%s5 + $0x120] sm:$0xff]
  %v1429 = vld [vmem:[%s5 + $0x128] sm:$0xff]
  %v1430 = vld [vmem:[%s5 + $0x130] sm:$0xf]
  %v1431 = vld [vmem:[%s5 + $0x134] sm:$0xff]
  %v1432 = vld [vmem:[%s5 + $0x13c] sm:$0xff]
  %v1433 = vld [vmem:[%s5 + $0x144] sm:$0xff]
  %v1434 = vld [vmem:[%s5 + $0x14c] sm:$0xf]
  %v1435 = vld [vmem:[%s5 + $0x150] sm:$0xff]
  %v1436 = vld [vmem:[%s5 + $0x158] sm:$0xff]
  %v1437 = vld [vmem:[%s5 + $0x160] sm:$0xff]
  %v1438 = vld [vmem:[%s5 + $0x168] sm:$0xf]
  %v1439 = vld [vmem:[%s5 + $0x16c] sm:$0xff]
  %v1440 = vld [vmem:[%s5 + $0x174] sm:$0xff]
  %v1441 = vld [vmem:[%s5 + $0x17c] sm:$0xff]
  %v1442 = vld [vmem:[%s5 + $0x184] sm:$0xf]
  %v1443 = vld [vmem:[%s5 + $0x188] sm:$0xff]
  %v1444 = vld [vmem:[%s5 + $0x190] sm:$0xff]
  %v1445 = vld [vmem:[%s5 + $0x198] sm:$0xff]
  %v1446 = vld [vmem:[%s5 + $0x1a0] sm:$0xf]
  %v1447 = vld [vmem:[%s5 + $0x1a4] sm:$0xff]
  %v1448 = vld [vmem:[%s5 + $0x1ac] sm:$0xff]
  %v1449 = vld [vmem:[%s5 + $0x1b4] sm:$0xff]
  %v1450 = vld [vmem:[%s5 + $0x1bc] sm:$0xf]
  %v1451 = vld [vmem:[%s5 + $0x1c0] sm:$0xff]
  %v1452 = vld [vmem:[%s5 + $0x1c8] sm:$0xff]
  %v1453 = vld [vmem:[%s5 + $0x1d0] sm:$0xff]
  %v1454 = vld [vmem:[%s5 + $0x1d8] sm:$0xf]
  %v1455 = vld [vmem:[%s5 + $0x1dc] sm:$0xff]
  %v1456 = vld [vmem:[%s5 + $0x1e4] sm:$0xff]
  %v1457 = vld [vmem:[%s5 + $0x1ec] sm:$0xff]
  %v1458 = vld [vmem:[%s5 + $0x1f4] sm:$0xf]
  %v1459 = vld [vmem:[%s5 + $0x1f8] sm:$0xff]
  %v1460 = vld [vmem:[%s5 + $0x200] sm:$0xff]
  %v1461 = vld [vmem:[%s5 + $0x208] sm:$0xff]
  %v1462 = vld [vmem:[%s5 + $0x210] sm:$0xf]
  %v1463 = vld [vmem:[%s5 + $0x214] sm:$0xff]
  %v1464 = vld [vmem:[%s5 + $0x21c] sm:$0xff]
  %v1465 = vld [vmem:[%s5 + $0x224] sm:$0xff]
  %v1466 = vld [vmem:[%s5 + $0x22c] sm:$0xf]
  %v1467 = vld [vmem:[%s5 + $0x230] sm:$0xff]
  %v1468 = vld [vmem:[%s5 + $0x238] sm:$0xff]
  %v1469 = vld [vmem:[%s5 + $0x240] sm:$0xff]
  %v1470 = vld [vmem:[%s5 + $0x248] sm:$0xf]
  %v1471 = vld [vmem:[%s5 + $0x24c] sm:$0xff]
  %v1472 = vld [vmem:[%s5 + $0x254] sm:$0xff]
  %v1473 = vld [vmem:[%s5 + $0x25c] sm:$0xff]
  %v1474 = vld [vmem:[%s5 + $0x264] sm:$0xf]
  %v1475 = vld [vmem:[%s5 + $0x268] sm:$0xff]
  %v1476 = vld [vmem:[%s5 + $0x270] sm:$0xff]
  %v1477 = vld [vmem:[%s5 + $0x278] sm:$0xff]
  %v1478 = vld [vmem:[%s5 + $0x280] sm:$0xf]
  %v1479 = vld [vmem:[%s5 + $0x284] sm:$0xff]
  %v1480 = vld [vmem:[%s5 + $0x28c] sm:$0xff]
  %v1481 = vld [vmem:[%s5 + $0x294] sm:$0xff]
  %v1482 = vld [vmem:[%s5 + $0x29c] sm:$0xf]
  %v1483 = vld [vmem:[%s5 + $0x2a0] sm:$0xff]
  %v1484 = vld [vmem:[%s5 + $0x2a8] sm:$0xff]
  %v1485 = vld [vmem:[%s5 + $0x2b0] sm:$0xff]
  %v1486 = vld [vmem:[%s5 + $0x2b8] sm:$0xf]
  %v1487 = vld [vmem:[%s5 + $0x2bc] sm:$0xff]
  %v1488 = vld [vmem:[%s5 + $0x2c4] sm:$0xff]
  %v1489 = vld [vmem:[%s5 + $0x2cc] sm:$0xff]
  %v1490 = vld [vmem:[%s5 + $0x2d4] sm:$0xf]
  %v1491 = vld [vmem:[%s5 + $0x2d8] sm:$0xff]
  %v1492 = vld [vmem:[%s5 + $0x2e0] sm:$0xff]
  %v1493 = vld [vmem:[%s5 + $0x2e8] sm:$0xff]
  %v1494 = vld [vmem:[%s5 + $0x2f0] sm:$0xf]
  %v1495 = vld [vmem:[%s5 + $0x2f4] sm:$0xff]
  %v1496 = vld [vmem:[%s5 + $0x2fc] sm:$0xff]
  %v1497 = vld [vmem:[%s5 + $0x304] sm:$0xff]
  %v1498 = vld [vmem:[%s5 + $0x30c] sm:$0xf]
  %v1499 = vld [vmem:[%s5 + $0x310] sm:$0xff]
  %v1500 = vld [vmem:[%s5 + $0x318] sm:$0xff]
  %v1501 = vld [vmem:[%s5 + $0x320] sm:$0xff]
  %v1502 = vld [vmem:[%s5 + $0x328] sm:$0xf]
  %v1503 = vld [vmem:[%s5 + $0x32c] sm:$0xff]
  %v1504 = vld [vmem:[%s5 + $0x334] sm:$0xff]
  %v1505 = vld [vmem:[%s5 + $0x33c] sm:$0xff]
  %v1506 = vld [vmem:[%s5 + $0x344] sm:$0xf]
  %v1507 = vld [vmem:[%s5 + $0x348] sm:$0xff]
  %v1508 = vld [vmem:[%s5 + $0x350] sm:$0xff]
  %v1509 = vld [vmem:[%s5 + $0x358] sm:$0xff]
  %v1510 = vld [vmem:[%s5 + $0x360] sm:$0xf]
  %v1511 = vld [vmem:[%s5 + $0x364] sm:$0xff]
  %v1512 = vld [vmem:[%s5 + $0x36c] sm:$0xff]
  %v1513 = vld [vmem:[%s5 + $0x374] sm:$0xff]
  %v1514 = vld [vmem:[%s5 + $0x37c] sm:$0xf]
  %v1515 = vld [vmem:[%s6] sm:$0x7f]
  %v1517 = vlaneseq
  %v1518 = vshrl.u32 %v1517, 7
  %v1519 = vsub.s32 0, %v1518
  %v1520 = vrot.slane %v1515, %v1519
  %v1521 = vlaneseq
  %v1522 = vshrl.u32 %v1521, 7
  %v1523 = vsub.s32 1, %v1522
  %v1524 = vrot.slane %v1515, %v1523
  %v1525 = vlaneseq
  %v1526 = vshrl.u32 %v1525, 7
  %v1527 = vsub.s32 2, %v1526
  %v1528 = vrot.slane %v1515, %v1527
  %v1529 = vlaneseq
  %v1530 = vshrl.u32 %v1529, 7
  %v1531 = vsub.s32 3, %v1530
  %v1532 = vrot.slane %v1515, %v1531
  %v1533 = vlaneseq
  %v1534 = vshrl.u32 %v1533, 7
  %v1535 = vsub.s32 4, %v1534
  %v1536 = vrot.slane %v1515, %v1535
  %v1537 = vlaneseq
  %v1538 = vshrl.u32 %v1537, 7
  %v1539 = vsub.s32 5, %v1538
  %v1540 = vrot.slane %v1515, %v1539
  %v1541 = vlaneseq
  %v1542 = vshrl.u32 %v1541, 7
  %v1543 = vsub.s32 6, %v1542
  %v1544 = vrot.slane %v1515, %v1543
  %v1680 = vunpack.c.l.b16 %v1387
  %v1681 = vunpack.c.h.b16 %v1387
  %v1682 = vunpack.c.l.b16 %v1388
  %v1683 = vunpack.c.h.b16 %v1388
  %v1684 = vunpack.c.l.b16 %v1389
  %v1685 = vunpack.c.h.b16 %v1389
  %v1686 = vunpack.c.l.b16 %v1390
  %v1687 = vunpack.c.l.b16 %v1391
  %v1688 = vunpack.c.h.b16 %v1391
  %v1689 = vunpack.c.l.b16 %v1392
  %v1690 = vunpack.c.h.b16 %v1392
  %v1691 = vunpack.c.l.b16 %v1393
  %v1692 = vunpack.c.h.b16 %v1393
  %v1693 = vunpack.c.l.b16 %v1394
  %v1694 = vunpack.c.l.b16 %v1395
  %v1695 = vunpack.c.h.b16 %v1395
  %v1696 = vunpack.c.l.b16 %v1396
  %v1697 = vunpack.c.h.b16 %v1396
  %v1698 = vunpack.c.l.b16 %v1397
  %v1699 = vunpack.c.h.b16 %v1397
  %v1700 = vunpack.c.l.b16 %v1398
  %v1701 = vunpack.c.l.b16 %v1399
  %v1702 = vunpack.c.h.b16 %v1399
  %v1703 = vunpack.c.l.b16 %v1400
  %v1704 = vunpack.c.h.b16 %v1400
  %v1705 = vunpack.c.l.b16 %v1401
  %v1706 = vunpack.c.h.b16 %v1401
  %v1707 = vunpack.c.l.b16 %v1402
  %v1708 = vunpack.c.l.b16 %v1403
  %v1709 = vunpack.c.h.b16 %v1403
  %v1710 = vunpack.c.l.b16 %v1404
  %v1711 = vunpack.c.h.b16 %v1404
  %v1712 = vunpack.c.l.b16 %v1405
  %v1713 = vunpack.c.h.b16 %v1405
  %v1714 = vunpack.c.l.b16 %v1406
  %v1715 = vunpack.c.l.b16 %v1407
  %v1716 = vunpack.c.h.b16 %v1407
  %v1717 = vunpack.c.l.b16 %v1408
  %v1718 = vunpack.c.h.b16 %v1408
  %v1719 = vunpack.c.l.b16 %v1409
  %v1720 = vunpack.c.h.b16 %v1409
  %v1721 = vunpack.c.l.b16 %v1410
  %v1722 = vunpack.c.l.b16 %v1411
  %v1723 = vunpack.c.h.b16 %v1411
  %v1724 = vunpack.c.l.b16 %v1412
  %v1725 = vunpack.c.h.b16 %v1412
  %v1726 = vunpack.c.l.b16 %v1413
  %v1727 = vunpack.c.h.b16 %v1413
  %v1728 = vunpack.c.l.b16 %v1414
  %v1729 = vunpack.c.l.b16 %v1415
  %v1730 = vunpack.c.h.b16 %v1415
  %v1731 = vunpack.c.l.b16 %v1416
  %v1732 = vunpack.c.h.b16 %v1416
  %v1733 = vunpack.c.l.b16 %v1417
  %v1734 = vunpack.c.h.b16 %v1417
  %v1735 = vunpack.c.l.b16 %v1418
  %v1736 = vunpack.c.l.b16 %v1419
  %v1737 = vunpack.c.h.b16 %v1419
  %v1738 = vunpack.c.l.b16 %v1420
  %v1739 = vunpack.c.h.b16 %v1420
  %v1740 = vunpack.c.l.b16 %v1421
  %v1741 = vunpack.c.h.b16 %v1421
  %v1742 = vunpack.c.l.b16 %v1422
  %v1743 = vunpack.c.l.b16 %v1423
  %v1744 = vunpack.c.h.b16 %v1423
  %v1745 = vunpack.c.l.b16 %v1424
  %v1746 = vunpack.c.h.b16 %v1424
  %v1747 = vunpack.c.l.b16 %v1425
  %v1748 = vunpack.c.h.b16 %v1425
  %v1749 = vunpack.c.l.b16 %v1426
  %v1750 = vunpack.c.l.b16 %v1427
  %v1751 = vunpack.c.h.b16 %v1427
  %v1752 = vunpack.c.l.b16 %v1428
  %v1753 = vunpack.c.h.b16 %v1428
  %v1754 = vunpack.c.l.b16 %v1429
  %v1755 = vunpack.c.h.b16 %v1429
  %v1756 = vunpack.c.l.b16 %v1430
  %v1757 = vunpack.c.l.b16 %v1431
  %v1758 = vunpack.c.h.b16 %v1431
  %v1759 = vunpack.c.l.b16 %v1432
  %v1760 = vunpack.c.h.b16 %v1432
  %v1761 = vunpack.c.l.b16 %v1433
  %v1762 = vunpack.c.h.b16 %v1433
  %v1763 = vunpack.c.l.b16 %v1434
  %v1764 = vunpack.c.l.b16 %v1435
  %v1765 = vunpack.c.h.b16 %v1435
  %v1766 = vunpack.c.l.b16 %v1436
  %v1767 = vunpack.c.h.b16 %v1436
  %v1768 = vunpack.c.l.b16 %v1437
  %v1769 = vunpack.c.h.b16 %v1437
  %v1770 = vunpack.c.l.b16 %v1438
  %v1771 = vunpack.c.l.b16 %v1439
  %v1772 = vunpack.c.h.b16 %v1439
  %v1773 = vunpack.c.l.b16 %v1440
  %v1774 = vunpack.c.h.b16 %v1440
  %v1775 = vunpack.c.l.b16 %v1441
  %v1776 = vunpack.c.h.b16 %v1441
  %v1777 = vunpack.c.l.b16 %v1442
  %v1778 = vunpack.c.l.b16 %v1443
  %v1779 = vunpack.c.h.b16 %v1443
  %v1780 = vunpack.c.l.b16 %v1444
  %v1781 = vunpack.c.h.b16 %v1444
  %v1782 = vunpack.c.l.b16 %v1445
  %v1783 = vunpack.c.h.b16 %v1445
  %v1784 = vunpack.c.l.b16 %v1446
  %v1785 = vunpack.c.l.b16 %v1447
  %v1786 = vunpack.c.h.b16 %v1447
  %v1787 = vunpack.c.l.b16 %v1448
  %v1788 = vunpack.c.h.b16 %v1448
  %v1789 = vunpack.c.l.b16 %v1449
  %v1790 = vunpack.c.h.b16 %v1449
  %v1791 = vunpack.c.l.b16 %v1450
  %v1792 = vunpack.c.l.b16 %v1451
  %v1793 = vunpack.c.h.b16 %v1451
  %v1794 = vunpack.c.l.b16 %v1452
  %v1795 = vunpack.c.h.b16 %v1452
  %v1796 = vunpack.c.l.b16 %v1453
  %v1797 = vunpack.c.h.b16 %v1453
  %v1798 = vunpack.c.l.b16 %v1454
  %v1799 = vunpack.c.l.b16 %v1455
  %v1800 = vunpack.c.h.b16 %v1455
  %v1801 = vunpack.c.l.b16 %v1456
  %v1802 = vunpack.c.h.b16 %v1456
  %v1803 = vunpack.c.l.b16 %v1457
  %v1804 = vunpack.c.h.b16 %v1457
  %v1805 = vunpack.c.l.b16 %v1458
  %v1806 = vunpack.c.l.b16 %v1459
  %v1807 = vunpack.c.h.b16 %v1459
  %v1808 = vunpack.c.l.b16 %v1460
  %v1809 = vunpack.c.h.b16 %v1460
  %v1810 = vunpack.c.l.b16 %v1461
  %v1811 = vunpack.c.h.b16 %v1461
  %v1812 = vunpack.c.l.b16 %v1462
  %v1813 = vunpack.c.l.b16 %v1463
  %v1814 = vunpack.c.h.b16 %v1463
  %v1815 = vunpack.c.l.b16 %v1464
  %v1816 = vunpack.c.h.b16 %v1464
  %v1817 = vunpack.c.l.b16 %v1465
  %v1818 = vunpack.c.h.b16 %v1465
  %v1819 = vunpack.c.l.b16 %v1466
  %v1820 = vunpack.c.l.b16 %v1467
  %v1821 = vunpack.c.h.b16 %v1467
  %v1822 = vunpack.c.l.b16 %v1468
  %v1823 = vunpack.c.h.b16 %v1468
  %v1824 = vunpack.c.l.b16 %v1469
  %v1825 = vunpack.c.h.b16 %v1469
  %v1826 = vunpack.c.l.b16 %v1470
  %v1827 = vunpack.c.l.b16 %v1471
  %v1828 = vunpack.c.h.b16 %v1471
  %v1829 = vunpack.c.l.b16 %v1472
  %v1830 = vunpack.c.h.b16 %v1472
  %v1831 = vunpack.c.l.b16 %v1473
  %v1832 = vunpack.c.h.b16 %v1473
  %v1833 = vunpack.c.l.b16 %v1474
  %v1834 = vunpack.c.l.b16 %v1475
  %v1835 = vunpack.c.h.b16 %v1475
  %v1836 = vunpack.c.l.b16 %v1476
  %v1837 = vunpack.c.h.b16 %v1476
  %v1838 = vunpack.c.l.b16 %v1477
  %v1839 = vunpack.c.h.b16 %v1477
  %v1840 = vunpack.c.l.b16 %v1478
  %v1841 = vunpack.c.l.b16 %v1479
  %v1842 = vunpack.c.h.b16 %v1479
  %v1843 = vunpack.c.l.b16 %v1480
  %v1844 = vunpack.c.h.b16 %v1480
  %v1845 = vunpack.c.l.b16 %v1481
  %v1846 = vunpack.c.h.b16 %v1481
  %v1847 = vunpack.c.l.b16 %v1482
  %v1848 = vunpack.c.l.b16 %v1483
  %v1849 = vunpack.c.h.b16 %v1483
  %v1850 = vunpack.c.l.b16 %v1484
  %v1851 = vunpack.c.h.b16 %v1484
  %v1852 = vunpack.c.l.b16 %v1485
  %v1853 = vunpack.c.h.b16 %v1485
  %v1854 = vunpack.c.l.b16 %v1486
  %v1855 = vunpack.c.l.b16 %v1487
  %v1856 = vunpack.c.h.b16 %v1487
  %v1857 = vunpack.c.l.b16 %v1488
  %v1858 = vunpack.c.h.b16 %v1488
  %v1859 = vunpack.c.l.b16 %v1489
  %v1860 = vunpack.c.h.b16 %v1489
  %v1861 = vunpack.c.l.b16 %v1490
  %v1862 = vunpack.c.l.b16 %v1491
  %v1863 = vunpack.c.h.b16 %v1491
  %v1864 = vunpack.c.l.b16 %v1492
  %v1865 = vunpack.c.h.b16 %v1492
  %v1866 = vunpack.c.l.b16 %v1493
  %v1867 = vunpack.c.h.b16 %v1493
  %v1868 = vunpack.c.l.b16 %v1494
  %v1869 = vunpack.c.l.b16 %v1495
  %v1870 = vunpack.c.h.b16 %v1495
  %v1871 = vunpack.c.l.b16 %v1496
  %v1872 = vunpack.c.h.b16 %v1496
  %v1873 = vunpack.c.l.b16 %v1497
  %v1874 = vunpack.c.h.b16 %v1497
  %v1875 = vunpack.c.l.b16 %v1498
  %v1876 = vunpack.c.l.b16 %v1499
  %v1877 = vunpack.c.h.b16 %v1499
  %v1878 = vunpack.c.l.b16 %v1500
  %v1879 = vunpack.c.h.b16 %v1500
  %v1880 = vunpack.c.l.b16 %v1501
  %v1881 = vunpack.c.h.b16 %v1501
  %v1882 = vunpack.c.l.b16 %v1502
  %v1883 = vunpack.c.l.b16 %v1503
  %v1884 = vunpack.c.h.b16 %v1503
  %v1885 = vunpack.c.l.b16 %v1504
  %v1886 = vunpack.c.h.b16 %v1504
  %v1887 = vunpack.c.l.b16 %v1505
  %v1888 = vunpack.c.h.b16 %v1505
  %v1889 = vunpack.c.l.b16 %v1506
  %v1890 = vunpack.c.l.b16 %v1507
  %v1891 = vunpack.c.h.b16 %v1507
  %v1892 = vunpack.c.l.b16 %v1508
  %v1893 = vunpack.c.h.b16 %v1508
  %v1894 = vunpack.c.l.b16 %v1509
  %v1895 = vunpack.c.h.b16 %v1509
  %v1896 = vunpack.c.l.b16 %v1510
  %v1897 = vunpack.c.l.b16 %v1511
  %v1898 = vunpack.c.h.b16 %v1511
  %v1899 = vunpack.c.l.b16 %v1512
  %v1900 = vunpack.c.h.b16 %v1512
  %v1901 = vunpack.c.l.b16 %v1513
  %v1902 = vunpack.c.h.b16 %v1513
  %v1903 = vunpack.c.l.b16 %v1514
  %v1904 = vpack.c.b16 %v1687, %v1680
  %v1905 = vpack.c.b16 %v1688, %v1681
  %v1906 = vpack.c.b16 %v1689, %v1682
  %v1907 = vpack.c.b16 %v1690, %v1683
  %v1908 = vpack.c.b16 %v1691, %v1684
  %v1909 = vpack.c.b16 %v1692, %v1685
  %v1910 = vpack.c.b16 %v1693, %v1686
  %v1911 = vpack.c.b16 %v1701, %v1694
  %v1912 = vpack.c.b16 %v1702, %v1695
  %v1913 = vpack.c.b16 %v1703, %v1696
  %v1914 = vpack.c.b16 %v1704, %v1697
  %v1915 = vpack.c.b16 %v1705, %v1698
  %v1916 = vpack.c.b16 %v1706, %v1699
  %v1917 = vpack.c.b16 %v1707, %v1700
  %v1918 = vpack.c.b16 %v1715, %v1708
  %v1919 = vpack.c.b16 %v1716, %v1709
  %v1920 = vpack.c.b16 %v1717, %v1710
  %v1921 = vpack.c.b16 %v1718, %v1711
  %v1922 = vpack.c.b16 %v1719, %v1712
  %v1923 = vpack.c.b16 %v1720, %v1713
  %v1924 = vpack.c.b16 %v1721, %v1714
  %v1925 = vpack.c.b16 %v1729, %v1722
  %v1926 = vpack.c.b16 %v1730, %v1723
  %v1927 = vpack.c.b16 %v1731, %v1724
  %v1928 = vpack.c.b16 %v1732, %v1725
  %v1929 = vpack.c.b16 %v1733, %v1726
  %v1930 = vpack.c.b16 %v1734, %v1727
  %v1931 = vpack.c.b16 %v1735, %v1728
  %v1932 = vpack.c.b16 %v1743, %v1736
  %v1933 = vpack.c.b16 %v1744, %v1737
  %v1934 = vpack.c.b16 %v1745, %v1738
  %v1935 = vpack.c.b16 %v1746, %v1739
  %v1936 = vpack.c.b16 %v1747, %v1740
  %v1937 = vpack.c.b16 %v1748, %v1741
  %v1938 = vpack.c.b16 %v1749, %v1742
  %v1939 = vpack.c.b16 %v1757, %v1750
  %v1940 = vpack.c.b16 %v1758, %v1751
  %v1941 = vpack.c.b16 %v1759, %v1752
  %v1942 = vpack.c.b16 %v1760, %v1753
  %v1943 = vpack.c.b16 %v1761, %v1754
  %v1944 = vpack.c.b16 %v1762, %v1755
  %v1945 = vpack.c.b16 %v1763, %v1756
  %v1946 = vpack.c.b16 %v1771, %v1764
  %v1947 = vpack.c.b16 %v1772, %v1765
  %v1948 = vpack.c.b16 %v1773, %v1766
  %v1949 = vpack.c.b16 %v1774, %v1767
  %v1950 = vpack.c.b16 %v1775, %v1768
  %v1951 = vpack.c.b16 %v1776, %v1769
  %v1952 = vpack.c.b16 %v1777, %v1770
  %v1953 = vpack.c.b16 %v1785, %v1778
  %v1954 = vpack.c.b16 %v1786, %v1779
  %v1955 = vpack.c.b16 %v1787, %v1780
  %v1956 = vpack.c.b16 %v1788, %v1781
  %v1957 = vpack.c.b16 %v1789, %v1782
  %v1958 = vpack.c.b16 %v1790, %v1783
  %v1959 = vpack.c.b16 %v1791, %v1784
  %v1960 = vpack.c.b16 %v1799, %v1792
  %v1961 = vpack.c.b16 %v1800, %v1793
  %v1962 = vpack.c.b16 %v1801, %v1794
  %v1963 = vpack.c.b16 %v1802, %v1795
  %v1964 = vpack.c.b16 %v1803, %v1796
  %v1965 = vpack.c.b16 %v1804, %v1797
  %v1966 = vpack.c.b16 %v1805, %v1798
  %v1967 = vpack.c.b16 %v1813, %v1806
  %v1968 = vpack.c.b16 %v1814, %v1807
  %v1969 = vpack.c.b16 %v1815, %v1808
  %v1970 = vpack.c.b16 %v1816, %v1809
  %v1971 = vpack.c.b16 %v1817, %v1810
  %v1972 = vpack.c.b16 %v1818, %v1811
  %v1973 = vpack.c.b16 %v1819, %v1812
  %v1974 = vpack.c.b16 %v1827, %v1820
  %v1975 = vpack.c.b16 %v1828, %v1821
  %v1976 = vpack.c.b16 %v1829, %v1822
  %v1977 = vpack.c.b16 %v1830, %v1823
  %v1978 = vpack.c.b16 %v1831, %v1824
  %v1979 = vpack.c.b16 %v1832, %v1825
  %v1980 = vpack.c.b16 %v1833, %v1826
  %v1981 = vpack.c.b16 %v1841, %v1834
  %v1982 = vpack.c.b16 %v1842, %v1835
  %v1983 = vpack.c.b16 %v1843, %v1836
  %v1984 = vpack.c.b16 %v1844, %v1837
  %v1985 = vpack.c.b16 %v1845, %v1838
  %v1986 = vpack.c.b16 %v1846, %v1839
  %v1987 = vpack.c.b16 %v1847, %v1840
  %v1988 = vpack.c.b16 %v1855, %v1848
  %v1989 = vpack.c.b16 %v1856, %v1849
  %v1990 = vpack.c.b16 %v1857, %v1850
  %v1991 = vpack.c.b16 %v1858, %v1851
  %v1992 = vpack.c.b16 %v1859, %v1852
  %v1993 = vpack.c.b16 %v1860, %v1853
  %v1994 = vpack.c.b16 %v1861, %v1854
  %v1995 = vpack.c.b16 %v1869, %v1862
  %v1996 = vpack.c.b16 %v1870, %v1863
  %v1997 = vpack.c.b16 %v1871, %v1864
  %v1998 = vpack.c.b16 %v1872, %v1865
  %v1999 = vpack.c.b16 %v1873, %v1866
  %v2000 = vpack.c.b16 %v1874, %v1867
  %v2001 = vpack.c.b16 %v1875, %v1868
  %v2002 = vpack.c.b16 %v1883, %v1876
  %v2003 = vpack.c.b16 %v1884, %v1877
  %v2004 = vpack.c.b16 %v1885, %v1878
  %v2005 = vpack.c.b16 %v1886, %v1879
  %v2006 = vpack.c.b16 %v1887, %v1880
  %v2007 = vpack.c.b16 %v1888, %v1881
  %v2008 = vpack.c.b16 %v1889, %v1882
  %v2009 = vpack.c.b16 %v1897, %v1890
  %v2010 = vpack.c.b16 %v1898, %v1891
  %v2011 = vpack.c.b16 %v1899, %v1892
  %v2012 = vpack.c.b16 %v1900, %v1893
  %v2013 = vpack.c.b16 %v1901, %v1894
  %v2014 = vpack.c.b16 %v1902, %v1895
  %v2015 = vpack.c.b16 %v1903, %v1896
  %2128 = vmatprep.subr.bf16.mxu0 %v1905
  %2129 = vmatpush1.bf16.msra.mxu0 %v1904
  %2130 = vmatprep.subr.bf16.mxu0 %v1912
  %2131 = vmatpush1.bf16.msra.mxu0 %v1911
  %2132 = vmatprep.subr.bf16.mxu0 %v1919
  %2133 = vmatpush1.bf16.msra.mxu0 %v1918
  %2134 = vmatprep.subr.bf16.mxu0 %v1926
  %2135 = vmatpush1.bf16.msra.mxu0 %v1925
  %2136 = vmatprep.subr.bf16.mxu0 %v1933
  %2137 = vmatpush1.bf16.msra.mxu0 %v1932
  %2138 = vmatprep.subr.bf16.mxu0 %v1940
  %2139 = vmatpush1.bf16.msra.mxu0 %v1939
  %2140 = vmatprep.subr.bf16.mxu0 %v1947
  %2141 = vmatpush1.bf16.msra.mxu0 %v1946
  %2142 = vmatprep.subr.bf16.mxu0 %v1954
  %2143 = vmatpush1.bf16.msra.mxu0 %v1953
  %2144 = vmatprep.subr.bf16.mxu0 %v1961
  %2145 = vmatpush1.bf16.msra.mxu0 %v1960
  %2146 = vmatprep.subr.bf16.mxu0 %v1968
  %2147 = vmatpush1.bf16.msra.mxu0 %v1967
  %2148 = vmatprep.subr.bf16.mxu0 %v1975
  %2149 = vmatpush1.bf16.msra.mxu0 %v1974
  %2150 = vmatprep.subr.bf16.mxu0 %v1982
  %2151 = vmatpush1.bf16.msra.mxu0 %v1981
  %2152 = vmatprep.subr.bf16.mxu0 %v1989
  %2153 = vmatpush1.bf16.msra.mxu0 %v1988
  %2154 = vmatprep.subr.bf16.mxu0 %v1996
  %2155 = vmatpush1.bf16.msra.mxu0 %v1995
  %2156 = vmatprep.subr.bf16.mxu0 %v2003
  %2157 = vmatpush1.bf16.msra.mxu0 %v2002
  %2158 = vmatprep.subr.bf16.mxu0 %v2010
  %2159 = vmatpush1.bf16.msra.mxu0 %v2009
  %2160 = vmatprep.mubr.bf16.mxu0 %v1356
  %2161 = vmatmul.mubr.bf16.gmra.mrb[0].mxu0 %v1355
  %v2162 = vpop.f32.mrb[0].mxu0
  %v2163 = vadd.f32 %v1520, %v2162
  %v2164 = vpop.f32.mrb[0].mxu0
  %v2165 = vadd.f32 %v1524, %v2164
  %v2166 = vpop.f32.mrb[0].mxu0
  %v2167 = vadd.f32 %v1520, %v2166
  %v2168 = vpop.f32.mrb[0].mxu0
  %v2169 = vadd.f32 %v1524, %v2168
  %2170 = vmatprep.mubr.bf16.mxu0 %v1358
  %2171 = vmatmul.mubr.bf16.gmra.mrb[0].mxu0 %v1357
  %v2172 = vpop.f32.mrb[0].mxu0
  %v2173 = vadd.f32 %v1520, %v2172
  %v2174 = vpop.f32.mrb[0].mxu0
  %v2175 = vadd.f32 %v1524, %v2174
  %v2176 = vpop.f32.mrb[0].mxu0
  %v2177 = vadd.f32 %v1520, %v2176
  %v2178 = vpop.f32.mrb[0].mxu0
  %v2179 = vadd.f32 %v1524, %v2178
  %2180 = vmatprep.mubr.bf16.mxu0 %v1360
  %2181 = vmatmul.mubr.bf16.gmra.mrb[0].mxu0 %v1359
  %v2182 = vpop.f32.mrb[0].mxu0
  %v2183 = vadd.f32 %v1520, %v2182
  %v2184 = vpop.f32.mrb[0].mxu0
  %v2185 = vadd.f32 %v1524, %v2184
  %v2186 = vpop.f32.mrb[0].mxu0
  %v2187 = vadd.f32 %v1520, %v2186
  %v2188 = vpop.f32.mrb[0].mxu0
  %v2189 = vadd.f32 %v1524, %v2188
  %2190 = vmatprep.mubr.bf16.mxu0 %v1362
  %2191 = vmatmul.mubr.bf16.gmra.mrb[0].mxu0 %v1361
  %v2192 = vpop.f32.mrb[0].mxu0
  %v2193 = vadd.f32 %v1520, %v2192
  %v2194 = vpop.f32.mrb[0].mxu0
  %v2195 = vadd.f32 %v1524, %v2194
  %v2196 = vpop.f32.mrb[0].mxu0
  %v2197 = vadd.f32 %v1520, %v2196
  %v2198 = vpop.f32.mrb[0].mxu0
  %v2199 = vadd.f32 %v1524, %v2198
  %2200 = vmatprep.mubr.bf16.mxu0 %v1364
  %2201 = vmatmul.mubr.bf16.gmra.mrb[0].mxu0 %v1363
  %v2202 = vpop.f32.mrb[0].mxu0
  %v2203 = vadd.f32 %v1520, %v2202
  %v2204 = vpop.f32.mrb[0].mxu0
  %v2205 = vadd.f32 %v1524, %v2204
  %v2206 = vpop.f32.mrb[0].mxu0
  %v2207 = vadd.f32 %v1520, %v2206
  %v2208 = vpop.f32.mrb[0].mxu0
  %v2209 = vadd.f32 %v1524, %v2208
  %2210 = vmatprep.mubr.bf16.mxu0 %v1366
  %2211 = vmatmul.mubr.bf16.gmra.mrb[0].mxu0 %v1365
  %v2212 = vpop.f32.mrb[0].mxu0
  %v2213 = vadd.f32 %v1520, %v2212
  %v2214 = vpop.f32.mrb[0].mxu0
  %v2215 = vadd.f32 %v1524, %v2214
  %v2216 = vpop.f32.mrb[0].mxu0
  %v2217 = vadd.f32 %v1520, %v2216
  %v2218 = vpop.f32.mrb[0].mxu0
  %v2219 = vadd.f32 %v1524, %v2218
  %2220 = vmatprep.mubr.bf16.mxu0 %v1368
  %2221 = vmatmul.mubr.bf16.gmra.mrb[0].mxu0 %v1367
  %v2222 = vpop.f32.mrb[0].mxu0
  %v2223 = vadd.f32 %v1520, %v2222
  %v2224 = vpop.f32.mrb[0].mxu0
  %v2225 = vadd.f32 %v1524, %v2224
  %v2226 = vpop.f32.mrb[0].mxu0
  %v2227 = vadd.f32 %v1520, %v2226
  %v2228 = vpop.f32.mrb[0].mxu0
  %v2229 = vadd.f32 %v1524, %v2228
  %2230 = vmatprep.mubr.bf16.mxu0 %v1370
  %2231 = vmatmul.mubr.bf16.gmra.mrb[0].mxu0 %v1369
  %v2232 = vpop.f32.mrb[0].mxu0
  %v2233 = vadd.f32 %v1520, %v2232
  %v2234 = vpop.f32.mrb[0].mxu0
  %v2235 = vadd.f32 %v1524, %v2234
  %v2236 = vpop.f32.mrb[0].mxu0
  %v2237 = vadd.f32 %v1520, %v2236
  %v2238 = vpop.f32.mrb[0].mxu0
  %v2239 = vadd.f32 %v1524, %v2238
  %2240 = vmatprep.mubr.bf16.mxu0 %v1372
  %2241 = vmatmul.mubr.bf16.gmra.mrb[0].mxu0 %v1371
  %v2242 = vpop.f32.mrb[0].mxu0
  %v2243 = vadd.f32 %v1520, %v2242
  %v2244 = vpop.f32.mrb[0].mxu0
  %v2245 = vadd.f32 %v1524, %v2244
  %v2246 = vpop.f32.mrb[0].mxu0
  %v2247 = vadd.f32 %v1520, %v2246
  %v2248 = vpop.f32.mrb[0].mxu0
  %v2249 = vadd.f32 %v1524, %v2248
  %2250 = vmatprep.mubr.bf16.mxu0 %v1374
  %2251 = vmatmul.mubr.bf16.gmra.mrb[0].mxu0 %v1373
  %v2252 = vpop.f32.mrb[0].mxu0
  %v2253 = vadd.f32 %v1520, %v2252
  %v2254 = vpop.f32.mrb[0].mxu0
  %v2255 = vadd.f32 %v1524, %v2254
  %v2256 = vpop.f32.mrb[0].mxu0
  %v2257 = vadd.f32 %v1520, %v2256
  %v2258 = vpop.f32.mrb[0].mxu0
  %v2259 = vadd.f32 %v1524, %v2258
  %2260 = vmatprep.mubr.bf16.mxu0 %v1376
  %2261 = vmatmul.mubr.bf16.gmra.mrb[0].mxu0 %v1375
  %v2262 = vpop.f32.mrb[0].mxu0
  %v2263 = vadd.f32 %v1520, %v2262
  %v2264 = vpop.f32.mrb[0].mxu0
  %v2265 = vadd.f32 %v1524, %v2264
  %v2266 = vpop.f32.mrb[0].mxu0
  %v2267 = vadd.f32 %v1520, %v2266
  %v2268 = vpop.f32.mrb[0].mxu0
  %v2269 = vadd.f32 %v1524, %v2268
  %2270 = vmatprep.mubr.bf16.mxu0 %v1378
  %2271 = vmatmul.mubr.bf16.gmra.mrb[0].mxu0 %v1377
  %v2272 = vpop.f32.mrb[0].mxu0
  %v2273 = vadd.f32 %v1520, %v2272
  %v2274 = vpop.f32.mrb[0].mxu0
  %v2275 = vadd.f32 %v1524, %v2274
  %v2276 = vpop.f32.mrb[0].mxu0
  %v2277 = vadd.f32 %v1520, %v2276
  %v2278 = vpop.f32.mrb[0].mxu0
  %v2279 = vadd.f32 %v1524, %v2278
  %2280 = vmatprep.mubr.bf16.mxu0 %v1380
  %2281 = vmatmul.mubr.bf16.gmra.mrb[0].mxu0 %v1379
  %v2282 = vpop.f32.mrb[0].mxu0
  %v2283 = vadd.f32 %v1520, %v2282
  %v2284 = vpop.f32.mrb[0].mxu0
  %v2285 = vadd.f32 %v1524, %v2284
  %v2286 = vpop.f32.mrb[0].mxu0
  %v2287 = vadd.f32 %v1520, %v2286
  %v2288 = vpop.f32.mrb[0].mxu0
  %v2289 = vadd.f32 %v1524, %v2288
  %2290 = vmatprep.mubr.bf16.mxu0 %v1382
  %2291 = vmatmul.mubr.bf16.gmra.mrb[0].mxu0 %v1381
  %v2292 = vpop.f32.mrb[0].mxu0
  %v2293 = vadd.f32 %v1520, %v2292
  %v2294 = vpop.f32.mrb[0].mxu0
  %v2295 = vadd.f32 %v1524, %v2294
  %v2296 = vpop.f32.mrb[0].mxu0
  %v2297 = vadd.f32 %v1520, %v2296
  %v2298 = vpop.f32.mrb[0].mxu0
  %v2299 = vadd.f32 %v1524, %v2298
  %2300 = vmatprep.mubr.bf16.mxu0 %v1384
  %2301 = vmatmul.mubr.bf16.gmra.mrb[0].mxu0 %v1383
  %v2302 = vpop.f32.mrb[0].mxu0
  %v2303 = vadd.f32 %v1520, %v2302
  %v2304 = vpop.f32.mrb[0].mxu0
  %v2305 = vadd.f32 %v1524, %v2304
  %v2306 = vpop.f32.mrb[0].mxu0
  %v2307 = vadd.f32 %v1520, %v2306
  %v2308 = vpop.f32.mrb[0].mxu0
  %v2309 = vadd.f32 %v1524, %v2308
  %2310 = vmatprep.mubr.bf16.mxu0 %v1386
  %2311 = vmatmul.mubr.bf16.gmra.mrb[0].mxu0 %v1385
  %v2312 = vpop.f32.mrb[0].mxu0
  %v2313 = vadd.f32 %v1520, %v2312
  %v2314 = vpop.f32.mrb[0].mxu0
  %v2315 = vadd.f32 %v1524, %v2314
  %v2316 = vpop.f32.mrb[0].mxu0
  %v2317 = vadd.f32 %v1520, %v2316
  %v2318 = vpop.f32.mrb[0].mxu0
  %v2319 = vadd.f32 %v1524, %v2318
  %2320 = vdwg.mxu0
  %2321 = vmatprep.subr.bf16.mxu0 %v1907
  %2322 = vmatpush1.bf16.msra.mxu0 %v1906
  %2323 = vmatprep.subr.bf16.mxu0 %v1914
  %2324 = vmatpush1.bf16.msra.mxu0 %v1913
  %2325 = vmatprep.subr.bf16.mxu0 %v1921
  %2326 = vmatpush1.bf16.msra.mxu0 %v1920
  %2327 = vmatprep.subr.bf16.mxu0 %v1928
  %2328 = vmatpush1.bf16.msra.mxu0 %v1927
  %2329 = vmatprep.subr.bf16.mxu0 %v1935
  %2330 = vmatpush1.bf16.msra.mxu0 %v1934
  %2331 = vmatprep.subr.bf16.mxu0 %v1942
  %2332 = vmatpush1.bf16.msra.mxu0 %v1941
  %2333 = vmatprep.subr.bf16.mxu0 %v1949
  %2334 = vmatpush1.bf16.msra.mxu0 %v1948
  %2335 = vmatprep.subr.bf16.mxu0 %v1956
  %2336 = vmatpush1.bf16.msra.mxu0 %v1955
  %2337 = vmatprep.subr.bf16.mxu0 %v1963
  %2338 = vmatpush1.bf16.msra.mxu0 %v1962
  %2339 = vmatprep.subr.bf16.mxu0 %v1970
  %2340 = vmatpush1.bf16.msra.mxu0 %v1969
  %2341 = vmatprep.subr.bf16.mxu0 %v1977
  %2342 = vmatpush1.bf16.msra.mxu0 %v1976
  %2343 = vmatprep.subr.bf16.mxu0 %v1984
  %2344 = vmatpush1.bf16.msra.mxu0 %v1983
  %2345 = vmatprep.subr.bf16.mxu0 %v1991
  %2346 = vmatpush1.bf16.msra.mxu0 %v1990
  %2347 = vmatprep.subr.bf16.mxu0 %v1998
  %2348 = vmatpush1.bf16.msra.mxu0 %v1997
  %2349 = vmatprep.subr.bf16.mxu0 %v2005
  %2350 = vmatpush1.bf16.msra.mxu0 %v2004
  %2351 = vmatprep.subr.bf16.mxu0 %v2012
  %2352 = vmatpush1.bf16.msra.mxu0 %v2011
  %2353 = vmatprep.mubr.bf16.mxu0 %v1356
  %2354 = vmatmul.mubr.bf16.gmra.mrb[0].mxu0 %v1355
  %v2355 = vpop.f32.mrb[0].mxu0
  %v2356 = vadd.f32 %v1528, %v2355
  %v2357 = vpop.f32.mrb[0].mxu0
  %v2358 = vadd.f32 %v1532, %v2357
  %v2359 = vpop.f32.mrb[0].mxu0
  %v2360 = vadd.f32 %v1528, %v2359
  %v2361 = vpop.f32.mrb[0].mxu0
  %v2362 = vadd.f32 %v1532, %v2361
  %2363 = vmatprep.mubr.bf16.mxu0 %v1358
  %2364 = vmatmul.mubr.bf16.gmra.mrb[0].mxu0 %v1357
  %v2365 = vpop.f32.mrb[0].mxu0
  %v2366 = vadd.f32 %v1528, %v2365
  %v2367 = vpop.f32.mrb[0].mxu0
  %v2368 = vadd.f32 %v1532, %v2367
  %v2369 = vpop.f32.mrb[0].mxu0
  %v2370 = vadd.f32 %v1528, %v2369
  %v2371 = vpop.f32.mrb[0].mxu0
  %v2372 = vadd.f32 %v1532, %v2371
  %2373 = vmatprep.mubr.bf16.mxu0 %v1360
  %2374 = vmatmul.mubr.bf16.gmra.mrb[0].mxu0 %v1359
  %v2375 = vpop.f32.mrb[0].mxu0
  %v2376 = vadd.f32 %v1528, %v2375
  %v2377 = vpop.f32.mrb[0].mxu0
  %v2378 = vadd.f32 %v1532, %v2377
  %v2379 = vpop.f32.mrb[0].mxu0
  %v2380 = vadd.f32 %v1528, %v2379
  %v2381 = vpop.f32.mrb[0].mxu0
  %v2382 = vadd.f32 %v1532, %v2381
  %2383 = vmatprep.mubr.bf16.mxu0 %v1362
  %2384 = vmatmul.mubr.bf16.gmra.mrb[0].mxu0 %v1361
  %v2385 = vpop.f32.mrb[0].mxu0
  %v2386 = vadd.f32 %v1528, %v2385
  %v2387 = vpop.f32.mrb[0].mxu0
  %v2388 = vadd.f32 %v1532, %v2387
  %v2389 = vpop.f32.mrb[0].mxu0
  %v2390 = vadd.f32 %v1528, %v2389
  %v2391 = vpop.f32.mrb[0].mxu0
  %v2392 = vadd.f32 %v1532, %v2391
  %2393 = vmatprep.mubr.bf16.mxu0 %v1364
  %2394 = vmatmul.mubr.bf16.gmra.mrb[0].mxu0 %v1363
  %v2395 = vpop.f32.mrb[0].mxu0
  %v2396 = vadd.f32 %v1528, %v2395
  %v2397 = vpop.f32.mrb[0].mxu0
  %v2398 = vadd.f32 %v1532, %v2397
  %v2399 = vpop.f32.mrb[0].mxu0
  %v2400 = vadd.f32 %v1528, %v2399
  %v2401 = vpop.f32.mrb[0].mxu0
  %v2402 = vadd.f32 %v1532, %v2401
  %2403 = vmatprep.mubr.bf16.mxu0 %v1366
  %2404 = vmatmul.mubr.bf16.gmra.mrb[0].mxu0 %v1365
  %v2405 = vpop.f32.mrb[0].mxu0
  %v2406 = vadd.f32 %v1528, %v2405
  %v2407 = vpop.f32.mrb[0].mxu0
  %v2408 = vadd.f32 %v1532, %v2407
  %v2409 = vpop.f32.mrb[0].mxu0
  %v2410 = vadd.f32 %v1528, %v2409
  %v2411 = vpop.f32.mrb[0].mxu0
  %v2412 = vadd.f32 %v1532, %v2411
  %2413 = vmatprep.mubr.bf16.mxu0 %v1368
  %2414 = vmatmul.mubr.bf16.gmra.mrb[0].mxu0 %v1367
  %v2415 = vpop.f32.mrb[0].mxu0
  %v2416 = vadd.f32 %v1528, %v2415
  %v2417 = vpop.f32.mrb[0].mxu0
  %v2418 = vadd.f32 %v1532, %v2417
  %v2419 = vpop.f32.mrb[0].mxu0
  %v2420 = vadd.f32 %v1528, %v2419
  %v2421 = vpop.f32.mrb[0].mxu0
  %v2422 = vadd.f32 %v1532, %v2421
  %2423 = vmatprep.mubr.bf16.mxu0 %v1370
  %2424 = vmatmul.mubr.bf16.gmra.mrb[0].mxu0 %v1369
  %v2425 = vpop.f32.mrb[0].mxu0
  %v2426 = vadd.f32 %v1528, %v2425
  %v2427 = vpop.f32.mrb[0].mxu0
  %v2428 = vadd.f32 %v1532, %v2427
  %v2429 = vpop.f32.mrb[0].mxu0
  %v2430 = vadd.f32 %v1528, %v2429
  %v2431 = vpop.f32.mrb[0].mxu0
  %v2432 = vadd.f32 %v1532, %v2431
  %2433 = vmatprep.mubr.bf16.mxu0 %v1372
  %2434 = vmatmul.mubr.bf16.gmra.mrb[0].mxu0 %v1371
  %v2435 = vpop.f32.mrb[0].mxu0
  %v2436 = vadd.f32 %v1528, %v2435
  %v2437 = vpop.f32.mrb[0].mxu0
  %v2438 = vadd.f32 %v1532, %v2437
  %v2439 = vpop.f32.mrb[0].mxu0
  %v2440 = vadd.f32 %v1528, %v2439
  %v2441 = vpop.f32.mrb[0].mxu0
  %v2442 = vadd.f32 %v1532, %v2441
  %2443 = vmatprep.mubr.bf16.mxu0 %v1374
  %2444 = vmatmul.mubr.bf16.gmra.mrb[0].mxu0 %v1373
  %v2445 = vpop.f32.mrb[0].mxu0
  %v2446 = vadd.f32 %v1528, %v2445
  %v2447 = vpop.f32.mrb[0].mxu0
  %v2448 = vadd.f32 %v1532, %v2447
  %v2449 = vpop.f32.mrb[0].mxu0
  %v2450 = vadd.f32 %v1528, %v2449
  %v2451 = vpop.f32.mrb[0].mxu0
  %v2452 = vadd.f32 %v1532, %v2451
  %2453 = vmatprep.mubr.bf16.mxu0 %v1376
  %2454 = vmatmul.mubr.bf16.gmra.mrb[0].mxu0 %v1375
  %v2455 = vpop.f32.mrb[0].mxu0
  %v2456 = vadd.f32 %v1528, %v2455
  %v2457 = vpop.f32.mrb[0].mxu0
  %v2458 = vadd.f32 %v1532, %v2457
  %v2459 = vpop.f32.mrb[0].mxu0
  %v2460 = vadd.f32 %v1528, %v2459
  %v2461 = vpop.f32.mrb[0].mxu0
  %v2462 = vadd.f32 %v1532, %v2461
  %2463 = vmatprep.mubr.bf16.mxu0 %v1378
  %2464 = vmatmul.mubr.bf16.gmra.mrb[0].mxu0 %v1377
  %v2465 = vpop.f32.mrb[0].mxu0
  %v2466 = vadd.f32 %v1528, %v2465
  %v2467 = vpop.f32.mrb[0].mxu0
  %v2468 = vadd.f32 %v1532, %v2467
  %v2469 = vpop.f32.mrb[0].mxu0
  %v2470 = vadd.f32 %v1528, %v2469
  %v2471 = vpop.f32.mrb[0].mxu0
  %v2472 = vadd.f32 %v1532, %v2471
  %2473 = vmatprep.mubr.bf16.mxu0 %v1380
  %2474 = vmatmul.mubr.bf16.gmra.mrb[0].mxu0 %v1379
  %v2475 = vpop.f32.mrb[0].mxu0
  %v2476 = vadd.f32 %v1528, %v2475
  %v2477 = vpop.f32.mrb[0].mxu0
  %v2478 = vadd.f32 %v1532, %v2477
  %v2479 = vpop.f32.mrb[0].mxu0
  %v2480 = vadd.f32 %v1528, %v2479
  %v2481 = vpop.f32.mrb[0].mxu0
  %v2482 = vadd.f32 %v1532, %v2481
  %2483 = vmatprep.mubr.bf16.mxu0 %v1382
  %2484 = vmatmul.mubr.bf16.gmra.mrb[0].mxu0 %v1381
  %v2485 = vpop.f32.mrb[0].mxu0
  %v2486 = vadd.f32 %v1528, %v2485
  %v2487 = vpop.f32.mrb[0].mxu0
  %v2488 = vadd.f32 %v1532, %v2487
  %v2489 = vpop.f32.mrb[0].mxu0
  %v2490 = vadd.f32 %v1528, %v2489
  %v2491 = vpop.f32.mrb[0].mxu0
  %v2492 = vadd.f32 %v1532, %v2491
  %2493 = vmatprep.mubr.bf16.mxu0 %v1384
  %2494 = vmatmul.mubr.bf16.gmra.mrb[0].mxu0 %v1383
  %v2495 = vpop.f32.mrb[0].mxu0
  %v2496 = vadd.f32 %v1528, %v2495
  %v2497 = vpop.f32.mrb[0].mxu0
  %v2498 = vadd.f32 %v1532, %v2497
  %v2499 = vpop.f32.mrb[0].mxu0
  %v2500 = vadd.f32 %v1528, %v2499
  %v2501 = vpop.f32.mrb[0].mxu0
  %v2502 = vadd.f32 %v1532, %v2501
  %2503 = vmatprep.mubr.bf16.mxu0 %v1386
  %2504 = vmatmul.mubr.bf16.gmra.mrb[0].mxu0 %v1385
  %v2505 = vpop.f32.mrb[0].mxu0
  %v2506 = vadd.f32 %v1528, %v2505
  %v2507 = vpop.f32.mrb[0].mxu0
  %v2508 = vadd.f32 %v1532, %v2507
  %v2509 = vpop.f32.mrb[0].mxu0
  %v2510 = vadd.f32 %v1528, %v2509
  %v2511 = vpop.f32.mrb[0].mxu0
  %v2512 = vadd.f32 %v1532, %v2511
  %2513 = vdwg.mxu0
  %2514 = vmatprep.subr.bf16.mxu0 %v1909
  %2515 = vmatpush1.bf16.msra.mxu0 %v1908
  %2516 = vmatprep.subr.bf16.mxu0 %v1916
  %2517 = vmatpush1.bf16.msra.mxu0 %v1915
  %2518 = vmatprep.subr.bf16.mxu0 %v1923
  %2519 = vmatpush1.bf16.msra.mxu0 %v1922
  %2520 = vmatprep.subr.bf16.mxu0 %v1930
  %2521 = vmatpush1.bf16.msra.mxu0 %v1929
  %2522 = vmatprep.subr.bf16.mxu0 %v1937
  %2523 = vmatpush1.bf16.msra.mxu0 %v1936
  %2524 = vmatprep.subr.bf16.mxu0 %v1944
  %2525 = vmatpush1.bf16.msra.mxu0 %v1943
  %2526 = vmatprep.subr.bf16.mxu0 %v1951
  %2527 = vmatpush1.bf16.msra.mxu0 %v1950
  %2528 = vmatprep.subr.bf16.mxu0 %v1958
  %2529 = vmatpush1.bf16.msra.mxu0 %v1957
  %2530 = vmatprep.subr.bf16.mxu0 %v1965
  %2531 = vmatpush1.bf16.msra.mxu0 %v1964
  %2532 = vmatprep.subr.bf16.mxu0 %v1972
  %2533 = vmatpush1.bf16.msra.mxu0 %v1971
  %2534 = vmatprep.subr.bf16.mxu0 %v1979
  %2535 = vmatpush1.bf16.msra.mxu0 %v1978
  %2536 = vmatprep.subr.bf16.mxu0 %v1986
  %2537 = vmatpush1.bf16.msra.mxu0 %v1985
  %2538 = vmatprep.subr.bf16.mxu0 %v1993
  %2539 = vmatpush1.bf16.msra.mxu0 %v1992
  %2540 = vmatprep.subr.bf16.mxu0 %v2000
  %2541 = vmatpush1.bf16.msra.mxu0 %v1999
  %2542 = vmatprep.subr.bf16.mxu0 %v2007
  %2543 = vmatpush1.bf16.msra.mxu0 %v2006
  %2544 = vmatprep.subr.bf16.mxu0 %v2014
  %2545 = vmatpush1.bf16.msra.mxu0 %v2013
  %2546 = vmatprep.mubr.bf16.mxu0 %v1356
  %2547 = vmatmul.mubr.bf16.gmra.mrb[0].mxu0 %v1355
  %v2548 = vpop.f32.mrb[0].mxu0
  %v2549 = vadd.f32 %v1536, %v2548
  %v2550 = vpop.f32.mrb[0].mxu0
  %v2551 = vadd.f32 %v1540, %v2550
  %v2552 = vpop.f32.mrb[0].mxu0
  %v2553 = vadd.f32 %v1536, %v2552
  %v2554 = vpop.f32.mrb[0].mxu0
  %v2555 = vadd.f32 %v1540, %v2554
  %2556 = vmatprep.mubr.bf16.mxu0 %v1358
  %2557 = vmatmul.mubr.bf16.gmra.mrb[0].mxu0 %v1357
  %v2558 = vpop.f32.mrb[0].mxu0
  %v2559 = vadd.f32 %v1536, %v2558
  %v2560 = vpop.f32.mrb[0].mxu0
  %v2561 = vadd.f32 %v1540, %v2560
  %v2562 = vpop.f32.mrb[0].mxu0
  %v2563 = vadd.f32 %v1536, %v2562
  %v2564 = vpop.f32.mrb[0].mxu0
  %v2565 = vadd.f32 %v1540, %v2564
  %2566 = vmatprep.mubr.bf16.mxu0 %v1360
  %2567 = vmatmul.mubr.bf16.gmra.mrb[0].mxu0 %v1359
  %v2568 = vpop.f32.mrb[0].mxu0
  %v2569 = vadd.f32 %v1536, %v2568
  %v2570 = vpop.f32.mrb[0].mxu0
  %v2571 = vadd.f32 %v1540, %v2570
  %v2572 = vpop.f32.mrb[0].mxu0
  %v2573 = vadd.f32 %v1536, %v2572
  %v2574 = vpop.f32.mrb[0].mxu0
  %v2575 = vadd.f32 %v1540, %v2574
  %2576 = vmatprep.mubr.bf16.mxu0 %v1362
  %2577 = vmatmul.mubr.bf16.gmra.mrb[0].mxu0 %v1361
  %v2578 = vpop.f32.mrb[0].mxu0
  %v2579 = vadd.f32 %v1536, %v2578
  %v2580 = vpop.f32.mrb[0].mxu0
  %v2581 = vadd.f32 %v1540, %v2580
  %v2582 = vpop.f32.mrb[0].mxu0
  %v2583 = vadd.f32 %v1536, %v2582
  %v2584 = vpop.f32.mrb[0].mxu0
  %v2585 = vadd.f32 %v1540, %v2584
  %2586 = vmatprep.mubr.bf16.mxu0 %v1364
  %2587 = vmatmul.mubr.bf16.gmra.mrb[0].mxu0 %v1363
  %v2588 = vpop.f32.mrb[0].mxu0
  %v2589 = vadd.f32 %v1536, %v2588
  %v2590 = vpop.f32.mrb[0].mxu0
  %v2591 = vadd.f32 %v1540, %v2590
  %v2592 = vpop.f32.mrb[0].mxu0
  %v2593 = vadd.f32 %v1536, %v2592
  %v2594 = vpop.f32.mrb[0].mxu0
  %v2595 = vadd.f32 %v1540, %v2594
  %2596 = vmatprep.mubr.bf16.mxu0 %v1366
  %2597 = vmatmul.mubr.bf16.gmra.mrb[0].mxu0 %v1365
  %v2598 = vpop.f32.mrb[0].mxu0
  %v2599 = vadd.f32 %v1536, %v2598
  %v2600 = vpop.f32.mrb[0].mxu0
  %v2601 = vadd.f32 %v1540, %v2600
  %v2602 = vpop.f32.mrb[0].mxu0
  %v2603 = vadd.f32 %v1536, %v2602
  %v2604 = vpop.f32.mrb[0].mxu0
  %v2605 = vadd.f32 %v1540, %v2604
  %2606 = vmatprep.mubr.bf16.mxu0 %v1368
  %2607 = vmatmul.mubr.bf16.gmra.mrb[0].mxu0 %v1367
  %v2608 = vpop.f32.mrb[0].mxu0
  %v2609 = vadd.f32 %v1536, %v2608
  %v2610 = vpop.f32.mrb[0].mxu0
  %v2611 = vadd.f32 %v1540, %v2610
  %v2612 = vpop.f32.mrb[0].mxu0
  %v2613 = vadd.f32 %v1536, %v2612
  %v2614 = vpop.f32.mrb[0].mxu0
  %v2615 = vadd.f32 %v1540, %v2614
  %2616 = vmatprep.mubr.bf16.mxu0 %v1370
  %2617 = vmatmul.mubr.bf16.gmra.mrb[0].mxu0 %v1369
  %v2618 = vpop.f32.mrb[0].mxu0
  %v2619 = vadd.f32 %v1536, %v2618
  %v2620 = vpop.f32.mrb[0].mxu0
  %v2621 = vadd.f32 %v1540, %v2620
  %v2622 = vpop.f32.mrb[0].mxu0
  %v2623 = vadd.f32 %v1536, %v2622
  %v2624 = vpop.f32.mrb[0].mxu0
  %v2625 = vadd.f32 %v1540, %v2624
  %2626 = vmatprep.mubr.bf16.mxu0 %v1372
  %2627 = vmatmul.mubr.bf16.gmra.mrb[0].mxu0 %v1371
  %v2628 = vpop.f32.mrb[0].mxu0
  %v2629 = vadd.f32 %v1536, %v2628
  %v2630 = vpop.f32.mrb[0].mxu0
  %v2631 = vadd.f32 %v1540, %v2630
  %v2632 = vpop.f32.mrb[0].mxu0
  %v2633 = vadd.f32 %v1536, %v2632
  %v2634 = vpop.f32.mrb[0].mxu0
  %v2635 = vadd.f32 %v1540, %v2634
  %2636 = vmatprep.mubr.bf16.mxu0 %v1374
  %2637 = vmatmul.mubr.bf16.gmra.mrb[0].mxu0 %v1373
  %v2638 = vpop.f32.mrb[0].mxu0
  %v2639 = vadd.f32 %v1536, %v2638
  %v2640 = vpop.f32.mrb[0].mxu0
  %v2641 = vadd.f32 %v1540, %v2640
  %v2642 = vpop.f32.mrb[0].mxu0
  %v2643 = vadd.f32 %v1536, %v2642
  %v2644 = vpop.f32.mrb[0].mxu0
  %v2645 = vadd.f32 %v1540, %v2644
  %2646 = vmatprep.mubr.bf16.mxu0 %v1376
  %2647 = vmatmul.mubr.bf16.gmra.mrb[0].mxu0 %v1375
  %v2648 = vpop.f32.mrb[0].mxu0
  %v2649 = vadd.f32 %v1536, %v2648
  %v2650 = vpop.f32.mrb[0].mxu0
  %v2651 = vadd.f32 %v1540, %v2650
  %v2652 = vpop.f32.mrb[0].mxu0
  %v2653 = vadd.f32 %v1536, %v2652
  %v2654 = vpop.f32.mrb[0].mxu0
  %v2655 = vadd.f32 %v1540, %v2654
  %2656 = vmatprep.mubr.bf16.mxu0 %v1378
  %2657 = vmatmul.mubr.bf16.gmra.mrb[0].mxu0 %v1377
  %v2658 = vpop.f32.mrb[0].mxu0
  %v2659 = vadd.f32 %v1536, %v2658
  %v2660 = vpop.f32.mrb[0].mxu0
  %v2661 = vadd.f32 %v1540, %v2660
  %v2662 = vpop.f32.mrb[0].mxu0
  %v2663 = vadd.f32 %v1536, %v2662
  %v2664 = vpop.f32.mrb[0].mxu0
  %v2665 = vadd.f32 %v1540, %v2664
  %2666 = vmatprep.mubr.bf16.mxu0 %v1380
  %2667 = vmatmul.mubr.bf16.gmra.mrb[0].mxu0 %v1379
  %v2668 = vpop.f32.mrb[0].mxu0
  %v2669 = vadd.f32 %v1536, %v2668
  %v2670 = vpop.f32.mrb[0].mxu0
  %v2671 = vadd.f32 %v1540, %v2670
  %v2672 = vpop.f32.mrb[0].mxu0
  %v2673 = vadd.f32 %v1536, %v2672
  %v2674 = vpop.f32.mrb[0].mxu0
  %v2675 = vadd.f32 %v1540, %v2674
  %2676 = vmatprep.mubr.bf16.mxu0 %v1382
  %2677 = vmatmul.mubr.bf16.gmra.mrb[0].mxu0 %v1381
  %v2678 = vpop.f32.mrb[0].mxu0
  %v2679 = vadd.f32 %v1536, %v2678
  %v2680 = vpop.f32.mrb[0].mxu0
  %v2681 = vadd.f32 %v1540, %v2680
  %v2682 = vpop.f32.mrb[0].mxu0
  %v2683 = vadd.f32 %v1536, %v2682
  %v2684 = vpop.f32.mrb[0].mxu0
  %v2685 = vadd.f32 %v1540, %v2684
  %2686 = vmatprep.mubr.bf16.mxu0 %v1384
  %2687 = vmatmul.mubr.bf16.gmra.mrb[0].mxu0 %v1383
  %v2688 = vpop.f32.mrb[0].mxu0
  %v2689 = vadd.f32 %v1536, %v2688
  %v2690 = vpop.f32.mrb[0].mxu0
  %v2691 = vadd.f32 %v1540, %v2690
  %v2692 = vpop.f32.mrb[0].mxu0
  %v2693 = vadd.f32 %v1536, %v2692
  %v2694 = vpop.f32.mrb[0].mxu0
  %v2695 = vadd.f32 %v1540, %v2694
  %2696 = vmatprep.mubr.bf16.mxu0 %v1386
  %2697 = vmatmul.mubr.bf16.gmra.mrb[0].mxu0 %v1385
  %v2698 = vpop.f32.mrb[0].mxu0
  %v2699 = vadd.f32 %v1536, %v2698
  %v2700 = vpop.f32.mrb[0].mxu0
  %v2701 = vadd.f32 %v1540, %v2700
  %v2702 = vpop.f32.mrb[0].mxu0
  %v2703 = vadd.f32 %v1536, %v2702
  %v2704 = vpop.f32.mrb[0].mxu0
  %v2705 = vadd.f32 %v1540, %v2704
  %2706 = vdwg.mxu0
  %2707 = vmatprep.subr.bf16.mxu0 0
  %2708 = vmatpush1.bf16.msra.mxu0 %v1910
  %2709 = vmatprep.subr.bf16.mxu0 0
  %2710 = vmatpush1.bf16.msra.mxu0 %v1917
  %2711 = vmatprep.subr.bf16.mxu0 0
  %2712 = vmatpush1.bf16.msra.mxu0 %v1924
  %2713 = vmatprep.subr.bf16.mxu0 0
  %2714 = vmatpush1.bf16.msra.mxu0 %v1931
  %2715 = vmatprep.subr.bf16.mxu0 0
  %2716 = vmatpush1.bf16.msra.mxu0 %v1938
  %2717 = vmatprep.subr.bf16.mxu0 0
  %2718 = vmatpush1.bf16.msra.mxu0 %v1945
  %2719 = vmatprep.subr.bf16.mxu0 0
  %2720 = vmatpush1.bf16.msra.mxu0 %v1952
  %2721 = vmatprep.subr.bf16.mxu0 0
  %2722 = vmatpush1.bf16.msra.mxu0 %v1959
  %2723 = vmatprep.subr.bf16.mxu0 0
  %2724 = vmatpush1.bf16.msra.mxu0 %v1966
  %2725 = vmatprep.subr.bf16.mxu0 0
  %2726 = vmatpush1.bf16.msra.mxu0 %v1973
  %2727 = vmatprep.subr.bf16.mxu0 0
  %2728 = vmatpush1.bf16.msra.mxu0 %v1980
  %2729 = vmatprep.subr.bf16.mxu0 0
  %2730 = vmatpush1.bf16.msra.mxu0 %v1987
  %2731 = vmatprep.subr.bf16.mxu0 0
  %2732 = vmatpush1.bf16.msra.mxu0 %v1994
  %2733 = vmatprep.subr.bf16.mxu0 0
  %2734 = vmatpush1.bf16.msra.mxu0 %v2001
  %2735 = vmatprep.subr.bf16.mxu0 0
  %2736 = vmatpush1.bf16.msra.mxu0 %v2008
  %2737 = vmatprep.subr.bf16.mxu0 0
  %2738 = vmatpush1.bf16.msra.mxu0 %v2015
  %2739 = vmatprep.mubr.bf16.mxu0 %v1356
  %2740 = vmatmul.mubr.bf16.gmra.mrb[0].mxu0 %v1355
  %v2741 = vpop.f32.mrb[0].mxu0
  %v2742 = vadd.f32 %v1544, %v2741
  %v2743 = vpop.f32.mrb[0].mxu0
  %v2744 = vpop.f32.mrb[0].mxu0
  %v2745 = vadd.f32 %v1544, %v2744
  %v2746 = vpop.f32.mrb[0].mxu0
  %2747 = vmatprep.mubr.bf16.mxu0 %v1358
  %2748 = vmatmul.mubr.bf16.gmra.mrb[0].mxu0 %v1357
  %v2749 = vpop.f32.mrb[0].mxu0
  %v2750 = vadd.f32 %v1544, %v2749
  %v2751 = vpop.f32.mrb[0].mxu0
  %v2752 = vpop.f32.mrb[0].mxu0
  %v2753 = vadd.f32 %v1544, %v2752
  %v2754 = vpop.f32.mrb[0].mxu0
  %2755 = vmatprep.mubr.bf16.mxu0 %v1360
  %2756 = vmatmul.mubr.bf16.gmra.mrb[0].mxu0 %v1359
  %v2757 = vpop.f32.mrb[0].mxu0
  %v2758 = vadd.f32 %v1544, %v2757
  %v2759 = vpop.f32.mrb[0].mxu0
  %v2760 = vpop.f32.mrb[0].mxu0
  %v2761 = vadd.f32 %v1544, %v2760
  %v2762 = vpop.f32.mrb[0].mxu0
  %2763 = vmatprep.mubr.bf16.mxu0 %v1362
  %2764 = vmatmul.mubr.bf16.gmra.mrb[0].mxu0 %v1361
  %v2765 = vpop.f32.mrb[0].mxu0
  %v2766 = vadd.f32 %v1544, %v2765
  %v2767 = vpop.f32.mrb[0].mxu0
  %v2768 = vpop.f32.mrb[0].mxu0
  %v2769 = vadd.f32 %v1544, %v2768
  %v2770 = vpop.f32.mrb[0].mxu0
  %2771 = vmatprep.mubr.bf16.mxu0 %v1364
  %2772 = vmatmul.mubr.bf16.gmra.mrb[0].mxu0 %v1363
  %v2773 = vpop.f32.mrb[0].mxu0
  %v2774 = vadd.f32 %v1544, %v2773
  %v2775 = vpop.f32.mrb[0].mxu0
  %v2776 = vpop.f32.mrb[0].mxu0
  %v2777 = vadd.f32 %v1544, %v2776
  %v2778 = vpop.f32.mrb[0].mxu0
  %2779 = vmatprep.mubr.bf16.mxu0 %v1366
  %2780 = vmatmul.mubr.bf16.gmra.mrb[0].mxu0 %v1365
  %v2781 = vpop.f32.mrb[0].mxu0
  %v2782 = vadd.f32 %v1544, %v2781
  %v2783 = vpop.f32.mrb[0].mxu0
  %v2784 = vpop.f32.mrb[0].mxu0
  %v2785 = vadd.f32 %v1544, %v2784
  %v2786 = vpop.f32.mrb[0].mxu0
  %2787 = vmatprep.mubr.bf16.mxu0 %v1368
  %2788 = vmatmul.mubr.bf16.gmra.mrb[0].mxu0 %v1367
  %v2789 = vpop.f32.mrb[0].mxu0
  %v2790 = vadd.f32 %v1544, %v2789
  %v2791 = vpop.f32.mrb[0].mxu0
  %v2792 = vpop.f32.mrb[0].mxu0
  %v2793 = vadd.f32 %v1544, %v2792
  %v2794 = vpop.f32.mrb[0].mxu0
  %2795 = vmatprep.mubr.bf16.mxu0 %v1370
  %2796 = vmatmul.mubr.bf16.gmra.mrb[0].mxu0 %v1369
  %v2797 = vpop.f32.mrb[0].mxu0
  %v2798 = vadd.f32 %v1544, %v2797
  %v2799 = vpop.f32.mrb[0].mxu0
  %v2800 = vpop.f32.mrb[0].mxu0
  %v2801 = vadd.f32 %v1544, %v2800
  %v2802 = vpop.f32.mrb[0].mxu0
  %2803 = vmatprep.mubr.bf16.mxu0 %v1372
  %2804 = vmatmul.mubr.bf16.gmra.mrb[0].mxu0 %v1371
  %v2805 = vpop.f32.mrb[0].mxu0
  %v2806 = vadd.f32 %v1544, %v2805
  %v2807 = vpop.f32.mrb[0].mxu0
  %v2808 = vpop.f32.mrb[0].mxu0
  %v2809 = vadd.f32 %v1544, %v2808
  %v2810 = vpop.f32.mrb[0].mxu0
  %2811 = vmatprep.mubr.bf16.mxu0 %v1374
  %2812 = vmatmul.mubr.bf16.gmra.mrb[0].mxu0 %v1373
  %v2813 = vpop.f32.mrb[0].mxu0
  %v2814 = vadd.f32 %v1544, %v2813
  %v2815 = vpop.f32.mrb[0].mxu0
  %v2816 = vpop.f32.mrb[0].mxu0
  %v2817 = vadd.f32 %v1544, %v2816
  %v2818 = vpop.f32.mrb[0].mxu0
  %2819 = vmatprep.mubr.bf16.mxu0 %v1376
  %2820 = vmatmul.mubr.bf16.gmra.mrb[0].mxu0 %v1375
  %v2821 = vpop.f32.mrb[0].mxu0
  %v2822 = vadd.f32 %v1544, %v2821
  %v2823 = vpop.f32.mrb[0].mxu0
  %v2824 = vpop.f32.mrb[0].mxu0
  %v2825 = vadd.f32 %v1544, %v2824
  %v2826 = vpop.f32.mrb[0].mxu0
  %2827 = vmatprep.mubr.bf16.mxu0 %v1378
  %2828 = vmatmul.mubr.bf16.gmra.mrb[0].mxu0 %v1377
  %v2829 = vpop.f32.mrb[0].mxu0
  %v2830 = vadd.f32 %v1544, %v2829
  %v2831 = vpop.f32.mrb[0].mxu0
  %v2832 = vpop.f32.mrb[0].mxu0
  %v2833 = vadd.f32 %v1544, %v2832
  %v2834 = vpop.f32.mrb[0].mxu0
  %2835 = vmatprep.mubr.bf16.mxu0 %v1380
  %2836 = vmatmul.mubr.bf16.gmra.mrb[0].mxu0 %v1379
  %v2837 = vpop.f32.mrb[0].mxu0
  %v2838 = vadd.f32 %v1544, %v2837
  %v2839 = vpop.f32.mrb[0].mxu0
  %v2840 = vpop.f32.mrb[0].mxu0
  %v2841 = vadd.f32 %v1544, %v2840
  %v2842 = vpop.f32.mrb[0].mxu0
  %2843 = vmatprep.mubr.bf16.mxu0 %v1382
  %2844 = vmatmul.mubr.bf16.gmra.mrb[0].mxu0 %v1381
  %v2845 = vpop.f32.mrb[0].mxu0
  %v2846 = vadd.f32 %v1544, %v2845
  %v2847 = vpop.f32.mrb[0].mxu0
  %v2848 = vpop.f32.mrb[0].mxu0
  %v2849 = vadd.f32 %v1544, %v2848
  %v2850 = vpop.f32.mrb[0].mxu0
  %2851 = vmatprep.mubr.bf16.mxu0 %v1384
  %2852 = vmatmul.mubr.bf16.gmra.mrb[0].mxu0 %v1383
  %v2853 = vpop.f32.mrb[0].mxu0
  %v2854 = vadd.f32 %v1544, %v2853
  %v2855 = vpop.f32.mrb[0].mxu0
  %v2856 = vpop.f32.mrb[0].mxu0
  %v2857 = vadd.f32 %v1544, %v2856
  %v2858 = vpop.f32.mrb[0].mxu0
  %2859 = vmatprep.mubr.bf16.mxu0 %v1386
  %2860 = vmatmul.mubr.bf16.gmra.mrb[0].mxu0 %v1385
  %v2861 = vpop.f32.mrb[0].mxu0
  %v2862 = vadd.f32 %v1544, %v2861
  %v2863 = vpop.f32.mrb[0].mxu0
  %v2864 = vpop.f32.mrb[0].mxu0
  %v2865 = vadd.f32 %v1544, %v2864
  %v2866 = vpop.f32.mrb[0].mxu0
  %2867 = vdwg.mxu0
  %v2868 = vmul.f32 %v2163, 0.5
  %v2869 = vmul.f32 %v2165, 0.5
  %v2870 = vmul.f32 %v2356, 0.5
  %v2871 = vmul.f32 %v2358, 0.5
  %v2872 = vmul.f32 %v2549, 0.5
  %v2873 = vmul.f32 %v2551, 0.5
  %v2874 = vmul.f32 %v2742, 0.5
  %v2875 = vmul.f32 %v2167, 0.5
  %v2876 = vmul.f32 %v2169, 0.5
  %v2877 = vmul.f32 %v2360, 0.5
  %v2878 = vmul.f32 %v2362, 0.5
  %v2879 = vmul.f32 %v2553, 0.5
  %v2880 = vmul.f32 %v2555, 0.5
  %v2881 = vmul.f32 %v2745, 0.5
  %v2882 = vmul.f32 %v2173, 0.5
  %v2883 = vmul.f32 %v2175, 0.5
  %v2884 = vmul.f32 %v2366, 0.5
  %v2885 = vmul.f32 %v2368, 0.5
  %v2886 = vmul.f32 %v2559, 0.5
  %v2887 = vmul.f32 %v2561, 0.5
  %v2888 = vmul.f32 %v2750, 0.5
  %v2889 = vmul.f32 %v2177, 0.5
  %v2890 = vmul.f32 %v2179, 0.5
  %v2891 = vmul.f32 %v2370, 0.5
  %v2892 = vmul.f32 %v2372, 0.5
  %v2893 = vmul.f32 %v2563, 0.5
  %v2894 = vmul.f32 %v2565, 0.5
  %v2895 = vmul.f32 %v2753, 0.5
  %v2896 = vmul.f32 %v2183, 0.5
  %v2897 = vmul.f32 %v2185, 0.5
  %v2898 = vmul.f32 %v2376, 0.5
  %v2899 = vmul.f32 %v2378, 0.5
  %v2900 = vmul.f32 %v2569, 0.5
  %v2901 = vmul.f32 %v2571, 0.5
  %v2902 = vmul.f32 %v2758, 0.5
  %v2903 = vmul.f32 %v2187, 0.5
  %v2904 = vmul.f32 %v2189, 0.5
  %v2905 = vmul.f32 %v2380, 0.5
  %v2906 = vmul.f32 %v2382, 0.5
  %v2907 = vmul.f32 %v2573, 0.5
  %v2908 = vmul.f32 %v2575, 0.5
  %v2909 = vmul.f32 %v2761, 0.5
  %v2910 = vmul.f32 %v2193, 0.5
  %v2911 = vmul.f32 %v2195, 0.5
  %v2912 = vmul.f32 %v2386, 0.5
  %v2913 = vmul.f32 %v2388, 0.5
  %v2914 = vmul.f32 %v2579, 0.5
  %v2915 = vmul.f32 %v2581, 0.5
  %v2916 = vmul.f32 %v2766, 0.5
  %v2917 = vmul.f32 %v2197, 0.5
  %v2918 = vmul.f32 %v2199, 0.5
  %v2919 = vmul.f32 %v2390, 0.5
  %v2920 = vmul.f32 %v2392, 0.5
  %v2921 = vmul.f32 %v2583, 0.5
  %v2922 = vmul.f32 %v2585, 0.5
  %v2923 = vmul.f32 %v2769, 0.5
  %v2924 = vmul.f32 %v2203, 0.5
  %v2925 = vmul.f32 %v2205, 0.5
  %v2926 = vmul.f32 %v2396, 0.5
  %v2927 = vmul.f32 %v2398, 0.5
  %v2928 = vmul.f32 %v2589, 0.5
  %v2929 = vmul.f32 %v2591, 0.5
  %v2930 = vmul.f32 %v2774, 0.5
  %v2931 = vmul.f32 %v2207, 0.5
  %v2932 = vmul.f32 %v2209, 0.5
  %v2933 = vmul.f32 %v2400, 0.5
  %v2934 = vmul.f32 %v2402, 0.5
  %v2935 = vmul.f32 %v2593, 0.5
  %v2936 = vmul.f32 %v2595, 0.5
  %v2937 = vmul.f32 %v2777, 0.5
  %v2938 = vmul.f32 %v2213, 0.5
  %v2939 = vmul.f32 %v2215, 0.5
  %v2940 = vmul.f32 %v2406, 0.5
  %v2941 = vmul.f32 %v2408, 0.5
  %v2942 = vmul.f32 %v2599, 0.5
  %v2943 = vmul.f32 %v2601, 0.5
  %v2944 = vmul.f32 %v2782, 0.5
  %v2945 = vmul.f32 %v2217, 0.5
  %v2946 = vmul.f32 %v2219, 0.5
  %v2947 = vmul.f32 %v2410, 0.5
  %v2948 = vmul.f32 %v2412, 0.5
  %v2949 = vmul.f32 %v2603, 0.5
  %v2950 = vmul.f32 %v2605, 0.5
  %v2951 = vmul.f32 %v2785, 0.5
  %v2952 = vmul.f32 %v2223, 0.5
  %v2953 = vmul.f32 %v2225, 0.5
  %v2954 = vmul.f32 %v2416, 0.5
  %v2955 = vmul.f32 %v2418, 0.5
  %v2956 = vmul.f32 %v2609, 0.5
  %v2957 = vmul.f32 %v2611, 0.5
  %v2958 = vmul.f32 %v2790, 0.5
  %v2959 = vmul.f32 %v2227, 0.5
  %v2960 = vmul.f32 %v2229, 0.5
  %v2961 = vmul.f32 %v2420, 0.5
  %v2962 = vmul.f32 %v2422, 0.5
  %v2963 = vmul.f32 %v2613, 0.5
  %v2964 = vmul.f32 %v2615, 0.5
  %v2965 = vmul.f32 %v2793, 0.5
  %v2966 = vmul.f32 %v2233, 0.5
  %v2967 = vmul.f32 %v2235, 0.5
  %v2968 = vmul.f32 %v2426, 0.5
  %v2969 = vmul.f32 %v2428, 0.5
  %v2970 = vmul.f32 %v2619, 0.5
  %v2971 = vmul.f32 %v2621, 0.5
  %v2972 = vmul.f32 %v2798, 0.5
  %v2973 = vmul.f32 %v2237, 0.5
  %v2974 = vmul.f32 %v2239, 0.5
  %v2975 = vmul.f32 %v2430, 0.5
  %v2976 = vmul.f32 %v2432, 0.5
  %v2977 = vmul.f32 %v2623, 0.5
  %v2978 = vmul.f32 %v2625, 0.5
  %v2979 = vmul.f32 %v2801, 0.5
  %v2980 = vmul.f32 %v2243, 0.5
  %v2981 = vmul.f32 %v2245, 0.5
  %v2982 = vmul.f32 %v2436, 0.5
  %v2983 = vmul.f32 %v2438, 0.5
  %v2984 = vmul.f32 %v2629, 0.5
  %v2985 = vmul.f32 %v2631, 0.5
  %v2986 = vmul.f32 %v2806, 0.5
  %v2987 = vmul.f32 %v2247, 0.5
  %v2988 = vmul.f32 %v2249, 0.5
  %v2989 = vmul.f32 %v2440, 0.5
  %v2990 = vmul.f32 %v2442, 0.5
  %v2991 = vmul.f32 %v2633, 0.5
  %v2992 = vmul.f32 %v2635, 0.5
  %v2993 = vmul.f32 %v2809, 0.5
  %v2994 = vmul.f32 %v2253, 0.5
  %v2995 = vmul.f32 %v2255, 0.5
  %v2996 = vmul.f32 %v2446, 0.5
  %v2997 = vmul.f32 %v2448, 0.5
  %v2998 = vmul.f32 %v2639, 0.5
  %v2999 = vmul.f32 %v2641, 0.5
  %v3000 = vmul.f32 %v2814, 0.5
  %v3001 = vmul.f32 %v2257, 0.5
  %v3002 = vmul.f32 %v2259, 0.5
  %v3003 = vmul.f32 %v2450, 0.5
  %v3004 = vmul.f32 %v2452, 0.5
  %v3005 = vmul.f32 %v2643, 0.5
  %v3006 = vmul.f32 %v2645, 0.5
  %v3007 = vmul.f32 %v2817, 0.5
  %v3008 = vmul.f32 %v2263, 0.5
  %v3009 = vmul.f32 %v2265, 0.5
  %v3010 = vmul.f32 %v2456, 0.5
  %v3011 = vmul.f32 %v2458, 0.5
  %v3012 = vmul.f32 %v2649, 0.5
  %v3013 = vmul.f32 %v2651, 0.5
  %v3014 = vmul.f32 %v2822, 0.5
  %v3015 = vmul.f32 %v2267, 0.5
  %v3016 = vmul.f32 %v2269, 0.5
  %v3017 = vmul.f32 %v2460, 0.5
  %v3018 = vmul.f32 %v2462, 0.5
  %v3019 = vmul.f32 %v2653, 0.5
  %v3020 = vmul.f32 %v2655, 0.5
  %v3021 = vmul.f32 %v2825, 0.5
  %v3022 = vmul.f32 %v2273, 0.5
  %v3023 = vmul.f32 %v2275, 0.5
  %v3024 = vmul.f32 %v2466, 0.5
  %v3025 = vmul.f32 %v2468, 0.5
  %v3026 = vmul.f32 %v2659, 0.5
  %v3027 = vmul.f32 %v2661, 0.5
  %v3028 = vmul.f32 %v2830, 0.5
  %v3029 = vmul.f32 %v2277, 0.5
  %v3030 = vmul.f32 %v2279, 0.5
  %v3031 = vmul.f32 %v2470, 0.5
  %v3032 = vmul.f32 %v2472, 0.5
  %v3033 = vmul.f32 %v2663, 0.5
  %v3034 = vmul.f32 %v2665, 0.5
  %v3035 = vmul.f32 %v2833, 0.5
  %v3036 = vmul.f32 %v2283, 0.5
  %v3037 = vmul.f32 %v2285, 0.5
  %v3038 = vmul.f32 %v2476, 0.5
  %v3039 = vmul.f32 %v2478, 0.5
  %v3040 = vmul.f32 %v2669, 0.5
  %v3041 = vmul.f32 %v2671, 0.5
  %v3042 = vmul.f32 %v2838, 0.5
  %v3043 = vmul.f32 %v2287, 0.5
  %v3044 = vmul.f32 %v2289, 0.5
  %v3045 = vmul.f32 %v2480, 0.5
  %v3046 = vmul.f32 %v2482, 0.5
  %v3047 = vmul.f32 %v2673, 0.5
  %v3048 = vmul.f32 %v2675, 0.5
  %v3049 = vmul.f32 %v2841, 0.5
  %v3050 = vmul.f32 %v2293, 0.5
  %v3051 = vmul.f32 %v2295, 0.5
  %v3052 = vmul.f32 %v2486, 0.5
  %v3053 = vmul.f32 %v2488, 0.5
  %v3054 = vmul.f32 %v2679, 0.5
  %v3055 = vmul.f32 %v2681, 0.5
  %v3056 = vmul.f32 %v2846, 0.5
  %v3057 = vmul.f32 %v2297, 0.5
  %v3058 = vmul.f32 %v2299, 0.5
  %v3059 = vmul.f32 %v2490, 0.5
  %v3060 = vmul.f32 %v2492, 0.5
  %v3061 = vmul.f32 %v2683, 0.5
  %v3062 = vmul.f32 %v2685, 0.5
  %v3063 = vmul.f32 %v2849, 0.5
  %v3064 = vmul.f32 %v2303, 0.5
  %v3065 = vmul.f32 %v2305, 0.5
  %v3066 = vmul.f32 %v2496, 0.5
  %v3067 = vmul.f32 %v2498, 0.5
  %v3068 = vmul.f32 %v2689, 0.5
  %v3069 = vmul.f32 %v2691, 0.5
  %v3070 = vmul.f32 %v2854, 0.5
  %v3071 = vmul.f32 %v2307, 0.5
  %v3072 = vmul.f32 %v2309, 0.5
  %v3073 = vmul.f32 %v2500, 0.5
  %v3074 = vmul.f32 %v2502, 0.5
  %v3075 = vmul.f32 %v2693, 0.5
  %v3076 = vmul.f32 %v2695, 0.5
  %v3077 = vmul.f32 %v2857, 0.5
  %v3078 = vmul.f32 %v2313, 0.5
  %v3079 = vmul.f32 %v2315, 0.5
  %v3080 = vmul.f32 %v2506, 0.5
  %v3081 = vmul.f32 %v2508, 0.5
  %v3082 = vmul.f32 %v2699, 0.5
  %v3083 = vmul.f32 %v2701, 0.5
  %v3084 = vmul.f32 %v2862, 0.5
  %v3085 = vmul.f32 %v2317, 0.5
  %v3086 = vmul.f32 %v2319, 0.5
  %v3087 = vmul.f32 %v2510, 0.5
  %v3088 = vmul.f32 %v2512, 0.5
  %v3089 = vmul.f32 %v2703, 0.5
  %v3090 = vmul.f32 %v2705, 0.5
  %v3091 = vmul.f32 %v2865, 0.5
  %v3092 = vtanh.pop %v2868
  %v3093 = vtanh.pop %v2869
  %v3094 = vtanh.pop %v2870
  %v3095 = vtanh.pop %v2871
  %v3096 = vtanh.pop %v2872
  %v3097 = vtanh.pop %v2873
  %v3098 = vtanh.pop %v2874
  %v3099 = vtanh.pop %v2875
  %v3100 = vtanh.pop %v2876
  %v3101 = vtanh.pop %v2877
  %v3102 = vtanh.pop %v2878
  %v3103 = vtanh.pop %v2879
  %v3104 = vtanh.pop %v2880
  %v3105 = vtanh.pop %v2881
  %v3106 = vtanh.pop %v2882
  %v3107 = vtanh.pop %v2883
  %v3108 = vtanh.pop %v2884
  %v3109 = vtanh.pop %v2885
  %v3110 = vtanh.pop %v2886
  %v3111 = vtanh.pop %v2887
  %v3112 = vtanh.pop %v2888
  %v3113 = vtanh.pop %v2889
  %v3114 = vtanh.pop %v2890
  %v3115 = vtanh.pop %v2891
  %v3116 = vtanh.pop %v2892
  %v3117 = vtanh.pop %v2893
  %v3118 = vtanh.pop %v2894
  %v3119 = vtanh.pop %v2895
  %v3120 = vtanh.pop %v2896
  %v3121 = vtanh.pop %v2897
  %v3122 = vtanh.pop %v2898
  %v3123 = vtanh.pop %v2899
  %v3124 = vtanh.pop %v2900
  %v3125 = vtanh.pop %v2901
  %v3126 = vtanh.pop %v2902
  %v3127 = vtanh.pop %v2903
  %v3128 = vtanh.pop %v2904
  %v3129 = vtanh.pop %v2905
  %v3130 = vtanh.pop %v2906
  %v3131 = vtanh.pop %v2907
  %v3132 = vtanh.pop %v2908
  %v3133 = vtanh.pop %v2909
  %v3134 = vtanh.pop %v2910
  %v3135 = vtanh.pop %v2911
  %v3136 = vtanh.pop %v2912
  %v3137 = vtanh.pop %v2913
  %v3138 = vtanh.pop %v2914
  %v3139 = vtanh.pop %v2915
  %v3140 = vtanh.pop %v2916
  %v3141 = vtanh.pop %v2917
  %v3142 = vtanh.pop %v2918
  %v3143 = vtanh.pop %v2919
  %v3144 = vtanh.pop %v2920
  %v3145 = vtanh.pop %v2921
  %v3146 = vtanh.pop %v2922
  %v3147 = vtanh.pop %v2923
  %v3148 = vtanh.pop %v2924
  %v3149 = vtanh.pop %v2925
  %v3150 = vtanh.pop %v2926
  %v3151 = vtanh.pop %v2927
  %v3152 = vtanh.pop %v2928
  %v3153 = vtanh.pop %v2929
  %v3154 = vtanh.pop %v2930
  %v3155 = vtanh.pop %v2931
  %v3156 = vtanh.pop %v2932
  %v3157 = vtanh.pop %v2933
  %v3158 = vtanh.pop %v2934
  %v3159 = vtanh.pop %v2935
  %v3160 = vtanh.pop %v2936
  %v3161 = vtanh.pop %v2937
  %v3162 = vtanh.pop %v2938
  %v3163 = vtanh.pop %v2939
  %v3164 = vtanh.pop %v2940
  %v3165 = vtanh.pop %v2941
  %v3166 = vtanh.pop %v2942
  %v3167 = vtanh.pop %v2943
  %v3168 = vtanh.pop %v2944
  %v3169 = vtanh.pop %v2945
  %v3170 = vtanh.pop %v2946
  %v3171 = vtanh.pop %v2947
  %v3172 = vtanh.pop %v2948
  %v3173 = vtanh.pop %v2949
  %v3174 = vtanh.pop %v2950
  %v3175 = vtanh.pop %v2951
  %v3176 = vtanh.pop %v2952
  %v3177 = vtanh.pop %v2953
  %v3178 = vtanh.pop %v2954
  %v3179 = vtanh.pop %v2955
  %v3180 = vtanh.pop %v2956
  %v3181 = vtanh.pop %v2957
  %v3182 = vtanh.pop %v2958
  %v3183 = vtanh.pop %v2959
  %v3184 = vtanh.pop %v2960
  %v3185 = vtanh.pop %v2961
  %v3186 = vtanh.pop %v2962
  %v3187 = vtanh.pop %v2963
  %v3188 = vtanh.pop %v2964
  %v3189 = vtanh.pop %v2965
  %v3190 = vtanh.pop %v2966
  %v3191 = vtanh.pop %v2967
  %v3192 = vtanh.pop %v2968
  %v3193 = vtanh.pop %v2969
  %v3194 = vtanh.pop %v2970
  %v3195 = vtanh.pop %v2971
  %v3196 = vtanh.pop %v2972
  %v3197 = vtanh.pop %v2973
  %v3198 = vtanh.pop %v2974
  %v3199 = vtanh.pop %v2975
  %v3200 = vtanh.pop %v2976
  %v3201 = vtanh.pop %v2977
  %v3202 = vtanh.pop %v2978
  %v3203 = vtanh.pop %v2979
  %v3204 = vtanh.pop %v2980
  %v3205 = vtanh.pop %v2981
  %v3206 = vtanh.pop %v2982
  %v3207 = vtanh.pop %v2983
  %v3208 = vtanh.pop %v2984
  %v3209 = vtanh.pop %v2985
  %v3210 = vtanh.pop %v2986
  %v3211 = vtanh.pop %v2987
  %v3212 = vtanh.pop %v2988
  %v3213 = vtanh.pop %v2989
  %v3214 = vtanh.pop %v2990
  %v3215 = vtanh.pop %v2991
  %v3216 = vtanh.pop %v2992
  %v3217 = vtanh.pop %v2993
  %v3218 = vtanh.pop %v2994
  %v3219 = vtanh.pop %v2995
  %v3220 = vtanh.pop %v2996
  %v3221 = vtanh.pop %v2997
  %v3222 = vtanh.pop %v2998
  %v3223 = vtanh.pop %v2999
  %v3224 = vtanh.pop %v3000
  %v3225 = vtanh.pop %v3001
  %v3226 = vtanh.pop %v3002
  %v3227 = vtanh.pop %v3003
  %v3228 = vtanh.pop %v3004
  %v3229 = vtanh.pop %v3005
  %v3230 = vtanh.pop %v3006
  %v3231 = vtanh.pop %v3007
  %v3232 = vtanh.pop %v3008
  %v3233 = vtanh.pop %v3009
  %v3234 = vtanh.pop %v3010
  %v3235 = vtanh.pop %v3011
  %v3236 = vtanh.pop %v3012
  %v3237 = vtanh.pop %v3013
  %v3238 = vtanh.pop %v3014
  %v3239 = vtanh.pop %v3015
  %v3240 = vtanh.pop %v3016
  %v3241 = vtanh.pop %v3017
  %v3242 = vtanh.pop %v3018
  %v3243 = vtanh.pop %v3019
  %v3244 = vtanh.pop %v3020
  %v3245 = vtanh.pop %v3021
  %v3246 = vtanh.pop %v3022
  %v3247 = vtanh.pop %v3023
  %v3248 = vtanh.pop %v3024
  %v3249 = vtanh.pop %v3025
  %v3250 = vtanh.pop %v3026
  %v3251 = vtanh.pop %v3027
  %v3252 = vtanh.pop %v3028
  %v3253 = vtanh.pop %v3029
  %v3254 = vtanh.pop %v3030
  %v3255 = vtanh.pop %v3031
  %v3256 = vtanh.pop %v3032
  %v3257 = vtanh.pop %v3033
  %v3258 = vtanh.pop %v3034
  %v3259 = vtanh.pop %v3035
  %v3260 = vtanh.pop %v3036
  %v3261 = vtanh.pop %v3037
  %v3262 = vtanh.pop %v3038
  %v3263 = vtanh.pop %v3039
  %v3264 = vtanh.pop %v3040
  %v3265 = vtanh.pop %v3041
  %v3266 = vtanh.pop %v3042
  %v3267 = vtanh.pop %v3043
  %v3268 = vtanh.pop %v3044
  %v3269 = vtanh.pop %v3045
  %v3270 = vtanh.pop %v3046
  %v3271 = vtanh.pop %v3047
  %v3272 = vtanh.pop %v3048
  %v3273 = vtanh.pop %v3049
  %v3274 = vtanh.pop %v3050
  %v3275 = vtanh.pop %v3051
  %v3276 = vtanh.pop %v3052
  %v3277 = vtanh.pop %v3053
  %v3278 = vtanh.pop %v3054
  %v3279 = vtanh.pop %v3055
  %v3280 = vtanh.pop %v3056
  %v3281 = vtanh.pop %v3057
  %v3282 = vtanh.pop %v3058
  %v3283 = vtanh.pop %v3059
  %v3284 = vtanh.pop %v3060
  %v3285 = vtanh.pop %v3061
  %v3286 = vtanh.pop %v3062
  %v3287 = vtanh.pop %v3063
  %v3288 = vtanh.pop %v3064
  %v3289 = vtanh.pop %v3065
  %v3290 = vtanh.pop %v3066
  %v3291 = vtanh.pop %v3067
  %v3292 = vtanh.pop %v3068
  %v3293 = vtanh.pop %v3069
  %v3294 = vtanh.pop %v3070
  %v3295 = vtanh.pop %v3071
  %v3296 = vtanh.pop %v3072
  %v3297 = vtanh.pop %v3073
  %v3298 = vtanh.pop %v3074
  %v3299 = vtanh.pop %v3075
  %v3300 = vtanh.pop %v3076
  %v3301 = vtanh.pop %v3077
  %v3302 = vtanh.pop %v3078
  %v3303 = vtanh.pop %v3079
  %v3304 = vtanh.pop %v3080
  %v3305 = vtanh.pop %v3081
  %v3306 = vtanh.pop %v3082
  %v3307 = vtanh.pop %v3083
  %v3308 = vtanh.pop %v3084
  %v3309 = vtanh.pop %v3085
  %v3310 = vtanh.pop %v3086
  %v3311 = vtanh.pop %v3087
  %v3312 = vtanh.pop %v3088
  %v3313 = vtanh.pop %v3089
  %v3314 = vtanh.pop %v3090
  %v3315 = vtanh.pop %v3091
  %v3316 = vmul.f32 %v3092, 0.5
  %v3317 = vmul.f32 %v3093, 0.5
  %v3318 = vmul.f32 %v3094, 0.5
  %v3319 = vmul.f32 %v3095, 0.5
  %v3320 = vmul.f32 %v3096, 0.5
  %v3321 = vmul.f32 %v3097, 0.5
  %v3322 = vmul.f32 %v3098, 0.5
  %v3323 = vmul.f32 %v3099, 0.5
  %v3324 = vmul.f32 %v3100, 0.5
  %v3325 = vmul.f32 %v3101, 0.5
  %v3326 = vmul.f32 %v3102, 0.5
  %v3327 = vmul.f32 %v3103, 0.5
  %v3328 = vmul.f32 %v3104, 0.5
  %v3329 = vmul.f32 %v3105, 0.5
  %v3330 = vmul.f32 %v3106, 0.5
  %v3331 = vmul.f32 %v3107, 0.5
  %v3332 = vmul.f32 %v3108, 0.5
  %v3333 = vmul.f32 %v3109, 0.5
  %v3334 = vmul.f32 %v3110, 0.5
  %v3335 = vmul.f32 %v3111, 0.5
  %v3336 = vmul.f32 %v3112, 0.5
  %v3337 = vmul.f32 %v3113, 0.5
  %v3338 = vmul.f32 %v3114, 0.5
  %v3339 = vmul.f32 %v3115, 0.5
  %v3340 = vmul.f32 %v3116, 0.5
  %v3341 = vmul.f32 %v3117, 0.5
  %v3342 = vmul.f32 %v3118, 0.5
  %v3343 = vmul.f32 %v3119, 0.5
  %v3344 = vmul.f32 %v3120, 0.5
  %v3345 = vmul.f32 %v3121, 0.5
  %v3346 = vmul.f32 %v3122, 0.5
  %v3347 = vmul.f32 %v3123, 0.5
  %v3348 = vmul.f32 %v3124, 0.5
  %v3349 = vmul.f32 %v3125, 0.5
  %v3350 = vmul.f32 %v3126, 0.5
  %v3351 = vmul.f32 %v3127, 0.5
  %v3352 = vmul.f32 %v3128, 0.5
  %v3353 = vmul.f32 %v3129, 0.5
  %v3354 = vmul.f32 %v3130, 0.5
  %v3355 = vmul.f32 %v3131, 0.5
  %v3356 = vmul.f32 %v3132, 0.5
  %v3357 = vmul.f32 %v3133, 0.5
  %v3358 = vmul.f32 %v3134, 0.5
  %v3359 = vmul.f32 %v3135, 0.5
  %v3360 = vmul.f32 %v3136, 0.5
  %v3361 = vmul.f32 %v3137, 0.5
  %v3362 = vmul.f32 %v3138, 0.5
  %v3363 = vmul.f32 %v3139, 0.5
  %v3364 = vmul.f32 %v3140, 0.5
  %v3365 = vmul.f32 %v3141, 0.5
  %v3366 = vmul.f32 %v3142, 0.5
  %v3367 = vmul.f32 %v3143, 0.5
  %v3368 = vmul.f32 %v3144, 0.5
  %v3369 = vmul.f32 %v3145, 0.5
  %v3370 = vmul.f32 %v3146, 0.5
  %v3371 = vmul.f32 %v3147, 0.5
  %v3372 = vmul.f32 %v3148, 0.5
  %v3373 = vmul.f32 %v3149, 0.5
  %v3374 = vmul.f32 %v3150, 0.5
  %v3375 = vmul.f32 %v3151, 0.5
  %v3376 = vmul.f32 %v3152, 0.5
  %v3377 = vmul.f32 %v3153, 0.5
  %v3378 = vmul.f32 %v3154, 0.5
  %v3379 = vmul.f32 %v3155, 0.5
  %v3380 = vmul.f32 %v3156, 0.5
  %v3381 = vmul.f32 %v3157, 0.5
  %v3382 = vmul.f32 %v3158, 0.5
  %v3383 = vmul.f32 %v3159, 0.5
  %v3384 = vmul.f32 %v3160, 0.5
  %v3385 = vmul.f32 %v3161, 0.5
  %v3386 = vmul.f32 %v3162, 0.5
  %v3387 = vmul.f32 %v3163, 0.5
  %v3388 = vmul.f32 %v3164, 0.5
  %v3389 = vmul.f32 %v3165, 0.5
  %v3390 = vmul.f32 %v3166, 0.5
  %v3391 = vmul.f32 %v3167, 0.5
  %v3392 = vmul.f32 %v3168, 0.5
  %v3393 = vmul.f32 %v3169, 0.5
  %v3394 = vmul.f32 %v3170, 0.5
  %v3395 = vmul.f32 %v3171, 0.5
  %v3396 = vmul.f32 %v3172, 0.5
  %v3397 = vmul.f32 %v3173, 0.5
  %v3398 = vmul.f32 %v3174, 0.5
  %v3399 = vmul.f32 %v3175, 0.5
  %v3400 = vmul.f32 %v3176, 0.5
  %v3401 = vmul.f32 %v3177, 0.5
  %v3402 = vmul.f32 %v3178, 0.5
  %v3403 = vmul.f32 %v3179, 0.5
  %v3404 = vmul.f32 %v3180, 0.5
  %v3405 = vmul.f32 %v3181, 0.5
  %v3406 = vmul.f32 %v3182, 0.5
  %v3407 = vmul.f32 %v3183, 0.5
  %v3408 = vmul.f32 %v3184, 0.5
  %v3409 = vmul.f32 %v3185, 0.5
  %v3410 = vmul.f32 %v3186, 0.5
  %v3411 = vmul.f32 %v3187, 0.5
  %v3412 = vmul.f32 %v3188, 0.5
  %v3413 = vmul.f32 %v3189, 0.5
  %v3414 = vmul.f32 %v3190, 0.5
  %v3415 = vmul.f32 %v3191, 0.5
  %v3416 = vmul.f32 %v3192, 0.5
  %v3417 = vmul.f32 %v3193, 0.5
  %v3418 = vmul.f32 %v3194, 0.5
  %v3419 = vmul.f32 %v3195, 0.5
  %v3420 = vmul.f32 %v3196, 0.5
  %v3421 = vmul.f32 %v3197, 0.5
  %v3422 = vmul.f32 %v3198, 0.5
  %v3423 = vmul.f32 %v3199, 0.5
  %v3424 = vmul.f32 %v3200, 0.5
  %v3425 = vmul.f32 %v3201, 0.5
  %v3426 = vmul.f32 %v3202, 0.5
  %v3427 = vmul.f32 %v3203, 0.5
  %v3428 = vmul.f32 %v3204, 0.5
  %v3429 = vmul.f32 %v3205, 0.5
  %v3430 = vmul.f32 %v3206, 0.5
  %v3431 = vmul.f32 %v3207, 0.5
  %v3432 = vmul.f32 %v3208, 0.5
  %v3433 = vmul.f32 %v3209, 0.5
  %v3434 = vmul.f32 %v3210, 0.5
  %v3435 = vmul.f32 %v3211, 0.5
  %v3436 = vmul.f32 %v3212, 0.5
  %v3437 = vmul.f32 %v3213, 0.5
  %v3438 = vmul.f32 %v3214, 0.5
  %v3439 = vmul.f32 %v3215, 0.5
  %v3440 = vmul.f32 %v3216, 0.5
  %v3441 = vmul.f32 %v3217, 0.5
  %v3442 = vmul.f32 %v3218, 0.5
  %v3443 = vmul.f32 %v3219, 0.5
  %v3444 = vmul.f32 %v3220, 0.5
  %v3445 = vmul.f32 %v3221, 0.5
  %v3446 = vmul.f32 %v3222, 0.5
  %v3447 = vmul.f32 %v3223, 0.5
  %v3448 = vmul.f32 %v3224, 0.5
  %v3449 = vmul.f32 %v3225, 0.5
  %v3450 = vmul.f32 %v3226, 0.5
  %v3451 = vmul.f32 %v3227, 0.5
  %v3452 = vmul.f32 %v3228, 0.5
  %v3453 = vmul.f32 %v3229, 0.5
  %v3454 = vmul.f32 %v3230, 0.5
  %v3455 = vmul.f32 %v3231, 0.5
  %v3456 = vmul.f32 %v3232, 0.5
  %v3457 = vmul.f32 %v3233, 0.5
  %v3458 = vmul.f32 %v3234, 0.5
  %v3459 = vmul.f32 %v3235, 0.5
  %v3460 = vmul.f32 %v3236, 0.5
  %v3461 = vmul.f32 %v3237, 0.5
  %v3462 = vmul.f32 %v3238, 0.5
  %v3463 = vmul.f32 %v3239, 0.5
  %v3464 = vmul.f32 %v3240, 0.5
  %v3465 = vmul.f32 %v3241, 0.5
  %v3466 = vmul.f32 %v3242, 0.5
  %v3467 = vmul.f32 %v3243, 0.5
  %v3468 = vmul.f32 %v3244, 0.5
  %v3469 = vmul.f32 %v3245, 0.5
  %v3470 = vmul.f32 %v3246, 0.5
  %v3471 = vmul.f32 %v3247, 0.5
  %v3472 = vmul.f32 %v3248, 0.5
  %v3473 = vmul.f32 %v3249, 0.5
  %v3474 = vmul.f32 %v3250, 0.5
  %v3475 = vmul.f32 %v3251, 0.5
  %v3476 = vmul.f32 %v3252, 0.5
  %v3477 = vmul.f32 %v3253, 0.5
  %v3478 = vmul.f32 %v3254, 0.5
  %v3479 = vmul.f32 %v3255, 0.5
  %v3480 = vmul.f32 %v3256, 0.5
  %v3481 = vmul.f32 %v3257, 0.5
  %v3482 = vmul.f32 %v3258, 0.5
  %v3483 = vmul.f32 %v3259, 0.5
  %v3484 = vmul.f32 %v3260, 0.5
  %v3485 = vmul.f32 %v3261, 0.5
  %v3486 = vmul.f32 %v3262, 0.5
  %v3487 = vmul.f32 %v3263, 0.5
  %v3488 = vmul.f32 %v3264, 0.5
  %v3489 = vmul.f32 %v3265, 0.5
  %v3490 = vmul.f32 %v3266, 0.5
  %v3491 = vmul.f32 %v3267, 0.5
  %v3492 = vmul.f32 %v3268, 0.5
  %v3493 = vmul.f32 %v3269, 0.5
  %v3494 = vmul.f32 %v3270, 0.5
  %v3495 = vmul.f32 %v3271, 0.5
  %v3496 = vmul.f32 %v3272, 0.5
  %v3497 = vmul.f32 %v3273, 0.5
  %v3498 = vmul.f32 %v3274, 0.5
  %v3499 = vmul.f32 %v3275, 0.5
  %v3500 = vmul.f32 %v3276, 0.5
  %v3501 = vmul.f32 %v3277, 0.5
  %v3502 = vmul.f32 %v3278, 0.5
  %v3503 = vmul.f32 %v3279, 0.5
  %v3504 = vmul.f32 %v3280, 0.5
  %v3505 = vmul.f32 %v3281, 0.5
  %v3506 = vmul.f32 %v3282, 0.5
  %v3507 = vmul.f32 %v3283, 0.5
  %v3508 = vmul.f32 %v3284, 0.5
  %v3509 = vmul.f32 %v3285, 0.5
  %v3510 = vmul.f32 %v3286, 0.5
  %v3511 = vmul.f32 %v3287, 0.5
  %v3512 = vmul.f32 %v3288, 0.5
  %v3513 = vmul.f32 %v3289, 0.5
  %v3514 = vmul.f32 %v3290, 0.5
  %v3515 = vmul.f32 %v3291, 0.5
  %v3516 = vmul.f32 %v3292, 0.5
  %v3517 = vmul.f32 %v3293, 0.5
  %v3518 = vmul.f32 %v3294, 0.5
  %v3519 = vmul.f32 %v3295, 0.5
  %v3520 = vmul.f32 %v3296, 0.5
  %v3521 = vmul.f32 %v3297, 0.5
  %v3522 = vmul.f32 %v3298, 0.5
  %v3523 = vmul.f32 %v3299, 0.5
  %v3524 = vmul.f32 %v3300, 0.5
  %v3525 = vmul.f32 %v3301, 0.5
  %v3526 = vmul.f32 %v3302, 0.5
  %v3527 = vmul.f32 %v3303, 0.5
  %v3528 = vmul.f32 %v3304, 0.5
  %v3529 = vmul.f32 %v3305, 0.5
  %v3530 = vmul.f32 %v3306, 0.5
  %v3531 = vmul.f32 %v3307, 0.5
  %v3532 = vmul.f32 %v3308, 0.5
  %v3533 = vmul.f32 %v3309, 0.5
  %v3534 = vmul.f32 %v3310, 0.5
  %v3535 = vmul.f32 %v3311, 0.5
  %v3536 = vmul.f32 %v3312, 0.5
  %v3537 = vmul.f32 %v3313, 0.5
  %v3538 = vmul.f32 %v3314, 0.5
  %v3539 = vmul.f32 %v3315, 0.5
  %v3540 = vadd.f32 %v3316, 0.5
  %v3541 = vadd.f32 %v3317, 0.5
  %v3542 = vadd.f32 %v3318, 0.5
  %v3543 = vadd.f32 %v3319, 0.5
  %v3544 = vadd.f32 %v3320, 0.5
  %v3545 = vadd.f32 %v3321, 0.5
  %v3546 = vadd.f32 %v3322, 0.5
  %v3547 = vadd.f32 %v3323, 0.5
  %v3548 = vadd.f32 %v3324, 0.5
  %v3549 = vadd.f32 %v3325, 0.5
  %v3550 = vadd.f32 %v3326, 0.5
  %v3551 = vadd.f32 %v3327, 0.5
  %v3552 = vadd.f32 %v3328, 0.5
  %v3553 = vadd.f32 %v3329, 0.5
  %v3554 = vadd.f32 %v3330, 0.5
  %v3555 = vadd.f32 %v3331, 0.5
  %v3556 = vadd.f32 %v3332, 0.5
  %v3557 = vadd.f32 %v3333, 0.5
  %v3558 = vadd.f32 %v3334, 0.5
  %v3559 = vadd.f32 %v3335, 0.5
  %v3560 = vadd.f32 %v3336, 0.5
  %v3561 = vadd.f32 %v3337, 0.5
  %v3562 = vadd.f32 %v3338, 0.5
  %v3563 = vadd.f32 %v3339, 0.5
  %v3564 = vadd.f32 %v3340, 0.5
  %v3565 = vadd.f32 %v3341, 0.5
  %v3566 = vadd.f32 %v3342, 0.5
  %v3567 = vadd.f32 %v3343, 0.5
  %v3568 = vadd.f32 %v3344, 0.5
  %v3569 = vadd.f32 %v3345, 0.5
  %v3570 = vadd.f32 %v3346, 0.5
  %v3571 = vadd.f32 %v3347, 0.5
  %v3572 = vadd.f32 %v3348, 0.5
  %v3573 = vadd.f32 %v3349, 0.5
  %v3574 = vadd.f32 %v3350, 0.5
  %v3575 = vadd.f32 %v3351, 0.5
  %v3576 = vadd.f32 %v3352, 0.5
  %v3577 = vadd.f32 %v3353, 0.5
  %v3578 = vadd.f32 %v3354, 0.5
  %v3579 = vadd.f32 %v3355, 0.5
  %v3580 = vadd.f32 %v3356, 0.5
  %v3581 = vadd.f32 %v3357, 0.5
  %v3582 = vadd.f32 %v3358, 0.5
  %v3583 = vadd.f32 %v3359, 0.5
  %v3584 = vadd.f32 %v3360, 0.5
  %v3585 = vadd.f32 %v3361, 0.5
  %v3586 = vadd.f32 %v3362, 0.5
  %v3587 = vadd.f32 %v3363, 0.5
  %v3588 = vadd.f32 %v3364, 0.5
  %v3589 = vadd.f32 %v3365, 0.5
  %v3590 = vadd.f32 %v3366, 0.5
  %v3591 = vadd.f32 %v3367, 0.5
  %v3592 = vadd.f32 %v3368, 0.5
  %v3593 = vadd.f32 %v3369, 0.5
  %v3594 = vadd.f32 %v3370, 0.5
  %v3595 = vadd.f32 %v3371, 0.5
  %v3596 = vadd.f32 %v3372, 0.5
  %v3597 = vadd.f32 %v3373, 0.5
  %v3598 = vadd.f32 %v3374, 0.5
  %v3599 = vadd.f32 %v3375, 0.5
  %v3600 = vadd.f32 %v3376, 0.5
  %v3601 = vadd.f32 %v3377, 0.5
  %v3602 = vadd.f32 %v3378, 0.5
  %v3603 = vadd.f32 %v3379, 0.5
  %v3604 = vadd.f32 %v3380, 0.5
  %v3605 = vadd.f32 %v3381, 0.5
  %v3606 = vadd.f32 %v3382, 0.5
  %v3607 = vadd.f32 %v3383, 0.5
  %v3608 = vadd.f32 %v3384, 0.5
  %v3609 = vadd.f32 %v3385, 0.5
  %v3610 = vadd.f32 %v3386, 0.5
  %v3611 = vadd.f32 %v3387, 0.5
  %v3612 = vadd.f32 %v3388, 0.5
  %v3613 = vadd.f32 %v3389, 0.5
  %v3614 = vadd.f32 %v3390, 0.5
  %v3615 = vadd.f32 %v3391, 0.5
  %v3616 = vadd.f32 %v3392, 0.5
  %v3617 = vadd.f32 %v3393, 0.5
  %v3618 = vadd.f32 %v3394, 0.5
  %v3619 = vadd.f32 %v3395, 0.5
  %v3620 = vadd.f32 %v3396, 0.5
  %v3621 = vadd.f32 %v3397, 0.5
  %v3622 = vadd.f32 %v3398, 0.5
  %v3623 = vadd.f32 %v3399, 0.5
  %v3624 = vadd.f32 %v3400, 0.5
  %v3625 = vadd.f32 %v3401, 0.5
  %v3626 = vadd.f32 %v3402, 0.5
  %v3627 = vadd.f32 %v3403, 0.5
  %v3628 = vadd.f32 %v3404, 0.5
  %v3629 = vadd.f32 %v3405, 0.5
  %v3630 = vadd.f32 %v3406, 0.5
  %v3631 = vadd.f32 %v3407, 0.5
  %v3632 = vadd.f32 %v3408, 0.5
  %v3633 = vadd.f32 %v3409, 0.5
  %v3634 = vadd.f32 %v3410, 0.5
  %v3635 = vadd.f32 %v3411, 0.5
  %v3636 = vadd.f32 %v3412, 0.5
  %v3637 = vadd.f32 %v3413, 0.5
  %v3638 = vadd.f32 %v3414, 0.5
  %v3639 = vadd.f32 %v3415, 0.5
  %v3640 = vadd.f32 %v3416, 0.5
  %v3641 = vadd.f32 %v3417, 0.5
  %v3642 = vadd.f32 %v3418, 0.5
  %v3643 = vadd.f32 %v3419, 0.5
  %v3644 = vadd.f32 %v3420, 0.5
  %v3645 = vadd.f32 %v3421, 0.5
  %v3646 = vadd.f32 %v3422, 0.5
  %v3647 = vadd.f32 %v3423, 0.5
  %v3648 = vadd.f32 %v3424, 0.5
  %v3649 = vadd.f32 %v3425, 0.5
  %v3650 = vadd.f32 %v3426, 0.5
  %v3651 = vadd.f32 %v3427, 0.5
  %v3652 = vadd.f32 %v3428, 0.5
  %v3653 = vadd.f32 %v3429, 0.5
  %v3654 = vadd.f32 %v3430, 0.5
  %v3655 = vadd.f32 %v3431, 0.5
  %v3656 = vadd.f32 %v3432, 0.5
  %v3657 = vadd.f32 %v3433, 0.5
  %v3658 = vadd.f32 %v3434, 0.5
  %v3659 = vadd.f32 %v3435, 0.5
  %v3660 = vadd.f32 %v3436, 0.5
  %v3661 = vadd.f32 %v3437, 0.5
  %v3662 = vadd.f32 %v3438, 0.5
  %v3663 = vadd.f32 %v3439, 0.5
  %v3664 = vadd.f32 %v3440, 0.5
  %v3665 = vadd.f32 %v3441, 0.5
  %v3666 = vadd.f32 %v3442, 0.5
  %v3667 = vadd.f32 %v3443, 0.5
  %v3668 = vadd.f32 %v3444, 0.5
  %v3669 = vadd.f32 %v3445, 0.5
  %v3670 = vadd.f32 %v3446, 0.5
  %v3671 = vadd.f32 %v3447, 0.5
  %v3672 = vadd.f32 %v3448, 0.5
  %v3673 = vadd.f32 %v3449, 0.5
  %v3674 = vadd.f32 %v3450, 0.5
  %v3675 = vadd.f32 %v3451, 0.5
  %v3676 = vadd.f32 %v3452, 0.5
  %v3677 = vadd.f32 %v3453, 0.5
  %v3678 = vadd.f32 %v3454, 0.5
  %v3679 = vadd.f32 %v3455, 0.5
  %v3680 = vadd.f32 %v3456, 0.5
  %v3681 = vadd.f32 %v3457, 0.5
  %v3682 = vadd.f32 %v3458, 0.5
  %v3683 = vadd.f32 %v3459, 0.5
  %v3684 = vadd.f32 %v3460, 0.5
  %v3685 = vadd.f32 %v3461, 0.5
  %v3686 = vadd.f32 %v3462, 0.5
  %v3687 = vadd.f32 %v3463, 0.5
  %v3688 = vadd.f32 %v3464, 0.5
  %v3689 = vadd.f32 %v3465, 0.5
  %v3690 = vadd.f32 %v3466, 0.5
  %v3691 = vadd.f32 %v3467, 0.5
  %v3692 = vadd.f32 %v3468, 0.5
  %v3693 = vadd.f32 %v3469, 0.5
  %v3694 = vadd.f32 %v3470, 0.5
  %v3695 = vadd.f32 %v3471, 0.5
  %v3696 = vadd.f32 %v3472, 0.5
  %v3697 = vadd.f32 %v3473, 0.5
  %v3698 = vadd.f32 %v3474, 0.5
  %v3699 = vadd.f32 %v3475, 0.5
  %v3700 = vadd.f32 %v3476, 0.5
  %v3701 = vadd.f32 %v3477, 0.5
  %v3702 = vadd.f32 %v3478, 0.5
  %v3703 = vadd.f32 %v3479, 0.5
  %v3704 = vadd.f32 %v3480, 0.5
  %v3705 = vadd.f32 %v3481, 0.5
  %v3706 = vadd.f32 %v3482, 0.5
  %v3707 = vadd.f32 %v3483, 0.5
  %v3708 = vadd.f32 %v3484, 0.5
  %v3709 = vadd.f32 %v3485, 0.5
  %v3710 = vadd.f32 %v3486, 0.5
  %v3711 = vadd.f32 %v3487, 0.5
  %v3712 = vadd.f32 %v3488, 0.5
  %v3713 = vadd.f32 %v3489, 0.5
  %v3714 = vadd.f32 %v3490, 0.5
  %v3715 = vadd.f32 %v3491, 0.5
  %v3716 = vadd.f32 %v3492, 0.5
  %v3717 = vadd.f32 %v3493, 0.5
  %v3718 = vadd.f32 %v3494, 0.5
  %v3719 = vadd.f32 %v3495, 0.5
  %v3720 = vadd.f32 %v3496, 0.5
  %v3721 = vadd.f32 %v3497, 0.5
  %v3722 = vadd.f32 %v3498, 0.5
  %v3723 = vadd.f32 %v3499, 0.5
  %v3724 = vadd.f32 %v3500, 0.5
  %v3725 = vadd.f32 %v3501, 0.5
  %v3726 = vadd.f32 %v3502, 0.5
  %v3727 = vadd.f32 %v3503, 0.5
  %v3728 = vadd.f32 %v3504, 0.5
  %v3729 = vadd.f32 %v3505, 0.5
  %v3730 = vadd.f32 %v3506, 0.5
  %v3731 = vadd.f32 %v3507, 0.5
  %v3732 = vadd.f32 %v3508, 0.5
  %v3733 = vadd.f32 %v3509, 0.5
  %v3734 = vadd.f32 %v3510, 0.5
  %v3735 = vadd.f32 %v3511, 0.5
  %v3736 = vadd.f32 %v3512, 0.5
  %v3737 = vadd.f32 %v3513, 0.5
  %v3738 = vadd.f32 %v3514, 0.5
  %v3739 = vadd.f32 %v3515, 0.5
  %v3740 = vadd.f32 %v3516, 0.5
  %v3741 = vadd.f32 %v3517, 0.5
  %v3742 = vadd.f32 %v3518, 0.5
  %v3743 = vadd.f32 %v3519, 0.5
  %v3744 = vadd.f32 %v3520, 0.5
  %v3745 = vadd.f32 %v3521, 0.5
  %v3746 = vadd.f32 %v3522, 0.5
  %v3747 = vadd.f32 %v3523, 0.5
  %v3748 = vadd.f32 %v3524, 0.5
  %v3749 = vadd.f32 %v3525, 0.5
  %v3750 = vadd.f32 %v3526, 0.5
  %v3751 = vadd.f32 %v3527, 0.5
  %v3752 = vadd.f32 %v3528, 0.5
  %v3753 = vadd.f32 %v3529, 0.5
  %v3754 = vadd.f32 %v3530, 0.5
  %v3755 = vadd.f32 %v3531, 0.5
  %v3756 = vadd.f32 %v3532, 0.5
  %v3757 = vadd.f32 %v3533, 0.5
  %v3758 = vadd.f32 %v3534, 0.5
  %v3759 = vadd.f32 %v3535, 0.5
  %v3760 = vadd.f32 %v3536, 0.5
  %v3761 = vadd.f32 %v3537, 0.5
  %v3762 = vadd.f32 %v3538, 0.5
  %v3763 = vadd.f32 %v3539, 0.5
  %3764 = vst [vmem:[%s7] sm:$0xff] %v3540
  %3765 = vst [vmem:[%s7 + $0x8] sm:$0xff] %v3541
  %3766 = vst [vmem:[%s7 + $0x10] sm:$0xff] %v3542
  %3767 = vst [vmem:[%s7 + $0x18] sm:$0xff] %v3543
  %3768 = vst [vmem:[%s7 + $0x20] sm:$0xff] %v3544
  %3769 = vst [vmem:[%s7 + $0x28] sm:$0xff] %v3545
  %vm3770 = vcmask 130048
  %3771 = vst.msk [vmem:[%s7 + $0x30] sm:$0xff] %vm3770, %v3546
  %3772 = vst [vmem:[%s7 + $0x38] sm:$0xff] %v3547
  %3773 = vst [vmem:[%s7 + $0x40] sm:$0xff] %v3548
  %3774 = vst [vmem:[%s7 + $0x48] sm:$0xff] %v3549
  %3775 = vst [vmem:[%s7 + $0x50] sm:$0xff] %v3550
  %3776 = vst [vmem:[%s7 + $0x58] sm:$0xff] %v3551
  %3777 = vst [vmem:[%s7 + $0x60] sm:$0xff] %v3552
  %3778 = vst.msk [vmem:[%s7 + $0x68] sm:$0xff] %vm3770, %v3553
  %3779 = vst [vmem:[%s7 + $0x70] sm:$0xff] %v3554
  %3780 = vst [vmem:[%s7 + $0x78] sm:$0xff] %v3555
  %3781 = vst [vmem:[%s7 + $0x80] sm:$0xff] %v3556
  %3782 = vst [vmem:[%s7 + $0x88] sm:$0xff] %v3557
  %3783 = vst [vmem:[%s7 + $0x90] sm:$0xff] %v3558
  %3784 = vst [vmem:[%s7 + $0x98] sm:$0xff] %v3559
  %3785 = vst.msk [vmem:[%s7 + $0xa0] sm:$0xff] %vm3770, %v3560
  %3786 = vst [vmem:[%s7 + $0xa8] sm:$0xff] %v3561
  %3787 = vst [vmem:[%s7 + $0xb0] sm:$0xff] %v3562
  %3788 = vst [vmem:[%s7 + $0xb8] sm:$0xff] %v3563
  %3789 = vst [vmem:[%s7 + $0xc0] sm:$0xff] %v3564
  %3790 = vst [vmem:[%s7 + $0xc8] sm:$0xff] %v3565
  %3791 = vst [vmem:[%s7 + $0xd0] sm:$0xff] %v3566
  %3792 = vst.msk [vmem:[%s7 + $0xd8] sm:$0xff] %vm3770, %v3567
  %3793 = vst [vmem:[%s7 + $0xe0] sm:$0xff] %v3568
  %3794 = vst [vmem:[%s7 + $0xe8] sm:$0xff] %v3569
  %3795 = vst [vmem:[%s7 + $0xf0] sm:$0xff] %v3570
  %3796 = vst [vmem:[%s7 + $0xf8] sm:$0xff] %v3571
  %3797 = vst [vmem:[%s7 + $0x100] sm:$0xff] %v3572
  %3798 = vst [vmem:[%s7 + $0x108] sm:$0xff] %v3573
  %3799 = vst.msk [vmem:[%s7 + $0x110] sm:$0xff] %vm3770, %v3574
  %3800 = vst [vmem:[%s7 + $0x118] sm:$0xff] %v3575
  %3801 = vst [vmem:[%s7 + $0x120] sm:$0xff] %v3576
  %3802 = vst [vmem:[%s7 + $0x128] sm:$0xff] %v3577
  %3803 = vst [vmem:[%s7 + $0x130] sm:$0xff] %v3578
  %3804 = vst [vmem:[%s7 + $0x138] sm:$0xff] %v3579
  %3805 = vst [vmem:[%s7 + $0x140] sm:$0xff] %v3580
  %3806 = vst.msk [vmem:[%s7 + $0x148] sm:$0xff] %vm3770, %v3581
  %3807 = vst [vmem:[%s7 + $0x150] sm:$0xff] %v3582
  %3808 = vst [vmem:[%s7 + $0x158] sm:$0xff] %v3583
  %3809 = vst [vmem:[%s7 + $0x160] sm:$0xff] %v3584
  %3810 = vst [vmem:[%s7 + $0x168] sm:$0xff] %v3585
  %3811 = vst [vmem:[%s7 + $0x170] sm:$0xff] %v3586
  %3812 = vst [vmem:[%s7 + $0x178] sm:$0xff] %v3587
  %3813 = vst.msk [vmem:[%s7 + $0x180] sm:$0xff] %vm3770, %v3588
  %3814 = vst [vmem:[%s7 + $0x188] sm:$0xff] %v3589
  %3815 = vst [vmem:[%s7 + $0x190] sm:$0xff] %v3590
  %3816 = vst [vmem:[%s7 + $0x198] sm:$0xff] %v3591
  %3817 = vst [vmem:[%s7 + $0x1a0] sm:$0xff] %v3592
  %3818 = vst [vmem:[%s7 + $0x1a8] sm:$0xff] %v3593
  %3819 = vst [vmem:[%s7 + $0x1b0] sm:$0xff] %v3594
  %3820 = vst.msk [vmem:[%s7 + $0x1b8] sm:$0xff] %vm3770, %v3595
  %3821 = vst [vmem:[%s7 + $0x1c0] sm:$0xff] %v3596
  %3822 = vst [vmem:[%s7 + $0x1c8] sm:$0xff] %v3597
  %3823 = vst [vmem:[%s7 + $0x1d0] sm:$0xff] %v3598
  %3824 = vst [vmem:[%s7 + $0x1d8] sm:$0xff] %v3599
  %3825 = vst [vmem:[%s7 + $0x1e0] sm:$0xff] %v3600
  %3826 = vst [vmem:[%s7 + $0x1e8] sm:$0xff] %v3601
  %3827 = vst.msk [vmem:[%s7 + $0x1f0] sm:$0xff] %vm3770, %v3602
  %3828 = vst [vmem:[%s7 + $0x1f8] sm:$0xff] %v3603
  %3829 = vst [vmem:[%s7 + $0x200] sm:$0xff] %v3604
  %3830 = vst [vmem:[%s7 + $0x208] sm:$0xff] %v3605
  %3831 = vst [vmem:[%s7 + $0x210] sm:$0xff] %v3606
  %3832 = vst [vmem:[%s7 + $0x218] sm:$0xff] %v3607
  %3833 = vst [vmem:[%s7 + $0x220] sm:$0xff] %v3608
  %3834 = vst.msk [vmem:[%s7 + $0x228] sm:$0xff] %vm3770, %v3609
  %3835 = vst [vmem:[%s7 + $0x230] sm:$0xff] %v3610
  %3836 = vst [vmem:[%s7 + $0x238] sm:$0xff] %v3611
  %3837 = vst [vmem:[%s7 + $0x240] sm:$0xff] %v3612
  %3838 = vst [vmem:[%s7 + $0x248] sm:$0xff] %v3613
  %3839 = vst [vmem:[%s7 + $0x250] sm:$0xff] %v3614
  %3840 = vst [vmem:[%s7 + $0x258] sm:$0xff] %v3615
  %3841 = vst.msk [vmem:[%s7 + $0x260] sm:$0xff] %vm3770, %v3616
  %3842 = vst [vmem:[%s7 + $0x268] sm:$0xff] %v3617
  %3843 = vst [vmem:[%s7 + $0x270] sm:$0xff] %v3618
  %3844 = vst [vmem:[%s7 + $0x278] sm:$0xff] %v3619
  %3845 = vst [vmem:[%s7 + $0x280] sm:$0xff] %v3620
  %3846 = vst [vmem:[%s7 + $0x288] sm:$0xff] %v3621
  %3847 = vst [vmem:[%s7 + $0x290] sm:$0xff] %v3622
  %3848 = vst.msk [vmem:[%s7 + $0x298] sm:$0xff] %vm3770, %v3623
  %3849 = vst [vmem:[%s7 + $0x2a0] sm:$0xff] %v3624
  %3850 = vst [vmem:[%s7 + $0x2a8] sm:$0xff] %v3625
  %3851 = vst [vmem:[%s7 + $0x2b0] sm:$0xff] %v3626
  %3852 = vst [vmem:[%s7 + $0x2b8] sm:$0xff] %v3627
  %3853 = vst [vmem:[%s7 + $0x2c0] sm:$0xff] %v3628
  %3854 = vst [vmem:[%s7 + $0x2c8] sm:$0xff] %v3629
  %3855 = vst.msk [vmem:[%s7 + $0x2d0] sm:$0xff] %vm3770, %v3630
  %3856 = vst [vmem:[%s7 + $0x2d8] sm:$0xff] %v3631
  %3857 = vst [vmem:[%s7 + $0x2e0] sm:$0xff] %v3632
  %3858 = vst [vmem:[%s7 + $0x2e8] sm:$0xff] %v3633
  %3859 = vst [vmem:[%s7 + $0x2f0] sm:$0xff] %v3634
  %3860 = vst [vmem:[%s7 + $0x2f8] sm:$0xff] %v3635
  %3861 = vst [vmem:[%s7 + $0x300] sm:$0xff] %v3636
  %3862 = vst.msk [vmem:[%s7 + $0x308] sm:$0xff] %vm3770, %v3637
  %3863 = vst [vmem:[%s7 + $0x310] sm:$0xff] %v3638
  %3864 = vst [vmem:[%s7 + $0x318] sm:$0xff] %v3639
  %3865 = vst [vmem:[%s7 + $0x320] sm:$0xff] %v3640
  %3866 = vst [vmem:[%s7 + $0x328] sm:$0xff] %v3641
  %3867 = vst [vmem:[%s7 + $0x330] sm:$0xff] %v3642
  %3868 = vst [vmem:[%s7 + $0x338] sm:$0xff] %v3643
  %3869 = vst.msk [vmem:[%s7 + $0x340] sm:$0xff] %vm3770, %v3644
  %3870 = vst [vmem:[%s7 + $0x348] sm:$0xff] %v3645
  %3871 = vst [vmem:[%s7 + $0x350] sm:$0xff] %v3646
  %3872 = vst [vmem:[%s7 + $0x358] sm:$0xff] %v3647
  %3873 = vst [vmem:[%s7 + $0x360] sm:$0xff] %v3648
  %3874 = vst [vmem:[%s7 + $0x368] sm:$0xff] %v3649
  %3875 = vst [vmem:[%s7 + $0x370] sm:$0xff] %v3650
  %3876 = vst.msk [vmem:[%s7 + $0x378] sm:$0xff] %vm3770, %v3651
  %3877 = vst [vmem:[%s7 + $0x380] sm:$0xff] %v3652
  %3878 = vst [vmem:[%s7 + $0x388] sm:$0xff] %v3653
  %3879 = vst [vmem:[%s7 + $0x390] sm:$0xff] %v3654
  %3880 = vst [vmem:[%s7 + $0x398] sm:$0xff] %v3655
  %3881 = vst [vmem:[%s7 + $0x3a0] sm:$0xff] %v3656
  %3882 = vst [vmem:[%s7 + $0x3a8] sm:$0xff] %v3657
  %3883 = vst.msk [vmem:[%s7 + $0x3b0] sm:$0xff] %vm3770, %v3658
  %3884 = vst [vmem:[%s7 + $0x3b8] sm:$0xff] %v3659
  %3885 = vst [vmem:[%s7 + $0x3c0] sm:$0xff] %v3660
  %3886 = vst [vmem:[%s7 + $0x3c8] sm:$0xff] %v3661
  %3887 = vst [vmem:[%s7 + $0x3d0] sm:$0xff] %v3662
  %3888 = vst [vmem:[%s7 + $0x3d8] sm:$0xff] %v3663
  %3889 = vst [vmem:[%s7 + $0x3e0] sm:$0xff] %v3664
  %3890 = vst.msk [vmem:[%s7 + $0x3e8] sm:$0xff] %vm3770, %v3665
  %3891 = vst [vmem:[%s7 + $0x3f0] sm:$0xff] %v3666
  %3892 = vst [vmem:[%s7 + $0x3f8] sm:$0xff] %v3667
  %3893 = vst [vmem:[%s7 + $0x400] sm:$0xff] %v3668
  %3894 = vst [vmem:[%s7 + $0x408] sm:$0xff] %v3669
  %3895 = vst [vmem:[%s7 + $0x410] sm:$0xff] %v3670
  %3896 = vst [vmem:[%s7 + $0x418] sm:$0xff] %v3671
  %3897 = vst.msk [vmem:[%s7 + $0x420] sm:$0xff] %vm3770, %v3672
  %3898 = vst [vmem:[%s7 + $0x428] sm:$0xff] %v3673
  %3899 = vst [vmem:[%s7 + $0x430] sm:$0xff] %v3674
  %3900 = vst [vmem:[%s7 + $0x438] sm:$0xff] %v3675
  %3901 = vst [vmem:[%s7 + $0x440] sm:$0xff] %v3676
  %3902 = vst [vmem:[%s7 + $0x448] sm:$0xff] %v3677
  %3903 = vst [vmem:[%s7 + $0x450] sm:$0xff] %v3678
  %3904 = vst.msk [vmem:[%s7 + $0x458] sm:$0xff] %vm3770, %v3679
  %3905 = vst [vmem:[%s7 + $0x460] sm:$0xff] %v3680
  %3906 = vst [vmem:[%s7 + $0x468] sm:$0xff] %v3681
  %3907 = vst [vmem:[%s7 + $0x470] sm:$0xff] %v3682
  %3908 = vst [vmem:[%s7 + $0x478] sm:$0xff] %v3683
  %3909 = vst [vmem:[%s7 + $0x480] sm:$0xff] %v3684
  %3910 = vst [vmem:[%s7 + $0x488] sm:$0xff] %v3685
  %3911 = vst.msk [vmem:[%s7 + $0x490] sm:$0xff] %vm3770, %v3686
  %3912 = vst [vmem:[%s7 + $0x498] sm:$0xff] %v3687
  %3913 = vst [vmem:[%s7 + $0x4a0] sm:$0xff] %v3688
  %3914 = vst [vmem:[%s7 + $0x4a8] sm:$0xff] %v3689
  %3915 = vst [vmem:[%s7 + $0x4b0] sm:$0xff] %v3690
  %3916 = vst [vmem:[%s7 + $0x4b8] sm:$0xff] %v3691
  %3917 = vst [vmem:[%s7 + $0x4c0] sm:$0xff] %v3692
  %3918 = vst.msk [vmem:[%s7 + $0x4c8] sm:$0xff] %vm3770, %v3693
  %3919 = vst [vmem:[%s7 + $0x4d0] sm:$0xff] %v3694
  %3920 = vst [vmem:[%s7 + $0x4d8] sm:$0xff] %v3695
  %3921 = vst [vmem:[%s7 + $0x4e0] sm:$0xff] %v3696
  %3922 = vst [vmem:[%s7 + $0x4e8] sm:$0xff] %v3697
  %3923 = vst [vmem:[%s7 + $0x4f0] sm:$0xff] %v3698
  %3924 = vst [vmem:[%s7 + $0x4f8] sm:$0xff] %v3699
  %3925 = vst.msk [vmem:[%s7 + $0x500] sm:$0xff] %vm3770, %v3700
  %3926 = vst [vmem:[%s7 + $0x508] sm:$0xff] %v3701
  %3927 = vst [vmem:[%s7 + $0x510] sm:$0xff] %v3702
  %3928 = vst [vmem:[%s7 + $0x518] sm:$0xff] %v3703
  %3929 = vst [vmem:[%s7 + $0x520] sm:$0xff] %v3704
  %3930 = vst [vmem:[%s7 + $0x528] sm:$0xff] %v3705
  %3931 = vst [vmem:[%s7 + $0x530] sm:$0xff] %v3706
  %3932 = vst.msk [vmem:[%s7 + $0x538] sm:$0xff] %vm3770, %v3707
  %3933 = vst [vmem:[%s7 + $0x540] sm:$0xff] %v3708
  %3934 = vst [vmem:[%s7 + $0x548] sm:$0xff] %v3709
  %3935 = vst [vmem:[%s7 + $0x550] sm:$0xff] %v3710
  %3936 = vst [vmem:[%s7 + $0x558] sm:$0xff] %v3711
  %3937 = vst [vmem:[%s7 + $0x560] sm:$0xff] %v3712
  %3938 = vst [vmem:[%s7 + $0x568] sm:$0xff] %v3713
  %3939 = vst.msk [vmem:[%s7 + $0x570] sm:$0xff] %vm3770, %v3714
  %3940 = vst [vmem:[%s7 + $0x578] sm:$0xff] %v3715
  %3941 = vst [vmem:[%s7 + $0x580] sm:$0xff] %v3716
  %3942 = vst [vmem:[%s7 + $0x588] sm:$0xff] %v3717
  %3943 = vst [vmem:[%s7 + $0x590] sm:$0xff] %v3718
  %3944 = vst [vmem:[%s7 + $0x598] sm:$0xff] %v3719
  %3945 = vst [vmem:[%s7 + $0x5a0] sm:$0xff] %v3720
  %3946 = vst.msk [vmem:[%s7 + $0x5a8] sm:$0xff] %vm3770, %v3721
  %3947 = vst [vmem:[%s7 + $0x5b0] sm:$0xff] %v3722
  %3948 = vst [vmem:[%s7 + $0x5b8] sm:$0xff] %v3723
  %3949 = vst [vmem:[%s7 + $0x5c0] sm:$0xff] %v3724
  %3950 = vst [vmem:[%s7 + $0x5c8] sm:$0xff] %v3725
  %3951 = vst [vmem:[%s7 + $0x5d0] sm:$0xff] %v3726
  %3952 = vst [vmem:[%s7 + $0x5d8] sm:$0xff] %v3727
  %3953 = vst.msk [vmem:[%s7 + $0x5e0] sm:$0xff] %vm3770, %v3728
  %3954 = vst [vmem:[%s7 + $0x5e8] sm:$0xff] %v3729
  %3955 = vst [vmem:[%s7 + $0x5f0] sm:$0xff] %v3730
  %3956 = vst [vmem:[%s7 + $0x5f8] sm:$0xff] %v3731
  %3957 = vst [vmem:[%s7 + $0x600] sm:$0xff] %v3732
  %3958 = vst [vmem:[%s7 + $0x608] sm:$0xff] %v3733
  %3959 = vst [vmem:[%s7 + $0x610] sm:$0xff] %v3734
  %3960 = vst.msk [vmem:[%s7 + $0x618] sm:$0xff] %vm3770, %v3735
  %3961 = vst [vmem:[%s7 + $0x620] sm:$0xff] %v3736
  %3962 = vst [vmem:[%s7 + $0x628] sm:$0xff] %v3737
  %3963 = vst [vmem:[%s7 + $0x630] sm:$0xff] %v3738
  %3964 = vst [vmem:[%s7 + $0x638] sm:$0xff] %v3739
  %3965 = vst [vmem:[%s7 + $0x640] sm:$0xff] %v3740
  %3966 = vst [vmem:[%s7 + $0x648] sm:$0xff] %v3741
  %3967 = vst.msk [vmem:[%s7 + $0x650] sm:$0xff] %vm3770, %v3742
  %3968 = vst [vmem:[%s7 + $0x658] sm:$0xff] %v3743
  %3969 = vst [vmem:[%s7 + $0x660] sm:$0xff] %v3744
  %3970 = vst [vmem:[%s7 + $0x668] sm:$0xff] %v3745
  %3971 = vst [vmem:[%s7 + $0x670] sm:$0xff] %v3746
  %3972 = vst [vmem:[%s7 + $0x678] sm:$0xff] %v3747
  %3973 = vst [vmem:[%s7 + $0x680] sm:$0xff] %v3748
  %3974 = vst.msk [vmem:[%s7 + $0x688] sm:$0xff] %vm3770, %v3749
  %3975 = vst [vmem:[%s7 + $0x690] sm:$0xff] %v3750
  %3976 = vst [vmem:[%s7 + $0x698] sm:$0xff] %v3751
  %3977 = vst [vmem:[%s7 + $0x6a0] sm:$0xff] %v3752
  %3978 = vst [vmem:[%s7 + $0x6a8] sm:$0xff] %v3753
  %3979 = vst [vmem:[%s7 + $0x6b0] sm:$0xff] %v3754
  %3980 = vst [vmem:[%s7 + $0x6b8] sm:$0xff] %v3755
  %3981 = vst.msk [vmem:[%s7 + $0x6c0] sm:$0xff] %vm3770, %v3756
  %3982 = vst [vmem:[%s7 + $0x6c8] sm:$0xff] %v3757
  %3983 = vst [vmem:[%s7 + $0x6d0] sm:$0xff] %v3758
  %3984 = vst [vmem:[%s7 + $0x6d8] sm:$0xff] %v3759
  %3985 = vst [vmem:[%s7 + $0x6e0] sm:$0xff] %v3760
  %3986 = vst [vmem:[%s7 + $0x6e8] sm:$0xff] %v3761
  %3987 = vst [vmem:[%s7 + $0x6f0] sm:$0xff] %v3762
  %3988 = vst.msk [vmem:[%s7 + $0x6f8] sm:$0xff] %vm3770, %v3763
  // Predicated region
  $region30: #{discriminator_forward.1} parent=0 // pred_check
    _
  $region31: #{discriminator_forward.1} parent=0 // pred_check_branch
    %3990 = sbr.rel (0) target = $region33
  $region32: #{discriminator_forward.1} parent=0 // pred_region
    _
  $region33: #{discriminator_forward.1} parent=0 // pred_fallthru
    _
  // Predicated region
  $region34: #{discriminator_forward.1} parent=0 // pred_check
    _
  $region35: #{discriminator_forward.1} parent=0 // pred_check_branch
    %3992 = sbr.rel (0) target = $region37
  $region36: #{discriminator_forward.1} parent=0 // pred_region
    _
  $region37: #{discriminator_forward.1} parent=0 // pred_fallthru
    _

</llo_original>
